<compile_context>
chip_gen: v6e
topology: v6e:2x2x1
jax: 0.10.0
libtpu: 0.0.40
codegen_flags: <defaults>
</compile_context>

<pallas_src>
import math

import jax
import jax.numpy as jnp
from jax.experimental import pallas as pl
from jax.experimental.pallas import tpu as pltpu

# ---------------- synthetic "bert-base-uncased"-like config (small) ----------
VOCAB = 100
HIDDEN = 32            # language_dim analogue (768 in real model)
NUM_HEADS = 4
NUM_HIDDEN_LAYERS = 3  # encoder depth
INTERMEDIATE = 64
MAX_POS = 64
TYPE_VOCAB = 2
N_LAYERS = 2           # cfg.MODEL.LANGUAGE_BACKBONE.N_LAYERS (aggregation depth)
LN_EPS = 1e-12


# ---------------- in-kernel helpers ------------------------------------------
def _ln(x, g, b):
    mean = jnp.mean(x, axis=-1, keepdims=True)
    var = jnp.mean((x - mean) ** 2, axis=-1, keepdims=True)
    return (x - mean) * jax.lax.rsqrt(var + LN_EPS) * g + b


def _gelu(x):
    # TODO(synk): HF BERT uses exact erf-GELU; tanh approximation used here for
    # robust EUP lowering (difference is ~1e-3, systematic but tiny).
    return 0.5 * x * (1.0 + jnp.tanh(0.7978845608028654 * (x + 0.044715 * x * x * x)))


# ---------------- fused encoder kernel ----------------------------------------
def make_encoder_kernel(num_hidden_layers, num_heads, n_agg_layers, batch, seq):
    def kernel(emb_ref, mbias_ref, mcol_ref, eg_ref, eb_ref,
               wqkv_ref, bqkv_ref, wo_ref, bo_ref, g1_ref, b1_ref,
               wi_ref, bi_ref, wf_ref, bf_ref, g2_ref, b2_ref,
               hid_ref, emb_out_ref, agg_ref,
               x_scr, feats_scr):
        l = pl.program_id(0)                       # encoder layer index
        BS, H = emb_ref.shape                      # (B*S, H)
        B, S = batch, seq
        hd = H // num_heads

        # ---- layer-0 init: embedding LayerNorm + feats accumulator ---------
        @pl.when(l == 0)
        def _():
            x_scr[...] = _ln(emb_ref[...], eg_ref[...], eb_ref[...])
            feats_scr[...] = jnp.zeros_like(feats_scr)

        x = x_scr[...]                             # (B*S, H) f32

        # ---- fused QKV projection (1/sqrt(hd) folded into Q in pack_params) -
        wqkv = wqkv_ref[0]                         # (H, 3H) bf16
        qkv = jnp.dot(x.astype(wqkv.dtype), wqkv,
                      preferred_element_type=jnp.float32) + bqkv_ref[0]
        q = qkv[:, :H].reshape(B, S, H)
        k = qkv[:, H:2 * H].reshape(B, S, H)
        v = qkv[:, 2 * H:].reshape(B, S, H)

        # hoisted additive-mask broadcast (once per layer, not per head)
        mbias = jnp.broadcast_to(mbias_ref[...], (B, S, S))

        # ---- multi-head attention; head contexts stay in registers ----------
        ctx_heads = []
        for hh in range(num_heads):                # static loop over heads
            sl = slice(hh * hd, (hh + 1) * hd)
            s = jnp.einsum('bqd,bkd->bqk', q[:, :, sl], k[:, :, sl],
                           preferred_element_type=jnp.float32) + mbias
            s = s - jnp.max(s, axis=-1, keepdims=True)
            p = jnp.exp(s)
            # TODO(synk): approx EUP reciprocal; tiny deviation from exact softmax.
            p = p * pl.reciprocal(jnp.sum(p, axis=-1, keepdims=True), approx=True)
            ctx_heads.append(jnp.einsum('bqk,bkd->bqd', p, v[:, :, sl],
                                        preferred_element_type=jnp.float32))
        ctx = jnp.concatenate(ctx_heads, axis=-1).reshape(BS, H)

        wo = wo_ref[0]
        attn = jnp.dot(ctx.astype(wo.dtype), wo,
                       preferred_element_type=jnp.float32) + bo_ref[0]
        x1 = _ln(attn + x, g1_ref[0], b1_ref[0])   # post-attention LN

        # ---- FFN -------------------------------------------------------------
        wi = wi_ref[0]
        inter = _gelu(jnp.dot(x1.astype(wi.dtype), wi,
                              preferred_element_type=jnp.float32) + bi_ref[0])
        wf = wf_ref[0]
        ff = jnp.dot(inter.astype(wf.dtype), wf,
                     preferred_element_type=jnp.float32) + bf_ref[0]
        x_new = _ln(ff + x1, g2_ref[0], b2_ref[0])  # post-FFN LN
        x_scr[...] = x_new

        # accumulate the last n_agg_layers hidden states (cheap select, no branch)
        agg_gate = (l >= num_hidden_layers - n_agg_layers).astype(jnp.float32)
        feats = feats_scr[...] + agg_gate * x_new
        feats_scr[...] = feats

        # ---- epilogue on the last layer: outputs written once from registers -
        @pl.when(l == num_hidden_layers - 1)
        def _():
            hid_ref[...] = x_new
            # torch.stack(last L hidden states, 1).mean(1) / num_layers == sum / L^2
            feats_s = feats * (1.0 / float(n_agg_layers * n_agg_layers))
            emb_masked = feats_s * mcol_ref[...]                 # (B*S, H)
            emb_out_ref[...] = emb_masked
            em3 = emb_masked.reshape(B, S, H)
            msum = jnp.sum(mcol_ref[...].reshape(B, S, 1), axis=1)   # (B, 1)
            # NOTE: no guard on msum==0, matching the PyTorch reference (a fully
            # masked sequence yields a non-finite aggregate there too).
            agg_ref[...] = jnp.sum(em3, axis=1) / msum

    return kernel


# ---------------- parameters ---------------------------------------------------
def init_params(key):
    ki = iter(jax.random.split(key, 64))

    def nrm(shape):
        return 0.02 * jax.random.normal(next(ki), shape, jnp.float32)

    def zeros(shape):
        return jnp.zeros(shape, jnp.float32)

    def ones(shape):
        return jnp.ones(shape, jnp.float32)

    p = {
        'word_emb': nrm((VOCAB, HIDDEN)),
        'pos_emb': nrm((MAX_POS, HIDDEN)),
        'tok_emb': nrm((TYPE_VOCAB, HIDDEN)),
        'emb_ln_g': ones((1, HIDDEN)),
        'emb_ln_b': zeros((1, HIDDEN)),
        'layers': [],
    }
    for _ in range(NUM_HIDDEN_LAYERS):
        p['layers'].append({
            'wq': nrm((HIDDEN, HIDDEN)), 'bq': zeros((1, HIDDEN)),
            'wk': nrm((HIDDEN, HIDDEN)), 'bk': zeros((1, HIDDEN)),
            'wv': nrm((HIDDEN, HIDDEN)), 'bv': zeros((1, HIDDEN)),
            'wo': nrm((HIDDEN, HIDDEN)), 'bo': zeros((1, HIDDEN)),
            'ln1_g': ones((1, HIDDEN)), 'ln1_b': zeros((1, HIDDEN)),
            'wi': nrm((HIDDEN, INTERMEDIATE)), 'bi': zeros((1, INTERMEDIATE)),
            'wf': nrm((INTERMEDIATE, HIDDEN)), 'bf': zeros((1, HIDDEN)),
            'ln2_g': ones((1, HIDDEN)), 'ln2_b': zeros((1, HIDDEN)),
        })
    return p


def pack_params(params):
    """Stack per-layer weights along a leading layer axis (streamed per grid
    step); fuse QKV; fold the 1/sqrt(head_dim) scale into the Q weights/bias;
    cast matmul weights to bf16."""
    hd = HIDDEN // NUM_HEADS
    scale = 1.0 / math.sqrt(hd)

    def stk(name):
        return jnp.stack([lp[name] for lp in params['layers']], axis=0)

    wq = stk('wq') * scale
    bq = stk('bq') * scale
    wqkv = jnp.concatenate([wq, stk('wk'), stk('wv')], axis=2).astype(jnp.bfloat16)
    bqkv = jnp.concatenate([bq, stk('bk'), stk('bv')], axis=2)

    return {
        'wqkv': wqkv, 'bqkv': bqkv,
        'wo': stk('wo').astype(jnp.bfloat16), 'bo': stk('bo'),
        'g1': stk('ln1_g'), 'b1': stk('ln1_b'),
        'wi': stk('wi').astype(jnp.bfloat16), 'bi': stk('bi'),
        'wf': stk('wf').astype(jnp.bfloat16), 'bf': stk('bf'),
        'g2': stk('ln2_g'), 'b2': stk('ln2_b'),
    }


# ------ forward (mirrors BertEncoder.forward, USE_DOT_PRODUCT_TOKEN_LOSS branch) ------
def bert_encoder_forward(params, packed, x):
    input_ids = x['input_ids']            # (B, S) int32
    attention_mask = x['attention_mask']  # (B, S) int32
    # TODO(synk): textual_prompt / visual-prompt (LPAI) interaction path of the
    # custom BertModel (prompt depth / LoRA interact) is not modeled; ignored.
    B, S = input_ids.shape
    H = HIDDEN
    L = NUM_HIDDEN_LAYERS
    mask_f = attention_mask.astype(jnp.float32)

    # embeddings: word + position + token_type(0)  (gathers are plain-JAX glue)
    emb = (params['word_emb'][input_ids]
           + params['pos_emb'][jnp.arange(S)][None, :, :]
           + params['tok_emb'][0][None, None, :])
    emb_flat = emb.reshape(B * S, H)
    mask_bias = ((1.0 - mask_f) * -10000.0)[:, None, :]   # (B, 1, S) additive
    mask_col = mask_f.reshape(B * S, 1)                   # (B*S, 1) multiplicative

    def const_spec(shape):
        n = len(shape)
        return pl.BlockSpec(tuple(shape), lambda l, _n=n: (0,) * _n)

    def layer_spec(shape):   # stream one layer's weights per grid step
        n = len(shape)
        return pl.BlockSpec((1,) + tuple(shape[1:]),
                            lambda l, _n=n: (l,) + (0,) * (_n - 1))

    in_specs = [
        const_spec(emb_flat.shape),          # embeddings (read at l==0)
        const_spec(mask_bias.shape),         # additive attention mask
        const_spec(mask_col.shape),          # multiplicative mask (epilogue)
        const_spec(params['emb_ln_g'].shape),
        const_spec(params['emb_ln_b'].shape),
        layer_spec(packed['wqkv'].shape), layer_spec(packed['bqkv'].shape),
        layer_spec(packed['wo'].shape), layer_spec(packed['bo'].shape),
        layer_spec(packed['g1'].shape), layer_spec(packed['b1'].shape),
        layer_spec(packed['wi'].shape), layer_spec(packed['bi'].shape),
        layer_spec(packed['wf'].shape), layer_spec(packed['bf'].shape),
        layer_spec(packed['g2'].shape), layer_spec(packed['b2'].shape),
    ]
    out_specs = (
        const_spec((B * S, H)),   # hidden (last layer)
        const_spec((B * S, H)),   # embedded (masked mean of last N layers)
        const_spec((B, H)),       # aggregate
    )

    kernel = make_encoder_kernel(L, NUM_HEADS, N_LAYERS, B, S)

    hidden_f, embedded_f, aggregate = pl.pallas_call(
        kernel,
        out_shape=(jax.ShapeDtypeStruct((B * S, H), jnp.float32),
                   jax.ShapeDtypeStruct((B * S, H), jnp.float32),
                   jax.ShapeDtypeStruct((B, H), jnp.float32)),
        grid_spec=pltpu.PrefetchScalarGridSpec(
            num_scalar_prefetch=0,
            grid=(L,),                      # layer axis (carried state) only
            in_specs=in_specs,
            out_specs=out_specs,
            scratch_shapes=[pltpu.VMEM((B * S, H), jnp.float32),   # x carry
                            pltpu.VMEM((B * S, H), jnp.float32)]), # feats carry
        compiler_params=pltpu.CompilerParams(
            dimension_semantics=("arbitrary",),
            vmem_limit_bytes=32 * 1024 * 1024),
    )(emb_flat, mask_bias, mask_col,
      params['emb_ln_g'], params['emb_ln_b'],
      packed['wqkv'], packed['bqkv'], packed['wo'], packed['bo'],
      packed['g1'], packed['b1'], packed['wi'], packed['bi'],
      packed['wf'], packed['bf'], packed['g2'], packed['b2'])

    return {
        'aggregate': aggregate,                  # (B, H)
        'embedded': embedded_f.reshape(B, S, H), # (B, S, H)
        'masks': attention_mask,                 # (B, S)
        'hidden': hidden_f.reshape(B, S, H),     # (B, S, H)
    }


# ---------------- main ----------------------------------------------------------
if __name__ == "__main__":
    key = jax.random.PRNGKey(0)
    kp, kid = jax.random.split(key)
    params = init_params(kp)
    packed = pack_params(params)

    B, S = 2, 8
    input_ids = jax.random.randint(kid, (B, S), 1, VOCAB, dtype=jnp.int32)
    attention_mask = jnp.array([[1, 1, 1, 1, 1, 1, 1, 1],
                                [1, 1, 1, 1, 1, 1, 0, 0]], dtype=jnp.int32)
    textual_prompt = jnp.zeros((B, 4, HIDDEN), jnp.float32)  # present, unused

    out = bert_encoder_forward(params, packed, {
        'input_ids': input_ids,
        'attention_mask': attention_mask,
        'textual_prompt': textual_prompt,
    })
    jax.tree_util.tree_map(jax.block_until_ready, out)

    assert out['aggregate'].shape == (B, HIDDEN)
    assert out['embedded'].shape == (B, S, HIDDEN)
    assert out['hidden'].shape == (B, S, HIDDEN)
    print("KERNEL_OK")
</pallas_src>

<mosaic_0001>
module attributes {stable_mosaic.version = 11 : i64} {
  func.func @kernel(%arg0: i32, %arg1: memref<16x32xf32, #tpu.memory_space<vmem>>, %arg2: memref<2x1x8xf32, #tpu.memory_space<vmem>>, %arg3: memref<16x1xf32, #tpu.memory_space<vmem>>, %arg4: memref<1x32xf32, #tpu.memory_space<vmem>>, %arg5: memref<1x32xf32, #tpu.memory_space<vmem>>, %arg6: memref<1x32x96xbf16, #tpu.memory_space<vmem>>, %arg7: memref<1x1x96xf32, #tpu.memory_space<vmem>>, %arg8: memref<1x32x32xbf16, #tpu.memory_space<vmem>>, %arg9: memref<1x1x32xf32, #tpu.memory_space<vmem>>, %arg10: memref<1x1x32xf32, #tpu.memory_space<vmem>>, %arg11: memref<1x1x32xf32, #tpu.memory_space<vmem>>, %arg12: memref<1x32x64xbf16, #tpu.memory_space<vmem>>, %arg13: memref<1x1x64xf32, #tpu.memory_space<vmem>>, %arg14: memref<1x64x32xbf16, #tpu.memory_space<vmem>>, %arg15: memref<1x1x32xf32, #tpu.memory_space<vmem>>, %arg16: memref<1x1x32xf32, #tpu.memory_space<vmem>>, %arg17: memref<1x1x32xf32, #tpu.memory_space<vmem>>, %arg18: memref<16x32xf32, #tpu.memory_space<vmem>>, %arg19: memref<16x32xf32, #tpu.memory_space<vmem>>, %arg20: memref<2x32xf32, #tpu.memory_space<vmem>>, %arg21: memref<16x32xf32, #tpu.memory_space<vmem>>, %arg22: memref<16x32xf32, #tpu.memory_space<vmem>>) attributes {dimension_semantics = [#tpu.dimension_semantics<arbitrary>], iteration_bounds = array<i64: 3>, scalar_prefetch = 0 : i64, scratch_operands = 2 : i64, tpu.core_type = #tpu.core_type<tc>, window_params = [{pipeline_mode = #tpu.pipeline_mode<synchronous>, transform_indices = @transform_0, window_bounds = array<i64: 16, 32>}, {pipeline_mode = #tpu.pipeline_mode<synchronous>, transform_indices = @transform_1, window_bounds = array<i64: 2, 1, 8>}, {pipeline_mode = #tpu.pipeline_mode<synchronous>, transform_indices = @transform_2, window_bounds = array<i64: 16, 1>}, {pipeline_mode = #tpu.pipeline_mode<synchronous>, transform_indices = @transform_3, window_bounds = array<i64: 1, 32>}, {pipeline_mode = #tpu.pipeline_mode<synchronous>, transform_indices = @transform_4, window_bounds = array<i64: 1, 32>}, {transform_indices = @transform_5, window_bounds = array<i64: 1, 32, 96>}, {transform_indices = @transform_6, window_bounds = array<i64: 1, 1, 96>}, {transform_indices = @transform_7, window_bounds = array<i64: 1, 32, 32>}, {transform_indices = @transform_8, window_bounds = array<i64: 1, 1, 32>}, {transform_indices = @transform_9, window_bounds = array<i64: 1, 1, 32>}, {transform_indices = @transform_10, window_bounds = array<i64: 1, 1, 32>}, {transform_indices = @transform_11, window_bounds = array<i64: 1, 32, 64>}, {transform_indices = @transform_12, window_bounds = array<i64: 1, 1, 64>}, {transform_indices = @transform_13, window_bounds = array<i64: 1, 64, 32>}, {transform_indices = @transform_14, window_bounds = array<i64: 1, 1, 32>}, {transform_indices = @transform_15, window_bounds = array<i64: 1, 1, 32>}, {transform_indices = @transform_16, window_bounds = array<i64: 1, 1, 32>}, {pipeline_mode = #tpu.pipeline_mode<synchronous>, transform_indices = @transform_17, window_bounds = array<i64: 16, 32>}, {pipeline_mode = #tpu.pipeline_mode<synchronous>, transform_indices = @transform_18, window_bounds = array<i64: 16, 32>}, {pipeline_mode = #tpu.pipeline_mode<synchronous>, transform_indices = @transform_19, window_bounds = array<i64: 2, 32>}]} {
    %c0_i32 = arith.constant 0 : i32
    %0 = arith.cmpi eq, %arg0, %c0_i32 : i32
    %1 = arith.extui %0 : i1 to i32
    %c0_i32_0 = arith.constant 0 : i32
    %2 = arith.cmpi ne, %1, %c0_i32_0 : i32
    scf.if %2 {
      %c0_81 = arith.constant 0 : index
      %c0_82 = arith.constant 0 : index
      %190 = vector.load %arg1[%c0_81, %c0_82] : memref<16x32xf32, #tpu.memory_space<vmem>>, vector<16x32xf32>
      %c0_83 = arith.constant 0 : index
      %c0_84 = arith.constant 0 : index
      %191 = vector.load %arg4[%c0_83, %c0_84] : memref<1x32xf32, #tpu.memory_space<vmem>>, vector<1x32xf32>
      %c0_85 = arith.constant 0 : index
      %c0_86 = arith.constant 0 : index
      %192 = vector.load %arg5[%c0_85, %c0_86] : memref<1x32xf32, #tpu.memory_space<vmem>>, vector<1x32xf32>
      %cst_87 = arith.constant dense<0.000000e+00> : vector<16xf32>
      %193 = vector.multi_reduction <add>, %190, %cst_87 [1] : vector<16x32xf32> to vector<16xf32>
      %194 = vector.shape_cast %193 : vector<16xf32> to vector<16x1xf32>
      %cst_88 = arith.constant 3.200000e+01 : f32
      %195 = vector.broadcast %cst_88 : f32 to vector<16x1xf32>
      %196 = arith.divf %194, %195 : vector<16x1xf32>
      %197 = vector.broadcast %196 : vector<16x1xf32> to vector<16x32xf32>
      %198 = arith.subf %190, %197 : vector<16x32xf32>
      %199 = arith.mulf %198, %198 : vector<16x32xf32>
      %cst_89 = arith.constant dense<0.000000e+00> : vector<16xf32>
      %200 = vector.multi_reduction <add>, %199, %cst_89 [1] : vector<16x32xf32> to vector<16xf32>
      %201 = vector.shape_cast %200 : vector<16xf32> to vector<16x1xf32>
      %cst_90 = arith.constant 3.200000e+01 : f32
      %202 = vector.broadcast %cst_90 : f32 to vector<16x1xf32>
      %203 = arith.divf %201, %202 : vector<16x1xf32>
      %204 = vector.broadcast %196 : vector<16x1xf32> to vector<16x32xf32>
      %205 = arith.subf %190, %204 : vector<16x32xf32>
      %cst_91 = arith.constant 9.99999996E-13 : f32
      %206 = vector.broadcast %cst_91 : f32 to vector<16x1xf32>
      %207 = arith.addf %203, %206 : vector<16x1xf32>
      %208 = math.rsqrt %207 : vector<16x1xf32>
      %209 = vector.broadcast %208 : vector<16x1xf32> to vector<16x32xf32>
      %210 = arith.mulf %205, %209 : vector<16x32xf32>
      %211 = vector.broadcast %191 : vector<1x32xf32> to vector<16x32xf32>
      %212 = arith.mulf %210, %211 : vector<16x32xf32>
      %213 = vector.broadcast %192 : vector<1x32xf32> to vector<16x32xf32>
      %214 = arith.addf %212, %213 : vector<16x32xf32>
      %c0_92 = arith.constant 0 : index
      %c0_93 = arith.constant 0 : index
      %215 = vector.load %arg21[%c0_92, %c0_93] : memref<16x32xf32, #tpu.memory_space<vmem>>, vector<16x32xf32>
      tpu.vector_store %arg21[%c0_92, %c0_93], %214 {strides = array<i32>} : memref<16x32xf32, #tpu.memory_space<vmem>>, vector<16x32xf32>,
      %cst_94 = arith.constant 0.000000e+00 : f32
      %216 = vector.broadcast %cst_94 : f32 to vector<16x32xf32>
      %c0_95 = arith.constant 0 : index
      %c0_96 = arith.constant 0 : index
      %217 = vector.load %arg22[%c0_95, %c0_96] : memref<16x32xf32, #tpu.memory_space<vmem>>, vector<16x32xf32>
      tpu.vector_store %arg22[%c0_95, %c0_96], %216 {strides = array<i32>} : memref<16x32xf32, #tpu.memory_space<vmem>>, vector<16x32xf32>,
    } else {
    }
    %c0 = arith.constant 0 : index
    %c0_1 = arith.constant 0 : index
    %3 = vector.load %arg21[%c0, %c0_1] : memref<16x32xf32, #tpu.memory_space<vmem>>, vector<16x32xf32>
    %c0_2 = arith.constant 0 : index
    %c0_3 = arith.constant 0 : index
    %c0_4 = arith.constant 0 : index
    %4 = vector.load %arg6[%c0_2, %c0_3, %c0_4] : memref<1x32x96xbf16, #tpu.memory_space<vmem>>, vector<1x32x96xbf16>
    %5 = vector.shape_cast %4 : vector<1x32x96xbf16> to vector<32x96xbf16>
    %6 = arith.truncf %3 : vector<16x32xf32> to vector<16x32xbf16>
    %cst = arith.constant dense<0.000000e+00> : vector<16x96xf32>
    %7 = tpu.matmul %6, %5, %cst {dimension_numbers = #tpu.dot_dimension_numbers<[1], [0], [0], [1], [0, 0, 1, 1], [], []>} : vector<16x32xbf16>, vector<32x96xbf16>, vector<16x96xf32> -> vector<16x96xf32>
    %c0_5 = arith.constant 0 : index
    %c0_6 = arith.constant 0 : index
    %c0_7 = arith.constant 0 : index
    %8 = vector.load %arg7[%c0_5, %c0_6, %c0_7] : memref<1x1x96xf32, #tpu.memory_space<vmem>>, vector<1x1x96xf32>
    %9 = vector.shape_cast %8 : vector<1x1x96xf32> to vector<1x96xf32>
    %10 = vector.broadcast %9 : vector<1x96xf32> to vector<16x96xf32>
    %11 = arith.addf %7, %10 : vector<16x96xf32>
    %12 = vector.extract_strided_slice %11 {offsets = [0, 0], sizes = [16, 32], strides = [1, 1]} : vector<16x96xf32> to vector<16x32xf32>
    %13 = vector.shape_cast %12 : vector<16x32xf32> to vector<2x8x32xf32>
    %14 = vector.extract_strided_slice %11 {offsets = [0, 32], sizes = [16, 32], strides = [1, 1]} : vector<16x96xf32> to vector<16x32xf32>
    %15 = vector.shape_cast %14 : vector<16x32xf32> to vector<2x8x32xf32>
    %16 = vector.extract_strided_slice %11 {offsets = [0, 64], sizes = [16, 32], strides = [1, 1]} : vector<16x96xf32> to vector<16x32xf32>
    %17 = vector.shape_cast %16 : vector<16x32xf32> to vector<2x8x32xf32>
    %c0_8 = arith.constant 0 : index
    %c0_9 = arith.constant 0 : index
    %c0_10 = arith.constant 0 : index
    %18 = vector.load %arg2[%c0_8, %c0_9, %c0_10] : memref<2x1x8xf32, #tpu.memory_space<vmem>>, vector<2x1x8xf32>
    %19 = vector.shape_cast %18 : vector<2x1x8xf32> to vector<2x1x8xf32>
    %20 = vector.broadcast %19 : vector<2x1x8xf32> to vector<2x8x8xf32>
    %21 = vector.extract_strided_slice %13 {offsets = [0, 0, 0], sizes = [2, 8, 8], strides = [1, 1, 1]} : vector<2x8x32xf32> to vector<2x8x8xf32>
    %22 = vector.extract_strided_slice %15 {offsets = [0, 0, 0], sizes = [2, 8, 8], strides = [1, 1, 1]} : vector<2x8x32xf32> to vector<2x8x8xf32>
    "tpu.trace_start"() <{level = 10 : i32, message = "bqd,bkd->bqk"}> : () -> ()
    %cst_11 = arith.constant dense<0.000000e+00> : vector<2x8x8xf32>
    %23 = tpu.matmul %21, %22, %cst_11 {dimension_numbers = #tpu.dot_dimension_numbers<[2], [2], [1], [1], [0, 0, 0, 1, 1, 1], [0], [0]>} : vector<2x8x8xf32>, vector<2x8x8xf32>, vector<2x8x8xf32> -> vector<2x8x8xf32>
    "tpu.trace_stop"() : () -> ()
    %24 = arith.addf %23, %20 : vector<2x8x8xf32>
    %cst_12 = arith.constant dense<0xFF800000> : vector<2x8xf32>
    %25 = vector.multi_reduction <maximumf>, %24, %cst_12 [2] : vector<2x8x8xf32> to vector<2x8xf32>
    %26 = vector.shape_cast %25 : vector<2x8xf32> to vector<2x8x1xf32>
    %27 = vector.broadcast %26 : vector<2x8x1xf32> to vector<2x8x8xf32>
    %28 = arith.subf %24, %27 : vector<2x8x8xf32>
    %29 = math.exp %28 : vector<2x8x8xf32>
    %cst_13 = arith.constant dense<0.000000e+00> : vector<2x8xf32>
    %30 = vector.multi_reduction <add>, %29, %cst_13 [2] : vector<2x8x8xf32> to vector<2x8xf32>
    %31 = vector.shape_cast %30 : vector<2x8xf32> to vector<2x8x1xf32>
    %32 = tpu.reciprocal %31 {approx = true} : vector<2x8x1xf32> -> vector<2x8x1xf32>
    %33 = vector.broadcast %32 : vector<2x8x1xf32> to vector<2x8x8xf32>
    %34 = arith.mulf %29, %33 : vector<2x8x8xf32>
    %35 = vector.extract_strided_slice %17 {offsets = [0, 0, 0], sizes = [2, 8, 8], strides = [1, 1, 1]} : vector<2x8x32xf32> to vector<2x8x8xf32>
    "tpu.trace_start"() <{level = 10 : i32, message = "bqk,bkd->bqd"}> : () -> ()
    %cst_14 = arith.constant dense<0.000000e+00> : vector<2x8x8xf32>
    %36 = tpu.matmul %34, %35, %cst_14 {dimension_numbers = #tpu.dot_dimension_numbers<[2], [1], [1], [2], [0, 0, 0, 1, 1, 2], [0], [0]>} : vector<2x8x8xf32>, vector<2x8x8xf32>, vector<2x8x8xf32> -> vector<2x8x8xf32>
    "tpu.trace_stop"() : () -> ()
    %37 = vector.extract_strided_slice %13 {offsets = [0, 0, 8], sizes = [2, 8, 8], strides = [1, 1, 1]} : vector<2x8x32xf32> to vector<2x8x8xf32>
    %38 = vector.extract_strided_slice %15 {offsets = [0, 0, 8], sizes = [2, 8, 8], strides = [1, 1, 1]} : vector<2x8x32xf32> to vector<2x8x8xf32>
    "tpu.trace_start"() <{level = 10 : i32, message = "bqd,bkd->bqk"}> : () -> ()
    %cst_15 = arith.constant dense<0.000000e+00> : vector<2x8x8xf32>
    %39 = tpu.matmul %37, %38, %cst_15 {dimension_numbers = #tpu.dot_dimension_numbers<[2], [2], [1], [1], [0, 0, 0, 1, 1, 1], [0], [0]>} : vector<2x8x8xf32>, vector<2x8x8xf32>, vector<2x8x8xf32> -> vector<2x8x8xf32>
    "tpu.trace_stop"() : () -> ()
    %40 = arith.addf %39, %20 : vector<2x8x8xf32>
    %cst_16 = arith.constant dense<0xFF800000> : vector<2x8xf32>
    %41 = vector.multi_reduction <maximumf>, %40, %cst_16 [2] : vector<2x8x8xf32> to vector<2x8xf32>
    %42 = vector.shape_cast %41 : vector<2x8xf32> to vector<2x8x1xf32>
    %43 = vector.broadcast %42 : vector<2x8x1xf32> to vector<2x8x8xf32>
    %44 = arith.subf %40, %43 : vector<2x8x8xf32>
    %45 = math.exp %44 : vector<2x8x8xf32>
    %cst_17 = arith.constant dense<0.000000e+00> : vector<2x8xf32>
    %46 = vector.multi_reduction <add>, %45, %cst_17 [2] : vector<2x8x8xf32> to vector<2x8xf32>
    %47 = vector.shape_cast %46 : vector<2x8xf32> to vector<2x8x1xf32>
    %48 = tpu.reciprocal %47 {approx = true} : vector<2x8x1xf32> -> vector<2x8x1xf32>
    %49 = vector.broadcast %48 : vector<2x8x1xf32> to vector<2x8x8xf32>
    %50 = arith.mulf %45, %49 : vector<2x8x8xf32>
    %51 = vector.extract_strided_slice %17 {offsets = [0, 0, 8], sizes = [2, 8, 8], strides = [1, 1, 1]} : vector<2x8x32xf32> to vector<2x8x8xf32>
    "tpu.trace_start"() <{level = 10 : i32, message = "bqk,bkd->bqd"}> : () -> ()
    %cst_18 = arith.constant dense<0.000000e+00> : vector<2x8x8xf32>
    %52 = tpu.matmul %50, %51, %cst_18 {dimension_numbers = #tpu.dot_dimension_numbers<[2], [1], [1], [2], [0, 0, 0, 1, 1, 2], [0], [0]>} : vector<2x8x8xf32>, vector<2x8x8xf32>, vector<2x8x8xf32> -> vector<2x8x8xf32>
    "tpu.trace_stop"() : () -> ()
    %53 = vector.extract_strided_slice %13 {offsets = [0, 0, 16], sizes = [2, 8, 8], strides = [1, 1, 1]} : vector<2x8x32xf32> to vector<2x8x8xf32>
    %54 = vector.extract_strided_slice %15 {offsets = [0, 0, 16], sizes = [2, 8, 8], strides = [1, 1, 1]} : vector<2x8x32xf32> to vector<2x8x8xf32>
    "tpu.trace_start"() <{level = 10 : i32, message = "bqd,bkd->bqk"}> : () -> ()
    %cst_19 = arith.constant dense<0.000000e+00> : vector<2x8x8xf32>
    %55 = tpu.matmul %53, %54, %cst_19 {dimension_numbers = #tpu.dot_dimension_numbers<[2], [2], [1], [1], [0, 0, 0, 1, 1, 1], [0], [0]>} : vector<2x8x8xf32>, vector<2x8x8xf32>, vector<2x8x8xf32> -> vector<2x8x8xf32>
    "tpu.trace_stop"() : () -> ()
    %56 = arith.addf %55, %20 : vector<2x8x8xf32>
    %cst_20 = arith.constant dense<0xFF800000> : vector<2x8xf32>
    %57 = vector.multi_reduction <maximumf>, %56, %cst_20 [2] : vector<2x8x8xf32> to vector<2x8xf32>
    %58 = vector.shape_cast %57 : vector<2x8xf32> to vector<2x8x1xf32>
    %59 = vector.broadcast %58 : vector<2x8x1xf32> to vector<2x8x8xf32>
    %60 = arith.subf %56, %59 : vector<2x8x8xf32>
    %61 = math.exp %60 : vector<2x8x8xf32>
    %cst_21 = arith.constant dense<0.000000e+00> : vector<2x8xf32>
    %62 = vector.multi_reduction <add>, %61, %cst_21 [2] : vector<2x8x8xf32> to vector<2x8xf32>
    %63 = vector.shape_cast %62 : vector<2x8xf32> to vector<2x8x1xf32>
    %64 = tpu.reciprocal %63 {approx = true} : vector<2x8x1xf32> -> vector<2x8x1xf32>
    %65 = vector.broadcast %64 : vector<2x8x1xf32> to vector<2x8x8xf32>
    %66 = arith.mulf %61, %65 : vector<2x8x8xf32>
    %67 = vector.extract_strided_slice %17 {offsets = [0, 0, 16], sizes = [2, 8, 8], strides = [1, 1, 1]} : vector<2x8x32xf32> to vector<2x8x8xf32>
    "tpu.trace_start"() <{level = 10 : i32, message = "bqk,bkd->bqd"}> : () -> ()
    %cst_22 = arith.constant dense<0.000000e+00> : vector<2x8x8xf32>
    %68 = tpu.matmul %66, %67, %cst_22 {dimension_numbers = #tpu.dot_dimension_numbers<[2], [1], [1], [2], [0, 0, 0, 1, 1, 2], [0], [0]>} : vector<2x8x8xf32>, vector<2x8x8xf32>, vector<2x8x8xf32> -> vector<2x8x8xf32>
    "tpu.trace_stop"() : () -> ()
    %69 = vector.extract_strided_slice %13 {offsets = [0, 0, 24], sizes = [2, 8, 8], strides = [1, 1, 1]} : vector<2x8x32xf32> to vector<2x8x8xf32>
    %70 = vector.extract_strided_slice %15 {offsets = [0, 0, 24], sizes = [2, 8, 8], strides = [1, 1, 1]} : vector<2x8x32xf32> to vector<2x8x8xf32>
    "tpu.trace_start"() <{level = 10 : i32, message = "bqd,bkd->bqk"}> : () -> ()
    %cst_23 = arith.constant dense<0.000000e+00> : vector<2x8x8xf32>
    %71 = tpu.matmul %69, %70, %cst_23 {dimension_numbers = #tpu.dot_dimension_numbers<[2], [2], [1], [1], [0, 0, 0, 1, 1, 1], [0], [0]>} : vector<2x8x8xf32>, vector<2x8x8xf32>, vector<2x8x8xf32> -> vector<2x8x8xf32>
    "tpu.trace_stop"() : () -> ()
    %72 = arith.addf %71, %20 : vector<2x8x8xf32>
    %cst_24 = arith.constant dense<0xFF800000> : vector<2x8xf32>
    %73 = vector.multi_reduction <maximumf>, %72, %cst_24 [2] : vector<2x8x8xf32> to vector<2x8xf32>
    %74 = vector.shape_cast %73 : vector<2x8xf32> to vector<2x8x1xf32>
    %75 = vector.broadcast %74 : vector<2x8x1xf32> to vector<2x8x8xf32>
    %76 = arith.subf %72, %75 : vector<2x8x8xf32>
    %77 = math.exp %76 : vector<2x8x8xf32>
    %cst_25 = arith.constant dense<0.000000e+00> : vector<2x8xf32>
    %78 = vector.multi_reduction <add>, %77, %cst_25 [2] : vector<2x8x8xf32> to vector<2x8xf32>
    %79 = vector.shape_cast %78 : vector<2x8xf32> to vector<2x8x1xf32>
    %80 = tpu.reciprocal %79 {approx = true} : vector<2x8x1xf32> -> vector<2x8x1xf32>
    %81 = vector.broadcast %80 : vector<2x8x1xf32> to vector<2x8x8xf32>
    %82 = arith.mulf %77, %81 : vector<2x8x8xf32>
    %83 = vector.extract_strided_slice %17 {offsets = [0, 0, 24], sizes = [2, 8, 8], strides = [1, 1, 1]} : vector<2x8x32xf32> to vector<2x8x8xf32>
    "tpu.trace_start"() <{level = 10 : i32, message = "bqk,bkd->bqd"}> : () -> ()
    %cst_26 = arith.constant dense<0.000000e+00> : vector<2x8x8xf32>
    %84 = tpu.matmul %82, %83, %cst_26 {dimension_numbers = #tpu.dot_dimension_numbers<[2], [1], [1], [2], [0, 0, 0, 1, 1, 2], [0], [0]>} : vector<2x8x8xf32>, vector<2x8x8xf32>, vector<2x8x8xf32> -> vector<2x8x8xf32>
    "tpu.trace_stop"() : () -> ()
    %85 = tpu.concatenate %36, %52, %68, %84 in 2 : vector<2x8x8xf32>, vector<2x8x8xf32>, vector<2x8x8xf32>, vector<2x8x8xf32> -> vector<2x8x32xf32>
    %86 = vector.shape_cast %85 : vector<2x8x32xf32> to vector<16x32xf32>
    %c0_27 = arith.constant 0 : index
    %c0_28 = arith.constant 0 : index
    %c0_29 = arith.constant 0 : index
    %87 = vector.load %arg8[%c0_27, %c0_28, %c0_29] : memref<1x32x32xbf16, #tpu.memory_space<vmem>>, vector<1x32x32xbf16>
    %88 = vector.shape_cast %87 : vector<1x32x32xbf16> to vector<32x32xbf16>
    %89 = arith.truncf %86 : vector<16x32xf32> to vector<16x32xbf16>
    %cst_30 = arith.constant dense<0.000000e+00> : vector<16x32xf32>
    %90 = tpu.matmul %89, %88, %cst_30 {dimension_numbers = #tpu.dot_dimension_numbers<[1], [0], [0], [1], [0, 0, 1, 1], [], []>} : vector<16x32xbf16>, vector<32x32xbf16>, vector<16x32xf32> -> vector<16x32xf32>
    %c0_31 = arith.constant 0 : index
    %c0_32 = arith.constant 0 : index
    %c0_33 = arith.constant 0 : index
    %91 = vector.load %arg9[%c0_31, %c0_32, %c0_33] : memref<1x1x32xf32, #tpu.memory_space<vmem>>, vector<1x1x32xf32>
    %92 = vector.shape_cast %91 : vector<1x1x32xf32> to vector<1x32xf32>
    %93 = vector.broadcast %92 : vector<1x32xf32> to vector<16x32xf32>
    %94 = arith.addf %90, %93 : vector<16x32xf32>
    %95 = arith.addf %94, %3 : vector<16x32xf32>
    %c0_34 = arith.constant 0 : index
    %c0_35 = arith.constant 0 : index
    %c0_36 = arith.constant 0 : index
    %96 = vector.load %arg10[%c0_34, %c0_35, %c0_36] : memref<1x1x32xf32, #tpu.memory_space<vmem>>, vector<1x1x32xf32>
    %97 = vector.shape_cast %96 : vector<1x1x32xf32> to vector<1x32xf32>
    %c0_37 = arith.constant 0 : index
    %c0_38 = arith.constant 0 : index
    %c0_39 = arith.constant 0 : index
    %98 = vector.load %arg11[%c0_37, %c0_38, %c0_39] : memref<1x1x32xf32, #tpu.memory_space<vmem>>, vector<1x1x32xf32>
    %99 = vector.shape_cast %98 : vector<1x1x32xf32> to vector<1x32xf32>
    %cst_40 = arith.constant dense<0.000000e+00> : vector<16xf32>
    %100 = vector.multi_reduction <add>, %95, %cst_40 [1] : vector<16x32xf32> to vector<16xf32>
    %101 = vector.shape_cast %100 : vector<16xf32> to vector<16x1xf32>
    %cst_41 = arith.constant 3.200000e+01 : f32
    %102 = vector.broadcast %cst_41 : f32 to vector<16x1xf32>
    %103 = arith.divf %101, %102 : vector<16x1xf32>
    %104 = vector.broadcast %103 : vector<16x1xf32> to vector<16x32xf32>
    %105 = arith.subf %95, %104 : vector<16x32xf32>
    %106 = arith.mulf %105, %105 : vector<16x32xf32>
    %cst_42 = arith.constant dense<0.000000e+00> : vector<16xf32>
    %107 = vector.multi_reduction <add>, %106, %cst_42 [1] : vector<16x32xf32> to vector<16xf32>
    %108 = vector.shape_cast %107 : vector<16xf32> to vector<16x1xf32>
    %cst_43 = arith.constant 3.200000e+01 : f32
    %109 = vector.broadcast %cst_43 : f32 to vector<16x1xf32>
    %110 = arith.divf %108, %109 : vector<16x1xf32>
    %111 = vector.broadcast %103 : vector<16x1xf32> to vector<16x32xf32>
    %112 = arith.subf %95, %111 : vector<16x32xf32>
    %cst_44 = arith.constant 9.99999996E-13 : f32
    %113 = vector.broadcast %cst_44 : f32 to vector<16x1xf32>
    %114 = arith.addf %110, %113 : vector<16x1xf32>
    %115 = math.rsqrt %114 : vector<16x1xf32>
    %116 = vector.broadcast %115 : vector<16x1xf32> to vector<16x32xf32>
    %117 = arith.mulf %112, %116 : vector<16x32xf32>
    %118 = vector.broadcast %97 : vector<1x32xf32> to vector<16x32xf32>
    %119 = arith.mulf %117, %118 : vector<16x32xf32>
    %120 = vector.broadcast %99 : vector<1x32xf32> to vector<16x32xf32>
    %121 = arith.addf %119, %120 : vector<16x32xf32>
    %c0_45 = arith.constant 0 : index
    %c0_46 = arith.constant 0 : index
    %c0_47 = arith.constant 0 : index
    %122 = vector.load %arg12[%c0_45, %c0_46, %c0_47] : memref<1x32x64xbf16, #tpu.memory_space<vmem>>, vector<1x32x64xbf16>
    %123 = vector.shape_cast %122 : vector<1x32x64xbf16> to vector<32x64xbf16>
    %124 = arith.truncf %121 : vector<16x32xf32> to vector<16x32xbf16>
    %cst_48 = arith.constant dense<0.000000e+00> : vector<16x64xf32>
    %125 = tpu.matmul %124, %123, %cst_48 {dimension_numbers = #tpu.dot_dimension_numbers<[1], [0], [0], [1], [0, 0, 1, 1], [], []>} : vector<16x32xbf16>, vector<32x64xbf16>, vector<16x64xf32> -> vector<16x64xf32>
    %c0_49 = arith.constant 0 : index
    %c0_50 = arith.constant 0 : index
    %c0_51 = arith.constant 0 : index
    %126 = vector.load %arg13[%c0_49, %c0_50, %c0_51] : memref<1x1x64xf32, #tpu.memory_space<vmem>>, vector<1x1x64xf32>
    %127 = vector.shape_cast %126 : vector<1x1x64xf32> to vector<1x64xf32>
    %128 = vector.broadcast %127 : vector<1x64xf32> to vector<16x64xf32>
    %129 = arith.addf %125, %128 : vector<16x64xf32>
    %cst_52 = arith.constant 5.000000e-01 : f32
    %130 = vector.broadcast %cst_52 : f32 to vector<16x64xf32>
    %131 = arith.mulf %130, %129 : vector<16x64xf32>
    %cst_53 = arith.constant 4.471500e-02 : f32
    %132 = vector.broadcast %cst_53 : f32 to vector<16x64xf32>
    %133 = arith.mulf %132, %129 : vector<16x64xf32>
    %134 = arith.mulf %133, %129 : vector<16x64xf32>
    %135 = arith.mulf %134, %129 : vector<16x64xf32>
    %136 = arith.addf %129, %135 : vector<16x64xf32>
    %cst_54 = arith.constant 0.797884583 : f32
    %137 = vector.broadcast %cst_54 : f32 to vector<16x64xf32>
    %138 = arith.mulf %137, %136 : vector<16x64xf32>
    %139 = math.tanh %138 : vector<16x64xf32>
    %cst_55 = arith.constant 1.000000e+00 : f32
    %140 = vector.broadcast %cst_55 : f32 to vector<16x64xf32>
    %141 = arith.addf %140, %139 : vector<16x64xf32>
    %142 = arith.mulf %131, %141 : vector<16x64xf32>
    %c0_56 = arith.constant 0 : index
    %c0_57 = arith.constant 0 : index
    %c0_58 = arith.constant 0 : index
    %143 = vector.load %arg14[%c0_56, %c0_57, %c0_58] : memref<1x64x32xbf16, #tpu.memory_space<vmem>>, vector<1x64x32xbf16>
    %144 = vector.shape_cast %143 : vector<1x64x32xbf16> to vector<64x32xbf16>
    %145 = arith.truncf %142 : vector<16x64xf32> to vector<16x64xbf16>
    %cst_59 = arith.constant dense<0.000000e+00> : vector<16x32xf32>
    %146 = tpu.matmul %145, %144, %cst_59 {dimension_numbers = #tpu.dot_dimension_numbers<[1], [0], [0], [1], [0, 0, 1, 1], [], []>} : vector<16x64xbf16>, vector<64x32xbf16>, vector<16x32xf32> -> vector<16x32xf32>
    %c0_60 = arith.constant 0 : index
    %c0_61 = arith.constant 0 : index
    %c0_62 = arith.constant 0 : index
    %147 = vector.load %arg15[%c0_60, %c0_61, %c0_62] : memref<1x1x32xf32, #tpu.memory_space<vmem>>, vector<1x1x32xf32>
    %148 = vector.shape_cast %147 : vector<1x1x32xf32> to vector<1x32xf32>
    %149 = vector.broadcast %148 : vector<1x32xf32> to vector<16x32xf32>
    %150 = arith.addf %146, %149 : vector<16x32xf32>
    %151 = arith.addf %150, %121 : vector<16x32xf32>
    %c0_63 = arith.constant 0 : index
    %c0_64 = arith.constant 0 : index
    %c0_65 = arith.constant 0 : index
    %152 = vector.load %arg16[%c0_63, %c0_64, %c0_65] : memref<1x1x32xf32, #tpu.memory_space<vmem>>, vector<1x1x32xf32>
    %153 = vector.shape_cast %152 : vector<1x1x32xf32> to vector<1x32xf32>
    %c0_66 = arith.constant 0 : index
    %c0_67 = arith.constant 0 : index
    %c0_68 = arith.constant 0 : index
    %154 = vector.load %arg17[%c0_66, %c0_67, %c0_68] : memref<1x1x32xf32, #tpu.memory_space<vmem>>, vector<1x1x32xf32>
    %155 = vector.shape_cast %154 : vector<1x1x32xf32> to vector<1x32xf32>
    %cst_69 = arith.constant dense<0.000000e+00> : vector<16xf32>
    %156 = vector.multi_reduction <add>, %151, %cst_69 [1] : vector<16x32xf32> to vector<16xf32>
    %157 = vector.shape_cast %156 : vector<16xf32> to vector<16x1xf32>
    %cst_70 = arith.constant 3.200000e+01 : f32
    %158 = vector.broadcast %cst_70 : f32 to vector<16x1xf32>
    %159 = arith.divf %157, %158 : vector<16x1xf32>
    %160 = vector.broadcast %159 : vector<16x1xf32> to vector<16x32xf32>
    %161 = arith.subf %151, %160 : vector<16x32xf32>
    %162 = arith.mulf %161, %161 : vector<16x32xf32>
    %cst_71 = arith.constant dense<0.000000e+00> : vector<16xf32>
    %163 = vector.multi_reduction <add>, %162, %cst_71 [1] : vector<16x32xf32> to vector<16xf32>
    %164 = vector.shape_cast %163 : vector<16xf32> to vector<16x1xf32>
    %cst_72 = arith.constant 3.200000e+01 : f32
    %165 = vector.broadcast %cst_72 : f32 to vector<16x1xf32>
    %166 = arith.divf %164, %165 : vector<16x1xf32>
    %167 = vector.broadcast %159 : vector<16x1xf32> to vector<16x32xf32>
    %168 = arith.subf %151, %167 : vector<16x32xf32>
    %cst_73 = arith.constant 9.99999996E-13 : f32
    %169 = vector.broadcast %cst_73 : f32 to vector<16x1xf32>
    %170 = arith.addf %166, %169 : vector<16x1xf32>
    %171 = math.rsqrt %170 : vector<16x1xf32>
    %172 = vector.broadcast %171 : vector<16x1xf32> to vector<16x32xf32>
    %173 = arith.mulf %168, %172 : vector<16x32xf32>
    %174 = vector.broadcast %153 : vector<1x32xf32> to vector<16x32xf32>
    %175 = arith.mulf %173, %174 : vector<16x32xf32>
    %176 = vector.broadcast %155 : vector<1x32xf32> to vector<16x32xf32>
    %177 = arith.addf %175, %176 : vector<16x32xf32>
    %c0_74 = arith.constant 0 : index
    %c0_75 = arith.constant 0 : index
    %178 = vector.load %arg21[%c0_74, %c0_75] : memref<16x32xf32, #tpu.memory_space<vmem>>, vector<16x32xf32>
    tpu.vector_store %arg21[%c0_74, %c0_75], %177 {strides = array<i32>} : memref<16x32xf32, #tpu.memory_space<vmem>>, vector<16x32xf32>,
    %c1_i32 = arith.constant 1 : i32
    %179 = arith.cmpi sge, %arg0, %c1_i32 : i32
    %180 = arith.extui %179 : i1 to i32
    %181 = arith.sitofp %180 : i32 to f32
    %c0_76 = arith.constant 0 : index
    %c0_77 = arith.constant 0 : index
    %182 = vector.load %arg22[%c0_76, %c0_77] : memref<16x32xf32, #tpu.memory_space<vmem>>, vector<16x32xf32>
    %183 = vector.broadcast %181 : f32 to vector<16x32xf32>
    %184 = arith.mulf %183, %177 : vector<16x32xf32>
    %185 = arith.addf %182, %184 : vector<16x32xf32>
    %c0_78 = arith.constant 0 : index
    %c0_79 = arith.constant 0 : index
    %186 = vector.load %arg22[%c0_78, %c0_79] : memref<16x32xf32, #tpu.memory_space<vmem>>, vector<16x32xf32>
    tpu.vector_store %arg22[%c0_78, %c0_79], %185 {strides = array<i32>} : memref<16x32xf32, #tpu.memory_space<vmem>>, vector<16x32xf32>,
    %c2_i32 = arith.constant 2 : i32
    %187 = arith.cmpi eq, %arg0, %c2_i32 : i32
    %188 = arith.extui %187 : i1 to i32
    %c0_i32_80 = arith.constant 0 : i32
    %189 = arith.cmpi ne, %188, %c0_i32_80 : i32
    scf.if %189 {
      %c0_81 = arith.constant 0 : index
      %c0_82 = arith.constant 0 : index
      %190 = vector.load %arg18[%c0_81, %c0_82] : memref<16x32xf32, #tpu.memory_space<vmem>>, vector<16x32xf32>
      tpu.vector_store %arg18[%c0_81, %c0_82], %177 {strides = array<i32>} : memref<16x32xf32, #tpu.memory_space<vmem>>, vector<16x32xf32>,
      %cst_83 = arith.constant 2.500000e-01 : f32
      %191 = vector.broadcast %cst_83 : f32 to vector<16x32xf32>
      %192 = arith.mulf %185, %191 : vector<16x32xf32>
      %c0_84 = arith.constant 0 : index
      %c0_85 = arith.constant 0 : index
      %193 = vector.load %arg3[%c0_84, %c0_85] : memref<16x1xf32, #tpu.memory_space<vmem>>, vector<16x1xf32>
      %194 = vector.broadcast %193 : vector<16x1xf32> to vector<16x32xf32>
      %195 = arith.mulf %192, %194 : vector<16x32xf32>
      %c0_86 = arith.constant 0 : index
      %c0_87 = arith.constant 0 : index
      %196 = vector.load %arg19[%c0_86, %c0_87] : memref<16x32xf32, #tpu.memory_space<vmem>>, vector<16x32xf32>
      tpu.vector_store %arg19[%c0_86, %c0_87], %195 {strides = array<i32>} : memref<16x32xf32, #tpu.memory_space<vmem>>, vector<16x32xf32>,
      %197 = vector.shape_cast %195 : vector<16x32xf32> to vector<2x8x32xf32>
      %c0_88 = arith.constant 0 : index
      %c0_89 = arith.constant 0 : index
      %198 = vector.load %arg3[%c0_88, %c0_89] : memref<16x1xf32, #tpu.memory_space<vmem>>, vector<16x1xf32>
      %199 = vector.shape_cast %198 : vector<16x1xf32> to vector<2x8x1xf32>
      %cst_90 = arith.constant dense<0.000000e+00> : vector<2x1xf32>
      %200 = vector.multi_reduction <add>, %199, %cst_90 [1] : vector<2x8x1xf32> to vector<2x1xf32>
      %cst_91 = arith.constant dense<0.000000e+00> : vector<2x32xf32>
      %201 = vector.multi_reduction <add>, %197, %cst_91 [1] : vector<2x8x32xf32> to vector<2x32xf32>
      %202 = vector.broadcast %200 : vector<2x1xf32> to vector<2x32xf32>
      %203 = arith.divf %201, %202 : vector<2x32xf32>
      %c0_92 = arith.constant 0 : index
      %c0_93 = arith.constant 0 : index
      %204 = vector.load %arg20[%c0_92, %c0_93] : memref<2x32xf32, #tpu.memory_space<vmem>>, vector<2x32xf32>
      tpu.vector_store %arg20[%c0_92, %c0_93], %203 {strides = array<i32>} : memref<2x32xf32, #tpu.memory_space<vmem>>, vector<2x32xf32>,
    } else {
    }
    return
  }
  func.func @transform_0(%arg0: i32) -> (i32, i32) {
    %c0_i32 = arith.constant 0 : i32
    %c0_i32_0 = arith.constant 0 : i32
    %c0_i32_1 = arith.constant 0 : i32
    return %c0_i32, %c0_i32_0 : i32, i32
  }
  func.func @transform_1(%arg0: i32) -> (i32, i32, i32) {
    %c0_i32 = arith.constant 0 : i32
    %c0_i32_0 = arith.constant 0 : i32
    %c0_i32_1 = arith.constant 0 : i32
    %c0_i32_2 = arith.constant 0 : i32
    return %c0_i32, %c0_i32_0, %c0_i32_1 : i32, i32, i32
  }
  func.func @transform_2(%arg0: i32) -> (i32, i32) {
    %c0_i32 = arith.constant 0 : i32
    %c0_i32_0 = arith.constant 0 : i32
    %c0_i32_1 = arith.constant 0 : i32
    return %c0_i32, %c0_i32_0 : i32, i32
  }
  func.func @transform_3(%arg0: i32) -> (i32, i32) {
    %c0_i32 = arith.constant 0 : i32
    %c0_i32_0 = arith.constant 0 : i32
    %c0_i32_1 = arith.constant 0 : i32
    return %c0_i32, %c0_i32_0 : i32, i32
  }
  func.func @transform_4(%arg0: i32) -> (i32, i32) {
    %c0_i32 = arith.constant 0 : i32
    %c0_i32_0 = arith.constant 0 : i32
    %c0_i32_1 = arith.constant 0 : i32
    return %c0_i32, %c0_i32_0 : i32, i32
  }
  func.func @transform_5(%arg0: i32) -> (i32, i32, i32) {
    %c0_i32 = arith.constant 0 : i32
    %c0_i32_0 = arith.constant 0 : i32
    %c0_i32_1 = arith.constant 0 : i32
    return %arg0, %c0_i32, %c0_i32_0 : i32, i32, i32
  }
  func.func @transform_6(%arg0: i32) -> (i32, i32, i32) {
    %c0_i32 = arith.constant 0 : i32
    %c0_i32_0 = arith.constant 0 : i32
    %c0_i32_1 = arith.constant 0 : i32
    return %arg0, %c0_i32, %c0_i32_0 : i32, i32, i32
  }
  func.func @transform_7(%arg0: i32) -> (i32, i32, i32) {
    %c0_i32 = arith.constant 0 : i32
    %c0_i32_0 = arith.constant 0 : i32
    %c0_i32_1 = arith.constant 0 : i32
    return %arg0, %c0_i32, %c0_i32_0 : i32, i32, i32
  }
  func.func @transform_8(%arg0: i32) -> (i32, i32, i32) {
    %c0_i32 = arith.constant 0 : i32
    %c0_i32_0 = arith.constant 0 : i32
    %c0_i32_1 = arith.constant 0 : i32
    return %arg0, %c0_i32, %c0_i32_0 : i32, i32, i32
  }
  func.func @transform_9(%arg0: i32) -> (i32, i32, i32) {
    %c0_i32 = arith.constant 0 : i32
    %c0_i32_0 = arith.constant 0 : i32
    %c0_i32_1 = arith.constant 0 : i32
    return %arg0, %c0_i32, %c0_i32_0 : i32, i32, i32
  }
  func.func @transform_10(%arg0: i32) -> (i32, i32, i32) {
    %c0_i32 = arith.constant 0 : i32
    %c0_i32_0 = arith.constant 0 : i32
    %c0_i32_1 = arith.constant 0 : i32
    return %arg0, %c0_i32, %c0_i32_0 : i32, i32, i32
  }
  func.func @transform_11(%arg0: i32) -> (i32, i32, i32) {
    %c0_i32 = arith.constant 0 : i32
    %c0_i32_0 = arith.constant 0 : i32
    %c0_i32_1 = arith.constant 0 : i32
    return %arg0, %c0_i32, %c0_i32_0 : i32, i32, i32
  }
  func.func @transform_12(%arg0: i32) -> (i32, i32, i32) {
    %c0_i32 = arith.constant 0 : i32
    %c0_i32_0 = arith.constant 0 : i32
    %c0_i32_1 = arith.constant 0 : i32
    return %arg0, %c0_i32, %c0_i32_0 : i32, i32, i32
  }
  func.func @transform_13(%arg0: i32) -> (i32, i32, i32) {
    %c0_i32 = arith.constant 0 : i32
    %c0_i32_0 = arith.constant 0 : i32
    %c0_i32_1 = arith.constant 0 : i32
    return %arg0, %c0_i32, %c0_i32_0 : i32, i32, i32
  }
  func.func @transform_14(%arg0: i32) -> (i32, i32, i32) {
    %c0_i32 = arith.constant 0 : i32
    %c0_i32_0 = arith.constant 0 : i32
    %c0_i32_1 = arith.constant 0 : i32
    return %arg0, %c0_i32, %c0_i32_0 : i32, i32, i32
  }
  func.func @transform_15(%arg0: i32) -> (i32, i32, i32) {
    %c0_i32 = arith.constant 0 : i32
    %c0_i32_0 = arith.constant 0 : i32
    %c0_i32_1 = arith.constant 0 : i32
    return %arg0, %c0_i32, %c0_i32_0 : i32, i32, i32
  }
  func.func @transform_16(%arg0: i32) -> (i32, i32, i32) {
    %c0_i32 = arith.constant 0 : i32
    %c0_i32_0 = arith.constant 0 : i32
    %c0_i32_1 = arith.constant 0 : i32
    return %arg0, %c0_i32, %c0_i32_0 : i32, i32, i32
  }
  func.func @transform_17(%arg0: i32) -> (i32, i32) {
    %c0_i32 = arith.constant 0 : i32
    %c0_i32_0 = arith.constant 0 : i32
    %c0_i32_1 = arith.constant 0 : i32
    return %c0_i32, %c0_i32_0 : i32, i32
  }
  func.func @transform_18(%arg0: i32) -> (i32, i32) {
    %c0_i32 = arith.constant 0 : i32
    %c0_i32_0 = arith.constant 0 : i32
    %c0_i32_1 = arith.constant 0 : i32
    return %c0_i32, %c0_i32_0 : i32, i32
  }
  func.func @transform_19(%arg0: i32) -> (i32, i32) {
    %c0_i32 = arith.constant 0 : i32
    %c0_i32_0 = arith.constant 0 : i32
    %c0_i32_1 = arith.constant 0 : i32
    return %c0_i32, %c0_i32_0 : i32, i32
  }
}

</mosaic_0001>

<llo_original>
// kernel: tpu_custom_call.1
$region0: #{tpu_custom_call.1}
  #allocation0 [shape = 'u32[]', space=smem, size = 0x4, offset = 0x4, fixed_abs, tag = 'smem constant byte address 0x4 - core index']
  #allocation1 [shape = 'u32[144,128]{1,0:T(1,128)}', space=vmem, size = 0x12000, scoped, tag = 'internal scratch']
  #allocation2 [shape = 'f32[16,32]{1,0:T(8,128)}', space=vmem, size = 0x2000, scoped, tag = 'scratch operand']
  #allocation3 [shape = 'f32[16,32]{1,0:T(8,128)}', space=vmem, size = 0x2000, scoped, tag = 'scratch operand']
  %s0 = inlined_call_operand.vmem [shape: f32[16,32], index: 0, kind: input, shape index: {}]
  %s1 = inlined_call_operand.hbm [shape: f32[2,1,8], index: 1, kind: input, shape index: {}]
  %s2 = inlined_call_operand.vmem [shape: f32[16,1], index: 2, kind: input, shape index: {}]
  %s3 = inlined_call_operand.hbm [shape: f32[1,32], index: 3, kind: input, shape index: {}]
  %s4 = inlined_call_operand.hbm [shape: f32[1,32], index: 4, kind: input, shape index: {}]
  %s5 = inlined_call_operand.vmem [shape: bf16[3,32,96], index: 5, kind: input, shape index: {}]
  %s6 = inlined_call_operand.vmem [shape: f32[3,1,96], index: 6, kind: input, shape index: {}]
  %s7 = inlined_call_operand.vmem [shape: bf16[3,32,32], index: 7, kind: input, shape index: {}]
  %s8 = inlined_call_operand.vmem [shape: f32[3,1,32], index: 8, kind: input, shape index: {}]
  %s9 = inlined_call_operand.vmem [shape: f32[3,1,32], index: 9, kind: input, shape index: {}]
  %s10 = inlined_call_operand.vmem [shape: f32[3,1,32], index: 10, kind: input, shape index: {}]
  %s11 = inlined_call_operand.vmem [shape: bf16[3,32,64], index: 11, kind: input, shape index: {}]
  %s12 = inlined_call_operand.vmem [shape: f32[3,1,64], index: 12, kind: input, shape index: {}]
  %s13 = inlined_call_operand.vmem [shape: bf16[3,64,32], index: 13, kind: input, shape index: {}]
  %s14 = inlined_call_operand.vmem [shape: f32[3,1,32], index: 14, kind: input, shape index: {}]
  %s15 = inlined_call_operand.vmem [shape: f32[3,1,32], index: 15, kind: input, shape index: {}]
  %s16 = inlined_call_operand.vmem [shape: f32[3,1,32], index: 16, kind: input, shape index: {}]
  %s17 = inlined_call_operand.hbm [shape: f32[16,32], index: 17, kind: output, shape index: {0}]
  %s18 = inlined_call_operand.hbm [shape: f32[16,32], index: 18, kind: output, shape index: {1}]
  %s19 = inlined_call_operand.hbm [shape: f32[2,32], index: 19, kind: output, shape index: {2}]
  %20 = xla_tuple %s17, %s18, %s19
  %s21 = sld [smem:[#allocation0]]
  $region137: #{tpu_custom_call.1} parent=0
    _
  %s23 = ssub.s32 1, %s21
  %s24 = scalar_select 0, %s23, %s21
  $region1: #{tpu_custom_call.1} parent=0
    #allocation4 [shape = 'u8[1024]{0}', space=vmem, size = 0x400, scoped, tag = 'input window, operand 1, single buffered']
    #allocation5 [shape = 's32[2]{0}', space=sflag, size = 0x8, scoped, tag = 'scoped memory for tpu_custom_call.1']
    #allocation6 [shape = 's32[2]{0}', space=sflag, size = 0x8, scoped, tag = 'scoped memory for tpu_custom_call.1']
    #allocation7 [shape = 'u8[512]{0}', space=vmem, size = 0x400, scoped, tag = 'input window, operand 3, single buffered']
    #allocation8 [shape = 's32[1]{0}', space=sflag, size = 0x4, scoped, tag = 'scoped memory for tpu_custom_call.1']
    #allocation9 [shape = 'u8[512]{0}', space=vmem, size = 0x400, scoped, tag = 'input window, operand 4, single buffered']
    #allocation10 [shape = 'u8[8192]{0}', space=vmem, size = 0x2000, scoped, tag = 'output window, operand 0, single buffered']
    #allocation11 [shape = 'u8[8192]{0}', space=vmem, size = 0x2000, scoped, tag = 'output window, operand 1, single buffered']
    #allocation12 [shape = 's32[1]{0}', space=sflag, size = 0x4, scoped, tag = 'scoped memory for tpu_custom_call.1']
    #allocation13 [shape = 'u8[1024]{0}', space=vmem, size = 0x400, scoped, tag = 'output window, operand 2, single buffered']
    %25 = vsyncpa [#allocation5], 0
    %26 = vsyncpa [#allocation8], 0
    %27 = vsyncpa [#allocation6], 0
    %28 = vsyncpa [#allocation12], 0
    loop: start=0, step=1, limit=5
    $region2: #{tpu_custom_call.1} parent=1 // loop_pre_header
      _
    $region3: #{tpu_custom_call.1} parent=1 // loop_header
      %s30 = sphi 0, %s34
      %p31 = scmp.ge.s32.totalorder %s30, 5
      %s38 = sphi 0, %s38
      %s40 = sphi 0, %s38
      %s41 = sphi 0, %s40
      %s55 = sphi 0, %s41
      %s59 = sphi 0, %s59
      %s61 = sphi 0, %s59
      %s62 = sphi 0, %s61
      %s76 = sphi 0, %s62
      %s80 = sphi 0, %s80
      %s82 = sphi 0, %s80
      %s83 = sphi 0, %s82
      %s97 = sphi 0, %s83
      %s101 = sphi 0, %s101
      %s103 = sphi 0, %s101
      %s104 = sphi 0, %s103
      %s118 = sphi 0, %s104
      %s122 = sphi 0, %s122
      %s124 = sphi 0, %s122
      %s125 = sphi 0, %s124
      %s139 = sphi 0, %s125
      %s145 = sphi 0, %s147
      %s148 = sphi 0, %s145
      %s149 = sphi 0, %s148
      %s165 = sphi 0, %s149
      %s171 = sphi 0, %s173
      %s174 = sphi 0, %s171
      %s175 = sphi 0, %s174
      %s191 = sphi 0, %s175
      %s197 = sphi 0, %s199
      %s200 = sphi 0, %s197
      %s201 = sphi 0, %s200
      %s217 = sphi 0, %s201
      %s223 = sphi 0, %s225
      %s226 = sphi 0, %s223
      %s227 = sphi 0, %s226
      %s243 = sphi 0, %s227
      %s249 = sphi 0, %s251
      %s252 = sphi 0, %s249
      %s253 = sphi 0, %s252
      %s269 = sphi 0, %s253
      %s275 = sphi 0, %s277
      %s278 = sphi 0, %s275
      %s279 = sphi 0, %s278
      %s295 = sphi 0, %s279
      %s301 = sphi 0, %s303
      %s304 = sphi 0, %s301
      %s305 = sphi 0, %s304
      %s321 = sphi 0, %s305
      %s327 = sphi 0, %s329
      %s330 = sphi 0, %s327
      %s331 = sphi 0, %s330
      %s347 = sphi 0, %s331
      %s353 = sphi 0, %s355
      %s356 = sphi 0, %s353
      %s357 = sphi 0, %s356
      %s373 = sphi 0, %s357
      %s379 = sphi 0, %s381
      %s382 = sphi 0, %s379
      %s383 = sphi 0, %s382
      %s399 = sphi 0, %s383
      %s405 = sphi 0, %s407
      %s408 = sphi 0, %s405
      %s409 = sphi 0, %s408
      %s425 = sphi 0, %s409
      %s431 = sphi 0, %s433
      %s434 = sphi 0, %s431
      %s435 = sphi 0, %s434
      %s451 = sphi 0, %s435
      %s455 = sphi 0, %s455
      %s457 = sphi 0, %s455
      %s458 = sphi 0, %s457
      %s472 = sphi 0, %s458
      %s476 = sphi 0, %s476
      %s478 = sphi 0, %s476
      %s479 = sphi 0, %s478
      %s493 = sphi 0, %s479
      %s497 = sphi 0, %s497
      %s499 = sphi 0, %s497
      %s500 = sphi 0, %s499
      %s514 = sphi 0, %s500
    $region4: #{tpu_custom_call.1} parent=1 // loop_header_branch
      %33 = sbr.rel (%p31) target = $region8
    $region5: #{tpu_custom_call.1} parent=1 // loop_body
      %s35 = ssub.s32 %s30, 1
      %s36 = ssub.s32 %s30, 2
      %s37 = sadd.s32 %s30, 1
      %s39 = sadd.s32 %s38, 1
      %p42 = scmp.eq.s32.totalorder %s30, 2
      %p43 = scmp.ne.s32.totalorder %s38, %s40
      %p44 = scmp.eq.s32.totalorder %s30, 0
      %p45 = por %p43, %p44
      %p46 = scmp.ne.s32.totalorder %s38, %s40
      %p47 = scmp.eq.s32.totalorder %s35, 2
      %p48 = por %p46, %p47
      %p49 = scmp.ne.s32.totalorder %s40, %s41
      %p50 = scmp.eq.s32.totalorder %s35, 0
      %p51 = por %p49, %p50
      %p52 = scmp.ne.s32.totalorder %s40, %s41
      %p53 = scmp.eq.s32.totalorder %s36, 2
      %p54 = por %p52, %p53
      %p56 = scmp.ne.s32.totalorder %s41, %s55
      %p57 = scmp.eq.s32.totalorder %s36, 0
      %p58 = por %p56, %p57
      %s60 = sadd.s32 %s59, 1
      %p63 = scmp.eq.s32.totalorder %s30, 2
      %p64 = scmp.ne.s32.totalorder %s59, %s61
      %p65 = scmp.eq.s32.totalorder %s30, 0
      %p66 = por %p64, %p65
      %p67 = scmp.ne.s32.totalorder %s59, %s61
      %p68 = scmp.eq.s32.totalorder %s35, 2
      %p69 = por %p67, %p68
      %p70 = scmp.ne.s32.totalorder %s61, %s62
      %p71 = scmp.eq.s32.totalorder %s35, 0
      %p72 = por %p70, %p71
      %p73 = scmp.ne.s32.totalorder %s61, %s62
      %p74 = scmp.eq.s32.totalorder %s36, 2
      %p75 = por %p73, %p74
      %p77 = scmp.ne.s32.totalorder %s62, %s76
      %p78 = scmp.eq.s32.totalorder %s36, 0
      %p79 = por %p77, %p78
      %s81 = sadd.s32 %s80, 1
      %p84 = scmp.eq.s32.totalorder %s30, 2
      %p85 = scmp.ne.s32.totalorder %s80, %s82
      %p86 = scmp.eq.s32.totalorder %s30, 0
      %p87 = por %p85, %p86
      %p88 = scmp.ne.s32.totalorder %s80, %s82
      %p89 = scmp.eq.s32.totalorder %s35, 2
      %p90 = por %p88, %p89
      %p91 = scmp.ne.s32.totalorder %s82, %s83
      %p92 = scmp.eq.s32.totalorder %s35, 0
      %p93 = por %p91, %p92
      %p94 = scmp.ne.s32.totalorder %s82, %s83
      %p95 = scmp.eq.s32.totalorder %s36, 2
      %p96 = por %p94, %p95
      %p98 = scmp.ne.s32.totalorder %s83, %s97
      %p99 = scmp.eq.s32.totalorder %s36, 0
      %p100 = por %p98, %p99
      %s102 = sadd.s32 %s101, 1
      %p105 = scmp.eq.s32.totalorder %s30, 2
      %p106 = scmp.ne.s32.totalorder %s101, %s103
      %p107 = scmp.eq.s32.totalorder %s30, 0
      %p108 = por %p106, %p107
      %p109 = scmp.ne.s32.totalorder %s101, %s103
      %p110 = scmp.eq.s32.totalorder %s35, 2
      %p111 = por %p109, %p110
      %p112 = scmp.ne.s32.totalorder %s103, %s104
      %p113 = scmp.eq.s32.totalorder %s35, 0
      %p114 = por %p112, %p113
      %p115 = scmp.ne.s32.totalorder %s103, %s104
      %p116 = scmp.eq.s32.totalorder %s36, 2
      %p117 = por %p115, %p116
      %p119 = scmp.ne.s32.totalorder %s104, %s118
      %p120 = scmp.eq.s32.totalorder %s36, 0
      %p121 = por %p119, %p120
      %s123 = sadd.s32 %s122, 1
      %p126 = scmp.eq.s32.totalorder %s30, 2
      %p127 = scmp.ne.s32.totalorder %s122, %s124
      %p128 = scmp.eq.s32.totalorder %s30, 0
      %p129 = por %p127, %p128
      %p130 = scmp.ne.s32.totalorder %s122, %s124
      %p131 = scmp.eq.s32.totalorder %s35, 2
      %p132 = por %p130, %p131
      %p133 = scmp.ne.s32.totalorder %s124, %s125
      %p134 = scmp.eq.s32.totalorder %s35, 0
      %p135 = por %p133, %p134
      %p136 = scmp.ne.s32.totalorder %s124, %s125
      %p137 = scmp.eq.s32.totalorder %s36, 2
      %p138 = por %p136, %p137
      %p140 = scmp.ne.s32.totalorder %s125, %s139
      %p141 = scmp.eq.s32.totalorder %s36, 0
      %p142 = por %p140, %p141
      %s143 = ssub.s32 %s30, %s37
      %p144 = scmp.eq.s32.totalorder %s143, 0
      %s146 = sadd.s32 %s145, 1
      %s147 = scalar_select %p144, %s145, %s146
      %p150 = pneg %p144
      %p151 = scmp.eq.s32.totalorder %s30, 2
      %p152 = por %p150, %p151
      %p153 = scmp.ne.s32.totalorder %s145, %s148
      %p154 = scmp.eq.s32.totalorder %s30, 0
      %p155 = por %p153, %p154
      %p156 = scmp.ne.s32.totalorder %s145, %s148
      %p157 = scmp.eq.s32.totalorder %s35, 2
      %p158 = por %p156, %p157
      %p159 = scmp.ne.s32.totalorder %s148, %s149
      %p160 = scmp.eq.s32.totalorder %s35, 0
      %p161 = por %p159, %p160
      %p162 = scmp.ne.s32.totalorder %s148, %s149
      %p163 = scmp.eq.s32.totalorder %s36, 2
      %p164 = por %p162, %p163
      %p166 = scmp.ne.s32.totalorder %s149, %s165
      %p167 = scmp.eq.s32.totalorder %s36, 0
      %p168 = por %p166, %p167
      %s169 = ssub.s32 %s30, %s37
      %p170 = scmp.eq.s32.totalorder %s169, 0
      %s172 = sadd.s32 %s171, 1
      %s173 = scalar_select %p170, %s171, %s172
      %p176 = pneg %p170
      %p177 = scmp.eq.s32.totalorder %s30, 2
      %p178 = por %p176, %p177
      %p179 = scmp.ne.s32.totalorder %s171, %s174
      %p180 = scmp.eq.s32.totalorder %s30, 0
      %p181 = por %p179, %p180
      %p182 = scmp.ne.s32.totalorder %s171, %s174
      %p183 = scmp.eq.s32.totalorder %s35, 2
      %p184 = por %p182, %p183
      %p185 = scmp.ne.s32.totalorder %s174, %s175
      %p186 = scmp.eq.s32.totalorder %s35, 0
      %p187 = por %p185, %p186
      %p188 = scmp.ne.s32.totalorder %s174, %s175
      %p189 = scmp.eq.s32.totalorder %s36, 2
      %p190 = por %p188, %p189
      %p192 = scmp.ne.s32.totalorder %s175, %s191
      %p193 = scmp.eq.s32.totalorder %s36, 0
      %p194 = por %p192, %p193
      %s195 = ssub.s32 %s30, %s37
      %p196 = scmp.eq.s32.totalorder %s195, 0
      %s198 = sadd.s32 %s197, 1
      %s199 = scalar_select %p196, %s197, %s198
      %p202 = pneg %p196
      %p203 = scmp.eq.s32.totalorder %s30, 2
      %p204 = por %p202, %p203
      %p205 = scmp.ne.s32.totalorder %s197, %s200
      %p206 = scmp.eq.s32.totalorder %s30, 0
      %p207 = por %p205, %p206
      %p208 = scmp.ne.s32.totalorder %s197, %s200
      %p209 = scmp.eq.s32.totalorder %s35, 2
      %p210 = por %p208, %p209
      %p211 = scmp.ne.s32.totalorder %s200, %s201
      %p212 = scmp.eq.s32.totalorder %s35, 0
      %p213 = por %p211, %p212
      %p214 = scmp.ne.s32.totalorder %s200, %s201
      %p215 = scmp.eq.s32.totalorder %s36, 2
      %p216 = por %p214, %p215
      %p218 = scmp.ne.s32.totalorder %s201, %s217
      %p219 = scmp.eq.s32.totalorder %s36, 0
      %p220 = por %p218, %p219
      %s221 = ssub.s32 %s30, %s37
      %p222 = scmp.eq.s32.totalorder %s221, 0
      %s224 = sadd.s32 %s223, 1
      %s225 = scalar_select %p222, %s223, %s224
      %p228 = pneg %p222
      %p229 = scmp.eq.s32.totalorder %s30, 2
      %p230 = por %p228, %p229
      %p231 = scmp.ne.s32.totalorder %s223, %s226
      %p232 = scmp.eq.s32.totalorder %s30, 0
      %p233 = por %p231, %p232
      %p234 = scmp.ne.s32.totalorder %s223, %s226
      %p235 = scmp.eq.s32.totalorder %s35, 2
      %p236 = por %p234, %p235
      %p237 = scmp.ne.s32.totalorder %s226, %s227
      %p238 = scmp.eq.s32.totalorder %s35, 0
      %p239 = por %p237, %p238
      %p240 = scmp.ne.s32.totalorder %s226, %s227
      %p241 = scmp.eq.s32.totalorder %s36, 2
      %p242 = por %p240, %p241
      %p244 = scmp.ne.s32.totalorder %s227, %s243
      %p245 = scmp.eq.s32.totalorder %s36, 0
      %p246 = por %p244, %p245
      %s247 = ssub.s32 %s30, %s37
      %p248 = scmp.eq.s32.totalorder %s247, 0
      %s250 = sadd.s32 %s249, 1
      %s251 = scalar_select %p248, %s249, %s250
      %p254 = pneg %p248
      %p255 = scmp.eq.s32.totalorder %s30, 2
      %p256 = por %p254, %p255
      %p257 = scmp.ne.s32.totalorder %s249, %s252
      %p258 = scmp.eq.s32.totalorder %s30, 0
      %p259 = por %p257, %p258
      %p260 = scmp.ne.s32.totalorder %s249, %s252
      %p261 = scmp.eq.s32.totalorder %s35, 2
      %p262 = por %p260, %p261
      %p263 = scmp.ne.s32.totalorder %s252, %s253
      %p264 = scmp.eq.s32.totalorder %s35, 0
      %p265 = por %p263, %p264
      %p266 = scmp.ne.s32.totalorder %s252, %s253
      %p267 = scmp.eq.s32.totalorder %s36, 2
      %p268 = por %p266, %p267
      %p270 = scmp.ne.s32.totalorder %s253, %s269
      %p271 = scmp.eq.s32.totalorder %s36, 0
      %p272 = por %p270, %p271
      %s273 = ssub.s32 %s30, %s37
      %p274 = scmp.eq.s32.totalorder %s273, 0
      %s276 = sadd.s32 %s275, 1
      %s277 = scalar_select %p274, %s275, %s276
      %p280 = pneg %p274
      %p281 = scmp.eq.s32.totalorder %s30, 2
      %p282 = por %p280, %p281
      %p283 = scmp.ne.s32.totalorder %s275, %s278
      %p284 = scmp.eq.s32.totalorder %s30, 0
      %p285 = por %p283, %p284
      %p286 = scmp.ne.s32.totalorder %s275, %s278
      %p287 = scmp.eq.s32.totalorder %s35, 2
      %p288 = por %p286, %p287
      %p289 = scmp.ne.s32.totalorder %s278, %s279
      %p290 = scmp.eq.s32.totalorder %s35, 0
      %p291 = por %p289, %p290
      %p292 = scmp.ne.s32.totalorder %s278, %s279
      %p293 = scmp.eq.s32.totalorder %s36, 2
      %p294 = por %p292, %p293
      %p296 = scmp.ne.s32.totalorder %s279, %s295
      %p297 = scmp.eq.s32.totalorder %s36, 0
      %p298 = por %p296, %p297
      %s299 = ssub.s32 %s30, %s37
      %p300 = scmp.eq.s32.totalorder %s299, 0
      %s302 = sadd.s32 %s301, 1
      %s303 = scalar_select %p300, %s301, %s302
      %p306 = pneg %p300
      %p307 = scmp.eq.s32.totalorder %s30, 2
      %p308 = por %p306, %p307
      %p309 = scmp.ne.s32.totalorder %s301, %s304
      %p310 = scmp.eq.s32.totalorder %s30, 0
      %p311 = por %p309, %p310
      %p312 = scmp.ne.s32.totalorder %s301, %s304
      %p313 = scmp.eq.s32.totalorder %s35, 2
      %p314 = por %p312, %p313
      %p315 = scmp.ne.s32.totalorder %s304, %s305
      %p316 = scmp.eq.s32.totalorder %s35, 0
      %p317 = por %p315, %p316
      %p318 = scmp.ne.s32.totalorder %s304, %s305
      %p319 = scmp.eq.s32.totalorder %s36, 2
      %p320 = por %p318, %p319
      %p322 = scmp.ne.s32.totalorder %s305, %s321
      %p323 = scmp.eq.s32.totalorder %s36, 0
      %p324 = por %p322, %p323
      %s325 = ssub.s32 %s30, %s37
      %p326 = scmp.eq.s32.totalorder %s325, 0
      %s328 = sadd.s32 %s327, 1
      %s329 = scalar_select %p326, %s327, %s328
      %p332 = pneg %p326
      %p333 = scmp.eq.s32.totalorder %s30, 2
      %p334 = por %p332, %p333
      %p335 = scmp.ne.s32.totalorder %s327, %s330
      %p336 = scmp.eq.s32.totalorder %s30, 0
      %p337 = por %p335, %p336
      %p338 = scmp.ne.s32.totalorder %s327, %s330
      %p339 = scmp.eq.s32.totalorder %s35, 2
      %p340 = por %p338, %p339
      %p341 = scmp.ne.s32.totalorder %s330, %s331
      %p342 = scmp.eq.s32.totalorder %s35, 0
      %p343 = por %p341, %p342
      %p344 = scmp.ne.s32.totalorder %s330, %s331
      %p345 = scmp.eq.s32.totalorder %s36, 2
      %p346 = por %p344, %p345
      %p348 = scmp.ne.s32.totalorder %s331, %s347
      %p349 = scmp.eq.s32.totalorder %s36, 0
      %p350 = por %p348, %p349
      %s351 = ssub.s32 %s30, %s37
      %p352 = scmp.eq.s32.totalorder %s351, 0
      %s354 = sadd.s32 %s353, 1
      %s355 = scalar_select %p352, %s353, %s354
      %p358 = pneg %p352
      %p359 = scmp.eq.s32.totalorder %s30, 2
      %p360 = por %p358, %p359
      %p361 = scmp.ne.s32.totalorder %s353, %s356
      %p362 = scmp.eq.s32.totalorder %s30, 0
      %p363 = por %p361, %p362
      %p364 = scmp.ne.s32.totalorder %s353, %s356
      %p365 = scmp.eq.s32.totalorder %s35, 2
      %p366 = por %p364, %p365
      %p367 = scmp.ne.s32.totalorder %s356, %s357
      %p368 = scmp.eq.s32.totalorder %s35, 0
      %p369 = por %p367, %p368
      %p370 = scmp.ne.s32.totalorder %s356, %s357
      %p371 = scmp.eq.s32.totalorder %s36, 2
      %p372 = por %p370, %p371
      %p374 = scmp.ne.s32.totalorder %s357, %s373
      %p375 = scmp.eq.s32.totalorder %s36, 0
      %p376 = por %p374, %p375
      %s377 = ssub.s32 %s30, %s37
      %p378 = scmp.eq.s32.totalorder %s377, 0
      %s380 = sadd.s32 %s379, 1
      %s381 = scalar_select %p378, %s379, %s380
      %p384 = pneg %p378
      %p385 = scmp.eq.s32.totalorder %s30, 2
      %p386 = por %p384, %p385
      %p387 = scmp.ne.s32.totalorder %s379, %s382
      %p388 = scmp.eq.s32.totalorder %s30, 0
      %p389 = por %p387, %p388
      %p390 = scmp.ne.s32.totalorder %s379, %s382
      %p391 = scmp.eq.s32.totalorder %s35, 2
      %p392 = por %p390, %p391
      %p393 = scmp.ne.s32.totalorder %s382, %s383
      %p394 = scmp.eq.s32.totalorder %s35, 0
      %p395 = por %p393, %p394
      %p396 = scmp.ne.s32.totalorder %s382, %s383
      %p397 = scmp.eq.s32.totalorder %s36, 2
      %p398 = por %p396, %p397
      %p400 = scmp.ne.s32.totalorder %s383, %s399
      %p401 = scmp.eq.s32.totalorder %s36, 0
      %p402 = por %p400, %p401
      %s403 = ssub.s32 %s30, %s37
      %p404 = scmp.eq.s32.totalorder %s403, 0
      %s406 = sadd.s32 %s405, 1
      %s407 = scalar_select %p404, %s405, %s406
      %p410 = pneg %p404
      %p411 = scmp.eq.s32.totalorder %s30, 2
      %p412 = por %p410, %p411
      %p413 = scmp.ne.s32.totalorder %s405, %s408
      %p414 = scmp.eq.s32.totalorder %s30, 0
      %p415 = por %p413, %p414
      %p416 = scmp.ne.s32.totalorder %s405, %s408
      %p417 = scmp.eq.s32.totalorder %s35, 2
      %p418 = por %p416, %p417
      %p419 = scmp.ne.s32.totalorder %s408, %s409
      %p420 = scmp.eq.s32.totalorder %s35, 0
      %p421 = por %p419, %p420
      %p422 = scmp.ne.s32.totalorder %s408, %s409
      %p423 = scmp.eq.s32.totalorder %s36, 2
      %p424 = por %p422, %p423
      %p426 = scmp.ne.s32.totalorder %s409, %s425
      %p427 = scmp.eq.s32.totalorder %s36, 0
      %p428 = por %p426, %p427
      %s429 = ssub.s32 %s30, %s37
      %p430 = scmp.eq.s32.totalorder %s429, 0
      %s432 = sadd.s32 %s431, 1
      %s433 = scalar_select %p430, %s431, %s432
      %p436 = pneg %p430
      %p437 = scmp.eq.s32.totalorder %s30, 2
      %p438 = por %p436, %p437
      %p439 = scmp.ne.s32.totalorder %s431, %s434
      %p440 = scmp.eq.s32.totalorder %s30, 0
      %p441 = por %p439, %p440
      %p442 = scmp.ne.s32.totalorder %s431, %s434
      %p443 = scmp.eq.s32.totalorder %s35, 2
      %p444 = por %p442, %p443
      %p445 = scmp.ne.s32.totalorder %s434, %s435
      %p446 = scmp.eq.s32.totalorder %s35, 0
      %p447 = por %p445, %p446
      %p448 = scmp.ne.s32.totalorder %s434, %s435
      %p449 = scmp.eq.s32.totalorder %s36, 2
      %p450 = por %p448, %p449
      %p452 = scmp.ne.s32.totalorder %s435, %s451
      %p453 = scmp.eq.s32.totalorder %s36, 0
      %p454 = por %p452, %p453
      %s456 = sadd.s32 %s455, 1
      %p459 = scmp.eq.s32.totalorder %s30, 2
      %p460 = scmp.ne.s32.totalorder %s455, %s457
      %p461 = scmp.eq.s32.totalorder %s30, 0
      %p462 = por %p460, %p461
      %p463 = scmp.ne.s32.totalorder %s455, %s457
      %p464 = scmp.eq.s32.totalorder %s35, 2
      %p465 = por %p463, %p464
      %p466 = scmp.ne.s32.totalorder %s457, %s458
      %p467 = scmp.eq.s32.totalorder %s35, 0
      %p468 = por %p466, %p467
      %p469 = scmp.ne.s32.totalorder %s457, %s458
      %p470 = scmp.eq.s32.totalorder %s36, 2
      %p471 = por %p469, %p470
      %p473 = scmp.ne.s32.totalorder %s458, %s472
      %p474 = scmp.eq.s32.totalorder %s36, 0
      %p475 = por %p473, %p474
      %s477 = sadd.s32 %s476, 1
      %p480 = scmp.eq.s32.totalorder %s30, 2
      %p481 = scmp.ne.s32.totalorder %s476, %s478
      %p482 = scmp.eq.s32.totalorder %s30, 0
      %p483 = por %p481, %p482
      %p484 = scmp.ne.s32.totalorder %s476, %s478
      %p485 = scmp.eq.s32.totalorder %s35, 2
      %p486 = por %p484, %p485
      %p487 = scmp.ne.s32.totalorder %s478, %s479
      %p488 = scmp.eq.s32.totalorder %s35, 0
      %p489 = por %p487, %p488
      %p490 = scmp.ne.s32.totalorder %s478, %s479
      %p491 = scmp.eq.s32.totalorder %s36, 2
      %p492 = por %p490, %p491
      %p494 = scmp.ne.s32.totalorder %s479, %s493
      %p495 = scmp.eq.s32.totalorder %s36, 0
      %p496 = por %p494, %p495
      %s498 = sadd.s32 %s497, 1
      %p501 = scmp.eq.s32.totalorder %s30, 2
      %p502 = scmp.ne.s32.totalorder %s497, %s499
      %p503 = scmp.eq.s32.totalorder %s30, 0
      %p504 = por %p502, %p503
      %p505 = scmp.ne.s32.totalorder %s497, %s499
      %p506 = scmp.eq.s32.totalorder %s35, 2
      %p507 = por %p505, %p506
      %p508 = scmp.ne.s32.totalorder %s499, %s500
      %p509 = scmp.eq.s32.totalorder %s35, 0
      %p510 = por %p508, %p509
      %p511 = scmp.ne.s32.totalorder %s499, %s500
      %p512 = scmp.eq.s32.totalorder %s36, 2
      %p513 = por %p511, %p512
      %p515 = scmp.ne.s32.totalorder %s500, %s514
      %p516 = scmp.eq.s32.totalorder %s36, 0
      %p517 = por %p515, %p516
      %p518 = scmp.le.s32.totalorder 1, %s30
      %p519 = scmp.lt.s32.totalorder %s30, 4
      %p520 = pnand %p518, %p519
      %p521 = pneg %p520
      // Predicated region
      $region9: #{tpu_custom_call.1} parent=5 // pred_check
        _
      $region10: #{tpu_custom_call.1} parent=5 // pred_check_branch
        %523 = sbr.rel (%p520) target = $region12
      $region11: #{tpu_custom_call.1} parent=5 // pred_region
        %s524 = ssub.s32 %s30, 1
        // Predicated region
        $region13: #{tpu_custom_call.1} parent=11 // pred_check
          %p525 = pneg %p51
        $region14: #{tpu_custom_call.1} parent=11 // pred_check_branch
          %527 = sbr.rel (%p525) target = $region16
        $region15: #{tpu_custom_call.1} parent=11 // pred_region
          _
        $region16: #{tpu_custom_call.1} parent=11 // pred_fallthru
          _
        // Predicated region
        $region17: #{tpu_custom_call.1} parent=11 // pred_check
          %p528 = pneg %p72
        $region18: #{tpu_custom_call.1} parent=11 // pred_check_branch
          %530 = sbr.rel (%p528) target = $region20
        $region19: #{tpu_custom_call.1} parent=11 // pred_region
          %s532 = ssub.s32 32, 32
          %533 = vsyncadd [#allocation5], %s532
          %s534 = sshll.u32 [#allocation4], 4
          %s535 = int_to_ptr.vmem [resolvable:$true] %s534
          %540 = dma.hbm_to_vmem [thread:$0]  %s1, 32, %s535, [#allocation5], 16, 16, 1
        $region20: #{tpu_custom_call.1} parent=11 // pred_fallthru
          _
        // Predicated region
        $region21: #{tpu_custom_call.1} parent=11 // pred_check
          %p541 = pneg %p93
        $region22: #{tpu_custom_call.1} parent=11 // pred_check_branch
          %543 = sbr.rel (%p541) target = $region24
        $region23: #{tpu_custom_call.1} parent=11 // pred_region
          _
        $region24: #{tpu_custom_call.1} parent=11 // pred_fallthru
          _
        // Predicated region
        $region25: #{tpu_custom_call.1} parent=11 // pred_check
          %p544 = pneg %p114
        $region26: #{tpu_custom_call.1} parent=11 // pred_check_branch
          %546 = sbr.rel (%p544) target = $region28
        $region27: #{tpu_custom_call.1} parent=11 // pred_region
          %s548 = ssub.s32 16, 16
          %549 = vsyncadd [#allocation8], %s548
          %s551 = sshll.u32 [#allocation7], 4
          %s552 = int_to_ptr.vmem [resolvable:$true] %s551
          %554 = dma.hbm_to_vmem [thread:$0]  %s3, 16, %s552, [#allocation8]
        $region28: #{tpu_custom_call.1} parent=11 // pred_fallthru
          _
        // Predicated region
        $region29: #{tpu_custom_call.1} parent=11 // pred_check
          %p555 = pneg %p135
        $region30: #{tpu_custom_call.1} parent=11 // pred_check_branch
          %557 = sbr.rel (%p555) target = $region32
        $region31: #{tpu_custom_call.1} parent=11 // pred_region
          %s559 = ssub.s32 16, 16
          %560 = vsyncadd [#allocation8], %s559
          %s562 = sshll.u32 [#allocation9], 4
          %s563 = int_to_ptr.vmem [resolvable:$true] %s562
          %565 = dma.hbm_to_vmem [thread:$0]  %s4, 16, %s563, [#allocation8]
        $region32: #{tpu_custom_call.1} parent=11 // pred_fallthru
          _
      $region12: #{tpu_custom_call.1} parent=5 // pred_fallthru
        _
      %p566 = scmp.lt.s32.totalorder %s30, 3
      // Predicated region
      $region33: #{tpu_custom_call.1} parent=5 // pred_check
        %p567 = pneg %p566
      $region34: #{tpu_custom_call.1} parent=5 // pred_check_branch
        %569 = sbr.rel (%p567) target = $region36
      $region35: #{tpu_custom_call.1} parent=5 // pred_region
        // Predicated region
        $region37: #{tpu_custom_call.1} parent=35 // pred_check
          %p570 = pneg %p155
        $region38: #{tpu_custom_call.1} parent=35 // pred_check_branch
          %572 = sbr.rel (%p570) target = $region40
        $region39: #{tpu_custom_call.1} parent=35 // pred_region
          %p573 = scmp.lt.s32.totalorder %s30, 2
          %s574 = scalar_select %p573, %s30, 2
          %s575 = smul.addr %s574, 4
          %s576 = smul.addr %s575, 4
          %s577 = scalar_lea.vmem %s5, %s576
        $region40: #{tpu_custom_call.1} parent=35 // pred_fallthru
          _
        // Predicated region
        $region41: #{tpu_custom_call.1} parent=35 // pred_check
          %p578 = pneg %p181
        $region42: #{tpu_custom_call.1} parent=35 // pred_check_branch
          %580 = sbr.rel (%p578) target = $region44
        $region43: #{tpu_custom_call.1} parent=35 // pred_region
          %p581 = scmp.lt.s32.totalorder %s30, 2
          %s582 = scalar_select %p581, %s30, 2
          %s583 = scalar_lea.vmem %s6, %s582
        $region44: #{tpu_custom_call.1} parent=35 // pred_fallthru
          _
        // Predicated region
        $region45: #{tpu_custom_call.1} parent=35 // pred_check
          %p584 = pneg %p207
        $region46: #{tpu_custom_call.1} parent=35 // pred_check_branch
          %586 = sbr.rel (%p584) target = $region48
        $region47: #{tpu_custom_call.1} parent=35 // pred_region
          %p587 = scmp.lt.s32.totalorder %s30, 2
          %s588 = scalar_select %p587, %s30, 2
          %s589 = smul.addr %s588, 4
          %s590 = smul.addr %s589, 4
          %s591 = scalar_lea.vmem %s7, %s590
        $region48: #{tpu_custom_call.1} parent=35 // pred_fallthru
          _
        // Predicated region
        $region49: #{tpu_custom_call.1} parent=35 // pred_check
          %p592 = pneg %p233
        $region50: #{tpu_custom_call.1} parent=35 // pred_check_branch
          %594 = sbr.rel (%p592) target = $region52
        $region51: #{tpu_custom_call.1} parent=35 // pred_region
          %p595 = scmp.lt.s32.totalorder %s30, 2
          %s596 = scalar_select %p595, %s30, 2
          %s597 = scalar_lea.vmem %s8, %s596
        $region52: #{tpu_custom_call.1} parent=35 // pred_fallthru
          _
        // Predicated region
        $region53: #{tpu_custom_call.1} parent=35 // pred_check
          %p598 = pneg %p259
        $region54: #{tpu_custom_call.1} parent=35 // pred_check_branch
          %600 = sbr.rel (%p598) target = $region56
        $region55: #{tpu_custom_call.1} parent=35 // pred_region
          %p601 = scmp.lt.s32.totalorder %s30, 2
          %s602 = scalar_select %p601, %s30, 2
          %s603 = scalar_lea.vmem %s9, %s602
        $region56: #{tpu_custom_call.1} parent=35 // pred_fallthru
          _
        // Predicated region
        $region57: #{tpu_custom_call.1} parent=35 // pred_check
          %p604 = pneg %p285
        $region58: #{tpu_custom_call.1} parent=35 // pred_check_branch
          %606 = sbr.rel (%p604) target = $region60
        $region59: #{tpu_custom_call.1} parent=35 // pred_region
          %p607 = scmp.lt.s32.totalorder %s30, 2
          %s608 = scalar_select %p607, %s30, 2
          %s609 = scalar_lea.vmem %s10, %s608
        $region60: #{tpu_custom_call.1} parent=35 // pred_fallthru
          _
        // Predicated region
        $region61: #{tpu_custom_call.1} parent=35 // pred_check
          %p610 = pneg %p311
        $region62: #{tpu_custom_call.1} parent=35 // pred_check_branch
          %612 = sbr.rel (%p610) target = $region64
        $region63: #{tpu_custom_call.1} parent=35 // pred_region
          %p613 = scmp.lt.s32.totalorder %s30, 2
          %s614 = scalar_select %p613, %s30, 2
          %s615 = smul.addr %s614, 4
          %s616 = smul.addr %s615, 4
          %s617 = scalar_lea.vmem %s11, %s616
        $region64: #{tpu_custom_call.1} parent=35 // pred_fallthru
          _
        // Predicated region
        $region65: #{tpu_custom_call.1} parent=35 // pred_check
          %p618 = pneg %p337
        $region66: #{tpu_custom_call.1} parent=35 // pred_check_branch
          %620 = sbr.rel (%p618) target = $region68
        $region67: #{tpu_custom_call.1} parent=35 // pred_region
          %p621 = scmp.lt.s32.totalorder %s30, 2
          %s622 = scalar_select %p621, %s30, 2
          %s623 = scalar_lea.vmem %s12, %s622
        $region68: #{tpu_custom_call.1} parent=35 // pred_fallthru
          _
        // Predicated region
        $region69: #{tpu_custom_call.1} parent=35 // pred_check
          %p624 = pneg %p363
        $region70: #{tpu_custom_call.1} parent=35 // pred_check_branch
          %626 = sbr.rel (%p624) target = $region72
        $region71: #{tpu_custom_call.1} parent=35 // pred_region
          %p627 = scmp.lt.s32.totalorder %s30, 2
          %s628 = scalar_select %p627, %s30, 2
          %s629 = smul.addr %s628, 8
          %s630 = smul.addr %s629, 4
          %s631 = scalar_lea.vmem %s13, %s630
        $region72: #{tpu_custom_call.1} parent=35 // pred_fallthru
          _
        // Predicated region
        $region73: #{tpu_custom_call.1} parent=35 // pred_check
          %p632 = pneg %p389
        $region74: #{tpu_custom_call.1} parent=35 // pred_check_branch
          %634 = sbr.rel (%p632) target = $region76
        $region75: #{tpu_custom_call.1} parent=35 // pred_region
          %p635 = scmp.lt.s32.totalorder %s30, 2
          %s636 = scalar_select %p635, %s30, 2
          %s637 = scalar_lea.vmem %s14, %s636
        $region76: #{tpu_custom_call.1} parent=35 // pred_fallthru
          _
        // Predicated region
        $region77: #{tpu_custom_call.1} parent=35 // pred_check
          %p638 = pneg %p415
        $region78: #{tpu_custom_call.1} parent=35 // pred_check_branch
          %640 = sbr.rel (%p638) target = $region80
        $region79: #{tpu_custom_call.1} parent=35 // pred_region
          %p641 = scmp.lt.s32.totalorder %s30, 2
          %s642 = scalar_select %p641, %s30, 2
          %s643 = scalar_lea.vmem %s15, %s642
        $region80: #{tpu_custom_call.1} parent=35 // pred_fallthru
          _
        // Predicated region
        $region81: #{tpu_custom_call.1} parent=35 // pred_check
          %p644 = pneg %p441
        $region82: #{tpu_custom_call.1} parent=35 // pred_check_branch
          %646 = sbr.rel (%p644) target = $region84
        $region83: #{tpu_custom_call.1} parent=35 // pred_region
          %p647 = scmp.lt.s32.totalorder %s30, 2
          %s648 = scalar_select %p647, %s30, 2
          %s649 = scalar_lea.vmem %s16, %s648
        $region84: #{tpu_custom_call.1} parent=35 // pred_fallthru
          _
      $region36: #{tpu_custom_call.1} parent=5 // pred_fallthru
        _
      %p650 = scmp.le.s32.totalorder 1, %s30
      %p651 = scmp.lt.s32.totalorder %s30, 4
      %p652 = pnand %p650, %p651
      %p653 = pneg %p652
      // Predicated region
      $region85: #{tpu_custom_call.1} parent=5 // pred_check
        _
      $region86: #{tpu_custom_call.1} parent=5 // pred_check_branch
        %655 = sbr.rel (%p652) target = $region88
      $region87: #{tpu_custom_call.1} parent=5 // pred_region
        %s656 = ssub.s32 %s30, 1
        // Predicated region
        $region89: #{tpu_custom_call.1} parent=87 // pred_check
          %p657 = pneg %p72
        $region90: #{tpu_custom_call.1} parent=87 // pred_check_branch
          %659 = sbr.rel (%p657) target = $region92
        $region91: #{tpu_custom_call.1} parent=87 // pred_region
          %660 = dma.done [#allocation5], 32
        $region92: #{tpu_custom_call.1} parent=87 // pred_fallthru
          _
        // Predicated region
        $region93: #{tpu_custom_call.1} parent=87 // pred_check
          %p661 = pneg %p114
        $region94: #{tpu_custom_call.1} parent=87 // pred_check_branch
          %663 = sbr.rel (%p661) target = $region96
        $region95: #{tpu_custom_call.1} parent=87 // pred_region
          %664 = dma.done [#allocation8], 16
        $region96: #{tpu_custom_call.1} parent=87 // pred_fallthru
          _
        // Predicated region
        $region97: #{tpu_custom_call.1} parent=87 // pred_check
          %p665 = pneg %p135
        $region98: #{tpu_custom_call.1} parent=87 // pred_check_branch
          %667 = sbr.rel (%p665) target = $region100
        $region99: #{tpu_custom_call.1} parent=87 // pred_region
          %668 = dma.done [#allocation8], 16
        $region100: #{tpu_custom_call.1} parent=87 // pred_fallthru
          _
        %p669 = pneg %p51
        %p670 = pneg %p48
        %p671 = pneg %p72
        %p672 = pneg %p69
        %p673 = pneg %p93
        %p674 = pneg %p90
        %p675 = pneg %p114
        %p676 = pneg %p111
        %p677 = pneg %p135
        %p678 = pneg %p132
        %p679 = scmp.lt.s32.totalorder %s35, 2
        %s680 = scalar_select %p679, %s35, 2
        %s681 = smul.addr %s680, 4
        %s682 = smul.addr %s681, 4
        %s683 = scalar_lea.vmem %s5, %s682
        %p684 = pneg %p161
        %p685 = pneg %p158
        %p686 = scmp.lt.s32.totalorder %s35, 2
        %s687 = scalar_select %p686, %s35, 2
        %s688 = scalar_lea.vmem %s6, %s687
        %p689 = pneg %p187
        %p690 = pneg %p184
        %p691 = scmp.lt.s32.totalorder %s35, 2
        %s692 = scalar_select %p691, %s35, 2
        %s693 = smul.addr %s692, 4
        %s694 = smul.addr %s693, 4
        %s695 = scalar_lea.vmem %s7, %s694
        %p696 = pneg %p213
        %p697 = pneg %p210
        %p698 = scmp.lt.s32.totalorder %s35, 2
        %s699 = scalar_select %p698, %s35, 2
        %s700 = scalar_lea.vmem %s8, %s699
        %p701 = pneg %p239
        %p702 = pneg %p236
        %p703 = scmp.lt.s32.totalorder %s35, 2
        %s704 = scalar_select %p703, %s35, 2
        %s705 = scalar_lea.vmem %s9, %s704
        %p706 = pneg %p265
        %p707 = pneg %p262
        %p708 = scmp.lt.s32.totalorder %s35, 2
        %s709 = scalar_select %p708, %s35, 2
        %s710 = scalar_lea.vmem %s10, %s709
        %p711 = pneg %p291
        %p712 = pneg %p288
        %p713 = scmp.lt.s32.totalorder %s35, 2
        %s714 = scalar_select %p713, %s35, 2
        %s715 = smul.addr %s714, 4
        %s716 = smul.addr %s715, 4
        %s717 = scalar_lea.vmem %s11, %s716
        %p718 = pneg %p317
        %p719 = pneg %p314
        %p720 = scmp.lt.s32.totalorder %s35, 2
        %s721 = scalar_select %p720, %s35, 2
        %s722 = scalar_lea.vmem %s12, %s721
        %p723 = pneg %p343
        %p724 = pneg %p340
        %p725 = scmp.lt.s32.totalorder %s35, 2
        %s726 = scalar_select %p725, %s35, 2
        %s727 = smul.addr %s726, 8
        %s728 = smul.addr %s727, 4
        %s729 = scalar_lea.vmem %s13, %s728
        %p730 = pneg %p369
        %p731 = pneg %p366
        %p732 = scmp.lt.s32.totalorder %s35, 2
        %s733 = scalar_select %p732, %s35, 2
        %s734 = scalar_lea.vmem %s14, %s733
        %p735 = pneg %p395
        %p736 = pneg %p392
        %p737 = scmp.lt.s32.totalorder %s35, 2
        %s738 = scalar_select %p737, %s35, 2
        %s739 = scalar_lea.vmem %s15, %s738
        %p740 = pneg %p421
        %p741 = pneg %p418
        %p742 = scmp.lt.s32.totalorder %s35, 2
        %s743 = scalar_select %p742, %s35, 2
        %s744 = scalar_lea.vmem %s16, %s743
        %p745 = pneg %p447
        %p746 = pneg %p444
        %p747 = pneg %p468
        %p748 = pneg %p465
        %p749 = pneg %p489
        %p750 = pneg %p486
        %p751 = pneg %p510
        %p752 = pneg %p507
        %p753 = scmp.lt.s32.totalorder %s35, 2
        %s754 = scalar_select %p753, %s35, 2
        %s755 = smul.addr %s754, 4
        %s756 = smul.addr %s755, 4
        %s757 = scalar_lea.vmem %s5, %s756
        %p758 = scmp.lt.s32.totalorder %s35, 2
        %s759 = scalar_select %p758, %s35, 2
        %s760 = scalar_lea.vmem %s6, %s759
        %p761 = scmp.lt.s32.totalorder %s35, 2
        %s762 = scalar_select %p761, %s35, 2
        %s763 = smul.addr %s762, 4
        %s764 = smul.addr %s763, 4
        %s765 = scalar_lea.vmem %s7, %s764
        %p766 = scmp.lt.s32.totalorder %s35, 2
        %s767 = scalar_select %p766, %s35, 2
        %s768 = scalar_lea.vmem %s8, %s767
        %p769 = scmp.lt.s32.totalorder %s35, 2
        %s770 = scalar_select %p769, %s35, 2
        %s771 = scalar_lea.vmem %s9, %s770
        %p772 = scmp.lt.s32.totalorder %s35, 2
        %s773 = scalar_select %p772, %s35, 2
        %s774 = scalar_lea.vmem %s10, %s773
        %p775 = scmp.lt.s32.totalorder %s35, 2
        %s776 = scalar_select %p775, %s35, 2
        %s777 = smul.addr %s776, 4
        %s778 = smul.addr %s777, 4
        %s779 = scalar_lea.vmem %s11, %s778
        %p780 = scmp.lt.s32.totalorder %s35, 2
        %s781 = scalar_select %p780, %s35, 2
        %s782 = scalar_lea.vmem %s12, %s781
        %p783 = scmp.lt.s32.totalorder %s35, 2
        %s784 = scalar_select %p783, %s35, 2
        %s785 = smul.addr %s784, 8
        %s786 = smul.addr %s785, 4
        %s787 = scalar_lea.vmem %s13, %s786
        %p788 = scmp.lt.s32.totalorder %s35, 2
        %s789 = scalar_select %p788, %s35, 2
        %s790 = scalar_lea.vmem %s14, %s789
        %p791 = scmp.lt.s32.totalorder %s35, 2
        %s792 = scalar_select %p791, %s35, 2
        %s793 = scalar_lea.vmem %s15, %s792
        %p794 = scmp.lt.s32.totalorder %s35, 2
        %s795 = scalar_select %p794, %s35, 2
        %s796 = scalar_lea.vmem %s16, %s795
        %p798 = scmp.eq.s32.totalorder %s35, 0
        // Predicated region
        $region101: #{tpu_custom_call.1} parent=87 // pred_check
          %p799 = pneg %p798
        $region102: #{tpu_custom_call.1} parent=87 // pred_check_branch
          %801 = sbr.rel (%p799) target = $region104
        $region103: #{tpu_custom_call.1} parent=87 // pred_region
          %v802 = vld [vmem:[%s0] sm:$0xff]
          %v803 = vld [vmem:[%s0 + $0x8] sm:$0xff]
          %v804 = vld [vmem:[#allocation7] sm:$0x1]
          %v805 = vld [vmem:[#allocation9] sm:$0x1]
          %vm806 = vcmask 261120
          %v807 = vsel %vm806, %v802, 0.0
          %808 = vadd.xlane.f32.xlu0 %v807
          %v809 = vpop.xlane.xlu0 %808
          %v810 = vsel %vm806, %v803, 0.0
          %811 = vadd.xlane.f32.xlu0 %v810
          %v812 = vpop.xlane.xlu0 %811
          %v813 = vrcp.pop 32.0
          %v814 = vmul.f32 %v809, %v813
          %v815 = vmul.f32 %v812, %v813
          %v816 = vsub.f32 %v802, %v814
          %v817 = vsub.f32 %v803, %v815
          %v818 = vmul.f32 %v816, %v816
          %v819 = vmul.f32 %v817, %v817
          %v820 = vsel %vm806, %v818, 0.0
          %821 = vadd.xlane.f32.xlu0 %v820
          %v822 = vpop.xlane.xlu0 %821
          %v823 = vsel %vm806, %v819, 0.0
          %824 = vadd.xlane.f32.xlu0 %v823
          %v825 = vpop.xlane.xlu0 %824
          %v826 = vmul.f32 %v822, %v813
          %v827 = vmul.f32 %v825, %v813
          %v828 = vadd.f32 %v826, 1e-12
          %v829 = vadd.f32 %v827, 1e-12
          %v830 = vrsqrt.pop %v828
          %v831 = vrsqrt.pop %v829
          %v832 = vmul.f32 %v816, %v830
          %v833 = vmul.f32 %v817, %v831
          %v835 = vlaneseq
          %v836 = vshrl.u32 %v835, 7
          %v837 = vsub.s32 0, %v836
          %v838 = vrot.slane %v804, %v837
          %v840 = vmul.f32 %v832, %v838
          %v841 = vmul.f32 %v833, %v838
          %v843 = vlaneseq
          %v844 = vshrl.u32 %v843, 7
          %v845 = vsub.s32 0, %v844
          %v846 = vrot.slane %v805, %v845
          %v848 = vadd.f32 %v840, %v846
          %v849 = vadd.f32 %v841, %v846
          %850 = vst.msk [vmem:[#allocation2] sm:$0xff] %vm806, %v848
          %851 = vst.msk [vmem:[#allocation2 + $0x8] sm:$0xff] %vm806, %v849
          %852 = vst.msk [vmem:[#allocation3] sm:$0xff] %vm806, 0.0
          %853 = vst.msk [vmem:[#allocation3 + $0x8] sm:$0xff] %vm806, 0.0
        $region104: #{tpu_custom_call.1} parent=87 // pred_fallthru
          _
        %v854 = vld [vmem:[#allocation2] sm:$0xff]
        %v855 = vld [vmem:[#allocation2 + $0x8] sm:$0xff]
        %v856 = vld [vmem:[%s757] sm:$0xf]
        %v857 = vld [vmem:[%s757 + $0x4] sm:$0xf]
        %v858 = vld [vmem:[%s757 + $0x8] sm:$0xf]
        %v859 = vld [vmem:[%s757 + $0xc] sm:$0xf]
        %v860 = vpack.c.bf16 %v855, %v854
        %v861 = vld [vmem:[%s760] sm:$0x1]
        %v863 = vlaneseq
        %v864 = vshrl.u32 %v863, 7
        %v865 = vsub.s32 0, %v864
        %v866 = vrot.slane %v861, %v865
        %v872 = vunpack.c.l.b16 %v856
        %v873 = vunpack.c.l.b16 %v857
        %v874 = vunpack.c.l.b16 %v858
        %v875 = vunpack.c.l.b16 %v859
        %v876 = vpack.c.b16 %v873, %v872
        %v877 = vpack.c.b16 %v875, %v874
        %vm880 = vcmask 261120
        %v882 = vsel %vm880, %v860, 0
        %884 = vmatprep.subr.bf16.mxu0 0
        %885 = vmatpush1.bf16.msra.mxu0 0
        %886 = vmatprep.subr.bf16.mxu0 0
        %887 = vmatpush1.bf16.msra.mxu0 0
        %888 = vmatprep.subr.bf16.mxu0 0
        %889 = vmatpush1.bf16.msra.mxu0 0
        %890 = vmatprep.subr.bf16.mxu0 0
        %891 = vmatpush1.bf16.msra.mxu0 0
        %892 = vmatprep.subr.bf16.mxu0 0
        %893 = vmatpush1.bf16.msra.mxu0 0
        %894 = vmatprep.subr.bf16.mxu0 0
        %895 = vmatpush1.bf16.msra.mxu0 0
        %896 = vmatprep.subr.bf16.mxu0 0
        %897 = vmatpush1.bf16.msra.mxu0 %v877
        %898 = vmatprep.subr.bf16.mxu0 0
        %899 = vmatpush1.bf16.msra.mxu0 %v876
        %900 = vmatprep.subr.bf16.mxu0 0
        %901 = vmatpush2.bf16.msra.mxu0 0
        %902 = vmatprep.subr.bf16.mxu0 0
        %903 = vmatpush2.bf16.msra.mxu0 0
        %904 = vmatprep.subr.bf16.mxu0 0
        %905 = vmatpush2.bf16.msra.mxu0 0
        %906 = vmatprep.subr.bf16.mxu0 0
        %907 = vmatpush2.bf16.msra.mxu0 0
        %908 = vmatprep.subr.bf16.mxu0 0
        %909 = vmatpush2.bf16.msra.mxu0 0
        %910 = vmatprep.subr.bf16.mxu0 0
        %911 = vmatpush2.bf16.msra.mxu0 0
        %912 = vmatprep.subr.bf16.mxu0 0
        %913 = vmatpush2.bf16.msra.mxu0 0
        %914 = vmatprep.subr.bf16.mxu0 0
        %915 = vmatpush2.bf16.msra.mxu0 0
        %916 = vmatprep.mubr.bf16.mxu0 0
        %917 = vmatmul.mubr.bf16.gmra.mxu0 %v882
        %v918 = vpop.f32.mrf.mxu0
        %v919 = vadd.f32 %v866, %v918
        %v920 = vpop.f32.mrf.mxu0
        %v921 = vpop.f32.mrf.mxu0
        %v922 = vadd.f32 %v866, %v921
        %v923 = vpop.f32.mrf.mxu0
        %924 = vdwg.mxu0
        %v925 = vld [vmem:[#allocation4] sm:$0x1]
        %v926 = vld [vmem:[#allocation4 + $0x1] sm:$0x1]
        %v929 = vlaneseq
        %v930 = vshrl.u32 %v929, 7
        %v931 = vsub.s32 0, %v930
        %v932 = vrot.slane %v925, %v931
        %v933 = vlaneseq
        %v934 = vshrl.u32 %v933, 7
        %v935 = vsub.s32 0, %v934
        %v936 = vrot.slane %v926, %v935
        %940 = vrot.lane.b32.xlu0 %v919, 96
        %v941 = vpop.permute.xlu0 %940
        %vm942 = vcmask 64512
        %v943 = vsel %vm942, %v919, 0
        %v945 = vsel %vm942, %v941, 0
        %947 = vmatprep.subr.mxu0 0.0
        %948 = vmatpush1.xpose.msra.mxu0 0.0
        %949 = vmatprep.subr.mxu0 0.0
        %950 = vmatpush1.xpose.msra.mxu0 0.0
        %951 = vmatprep.subr.mxu0 0.0
        %952 = vmatpush1.xpose.msra.mxu0 0.0
        %953 = vmatprep.subr.mxu0 0.0
        %954 = vmatpush1.xpose.msra.mxu0 0.0
        %955 = vmatprep.subr.mxu0 0.0
        %956 = vmatpush1.xpose.msra.mxu0 0.0
        %957 = vmatprep.subr.mxu0 0.0
        %958 = vmatpush1.xpose.msra.mxu0 0.0
        %959 = vmatprep.subr.mxu0 0.0
        %960 = vmatpush1.xpose.msra.mxu0 0.0
        %961 = vmatprep.subr.mxu0 0.0
        %962 = vmatpush1.xpose.msra.mxu0 0.0
        %963 = vmatprep.subr.mxu0 0.0
        %964 = vmatpush1.xpose.msra.mxu0 0.0
        %965 = vmatprep.subr.mxu0 0.0
        %966 = vmatpush1.xpose.msra.mxu0 0.0
        %967 = vmatprep.subr.mxu0 0.0
        %968 = vmatpush1.xpose.msra.mxu0 0.0
        %969 = vmatprep.subr.mxu0 0.0
        %970 = vmatpush1.xpose.msra.mxu0 0.0
        %971 = vmatprep.subr.mxu0 0.0
        %972 = vmatpush1.xpose.msra.mxu0 0.0
        %973 = vmatprep.subr.mxu0 0.0
        %974 = vmatpush1.xpose.msra.mxu0 0.0
        %975 = vmatprep.subr.mxu0 0.0
        %976 = vmatpush1.xpose.msra.mxu0 0.0
        %977 = vmatprep.subr.mxu0 0.0
        %978 = vmatpush1.xpose.msra.mxu0 %v945
        %979 = vmatprep.subr.mxu0 0.0
        %980 = vmatpush2.xpose.msra.mxu0 0.0
        %981 = vmatprep.subr.mxu0 0.0
        %982 = vmatpush2.xpose.msra.mxu0 0.0
        %983 = vmatprep.subr.mxu0 0.0
        %984 = vmatpush2.xpose.msra.mxu0 0.0
        %985 = vmatprep.subr.mxu0 0.0
        %986 = vmatpush2.xpose.msra.mxu0 0.0
        %987 = vmatprep.subr.mxu0 0.0
        %988 = vmatpush2.xpose.msra.mxu0 0.0
        %989 = vmatprep.subr.mxu0 0.0
        %990 = vmatpush2.xpose.msra.mxu0 0.0
        %991 = vmatprep.subr.mxu0 0.0
        %992 = vmatpush2.xpose.msra.mxu0 0.0
        %993 = vmatprep.subr.mxu0 0.0
        %994 = vmatpush2.xpose.msra.mxu0 0.0
        %995 = vmatprep.subr.mxu0 0.0
        %996 = vmatpush2.xpose.msra.mxu0 0.0
        %997 = vmatprep.subr.mxu0 0.0
        %998 = vmatpush2.xpose.msra.mxu0 0.0
        %999 = vmatprep.subr.mxu0 0.0
        %1000 = vmatpush2.xpose.msra.mxu0 0.0
        %1001 = vmatprep.subr.mxu0 0.0
        %1002 = vmatpush2.xpose.msra.mxu0 0.0
        %1003 = vmatprep.subr.mxu0 0.0
        %1004 = vmatpush2.xpose.msra.mxu0 0.0
        %1005 = vmatprep.subr.mxu0 0.0
        %1006 = vmatpush2.xpose.msra.mxu0 0.0
        %1007 = vmatprep.subr.mxu0 0.0
        %1008 = vmatpush2.xpose.msra.mxu0 0.0
        %1009 = vmatprep.subr.mxu0 0.0
        %1010 = vmatpush2.xpose.msra.mxu0 0.0
        %1011 = vmatprep.mubr.f32.mxu0 0.0
        %1012 = vmatmul.mubr.f32.gmra.mxu0 %v943
        %v1013 = vpop.f32.mrf.mxu0
        %v1014 = vadd.f32 %v932, %v1013
        %v1015 = vpop.f32.mrf.mxu0
        %1016 = vdwg.mxu0
        %1018 = vrot.lane.b32.xlu0 %v922, 96
        %v1019 = vpop.permute.xlu0 %1018
        %v1020 = vsel %vm942, %v922, 0
        %v1022 = vsel %vm942, %v1019, 0
        %1024 = vmatprep.subr.mxu0 0.0
        %1025 = vmatpush1.xpose.msra.mxu0 0.0
        %1026 = vmatprep.subr.mxu0 0.0
        %1027 = vmatpush1.xpose.msra.mxu0 0.0
        %1028 = vmatprep.subr.mxu0 0.0
        %1029 = vmatpush1.xpose.msra.mxu0 0.0
        %1030 = vmatprep.subr.mxu0 0.0
        %1031 = vmatpush1.xpose.msra.mxu0 0.0
        %1032 = vmatprep.subr.mxu0 0.0
        %1033 = vmatpush1.xpose.msra.mxu0 0.0
        %1034 = vmatprep.subr.mxu0 0.0
        %1035 = vmatpush1.xpose.msra.mxu0 0.0
        %1036 = vmatprep.subr.mxu0 0.0
        %1037 = vmatpush1.xpose.msra.mxu0 0.0
        %1038 = vmatprep.subr.mxu0 0.0
        %1039 = vmatpush1.xpose.msra.mxu0 0.0
        %1040 = vmatprep.subr.mxu0 0.0
        %1041 = vmatpush1.xpose.msra.mxu0 0.0
        %1042 = vmatprep.subr.mxu0 0.0
        %1043 = vmatpush1.xpose.msra.mxu0 0.0
        %1044 = vmatprep.subr.mxu0 0.0
        %1045 = vmatpush1.xpose.msra.mxu0 0.0
        %1046 = vmatprep.subr.mxu0 0.0
        %1047 = vmatpush1.xpose.msra.mxu0 0.0
        %1048 = vmatprep.subr.mxu0 0.0
        %1049 = vmatpush1.xpose.msra.mxu0 0.0
        %1050 = vmatprep.subr.mxu0 0.0
        %1051 = vmatpush1.xpose.msra.mxu0 0.0
        %1052 = vmatprep.subr.mxu0 0.0
        %1053 = vmatpush1.xpose.msra.mxu0 0.0
        %1054 = vmatprep.subr.mxu0 0.0
        %1055 = vmatpush1.xpose.msra.mxu0 %v1022
        %1056 = vmatprep.subr.mxu0 0.0
        %1057 = vmatpush2.xpose.msra.mxu0 0.0
        %1058 = vmatprep.subr.mxu0 0.0
        %1059 = vmatpush2.xpose.msra.mxu0 0.0
        %1060 = vmatprep.subr.mxu0 0.0
        %1061 = vmatpush2.xpose.msra.mxu0 0.0
        %1062 = vmatprep.subr.mxu0 0.0
        %1063 = vmatpush2.xpose.msra.mxu0 0.0
        %1064 = vmatprep.subr.mxu0 0.0
        %1065 = vmatpush2.xpose.msra.mxu0 0.0
        %1066 = vmatprep.subr.mxu0 0.0
        %1067 = vmatpush2.xpose.msra.mxu0 0.0
        %1068 = vmatprep.subr.mxu0 0.0
        %1069 = vmatpush2.xpose.msra.mxu0 0.0
        %1070 = vmatprep.subr.mxu0 0.0
        %1071 = vmatpush2.xpose.msra.mxu0 0.0
        %1072 = vmatprep.subr.mxu0 0.0
        %1073 = vmatpush2.xpose.msra.mxu0 0.0
        %1074 = vmatprep.subr.mxu0 0.0
        %1075 = vmatpush2.xpose.msra.mxu0 0.0
        %1076 = vmatprep.subr.mxu0 0.0
        %1077 = vmatpush2.xpose.msra.mxu0 0.0
        %1078 = vmatprep.subr.mxu0 0.0
        %1079 = vmatpush2.xpose.msra.mxu0 0.0
        %1080 = vmatprep.subr.mxu0 0.0
        %1081 = vmatpush2.xpose.msra.mxu0 0.0
        %1082 = vmatprep.subr.mxu0 0.0
        %1083 = vmatpush2.xpose.msra.mxu0 0.0
        %1084 = vmatprep.subr.mxu0 0.0
        %1085 = vmatpush2.xpose.msra.mxu0 0.0
        %1086 = vmatprep.subr.mxu0 0.0
        %1087 = vmatpush2.xpose.msra.mxu0 0.0
        %1088 = vmatprep.mubr.f32.mxu0 0.0
        %1089 = vmatmul.mubr.f32.gmra.mxu0 %v1020
        %v1090 = vpop.f32.mrf.mxu0
        %v1091 = vadd.f32 %v936, %v1090
        %v1092 = vpop.f32.mrf.mxu0
        %1093 = vdwg.mxu0
        %v1094 = vsel %vm942, %v1014, -inf
        %1095 = vmax.xlane.f32.xlu0 %v1094
        %v1096 = vpop.xlane.xlu0 %1095
        %v1097 = vsel %vm942, %v1091, -inf
        %1098 = vmax.xlane.f32.xlu0 %v1097
        %v1099 = vpop.xlane.xlu0 %1098
        %v1100 = vsub.f32 %v1014, %v1096
        %v1101 = vsub.f32 %v1091, %v1099
        %v1102 = vmul.f32 %v1100, 1.442695
        %v1103 = vpow.pop %v1102
        %v1104 = vmul.f32 %v1101, 1.442695
        %v1105 = vpow.pop %v1104
        %v1106 = vsel %vm942, %v1103, 0.0
        %1107 = vadd.xlane.f32.xlu0 %v1106
        %v1108 = vpop.xlane.xlu0 %1107
        %v1109 = vsel %vm942, %v1105, 0.0
        %1110 = vadd.xlane.f32.xlu0 %v1109
        %v1111 = vpop.xlane.xlu0 %1110
        %v1112 = vrcp.pop %v1108
        %v1113 = vrcp.pop %v1111
        %v1114 = vmul.f32 %v1103, %v1112
        %v1115 = vmul.f32 %v1105, %v1113
        %1116 = vrot.lane.b32.xlu0 %v919, 64
        %v1117 = vpop.permute.xlu0 %1116
        %v1120 = vsel %vm942, %v1114, 0
        %1122 = vmatprep.subr.mxu0 0.0
        %1123 = vmatpush1.msra.mxu0 0.0
        %1124 = vmatprep.subr.mxu0 0.0
        %1125 = vmatpush1.msra.mxu0 0.0
        %1126 = vmatprep.subr.mxu0 0.0
        %1127 = vmatpush1.msra.mxu0 0.0
        %1128 = vmatprep.subr.mxu0 0.0
        %1129 = vmatpush1.msra.mxu0 0.0
        %1130 = vmatprep.subr.mxu0 0.0
        %1131 = vmatpush1.msra.mxu0 0.0
        %1132 = vmatprep.subr.mxu0 0.0
        %1133 = vmatpush1.msra.mxu0 0.0
        %1134 = vmatprep.subr.mxu0 0.0
        %1135 = vmatpush1.msra.mxu0 0.0
        %1136 = vmatprep.subr.mxu0 0.0
        %1137 = vmatpush1.msra.mxu0 0.0
        %1138 = vmatprep.subr.mxu0 0.0
        %1139 = vmatpush1.msra.mxu0 0.0
        %1140 = vmatprep.subr.mxu0 0.0
        %1141 = vmatpush1.msra.mxu0 0.0
        %1142 = vmatprep.subr.mxu0 0.0
        %1143 = vmatpush1.msra.mxu0 0.0
        %1144 = vmatprep.subr.mxu0 0.0
        %1145 = vmatpush1.msra.mxu0 0.0
        %1146 = vmatprep.subr.mxu0 0.0
        %1147 = vmatpush1.msra.mxu0 0.0
        %1148 = vmatprep.subr.mxu0 0.0
        %1149 = vmatpush1.msra.mxu0 0.0
        %1150 = vmatprep.subr.mxu0 0.0
        %1151 = vmatpush1.msra.mxu0 0.0
        %1152 = vmatprep.subr.mxu0 0.0
        %1153 = vmatpush1.msra.mxu0 %v1117
        %1154 = vmatprep.subr.mxu0 0.0
        %1155 = vmatpush2.msra.mxu0 0.0
        %1156 = vmatprep.subr.mxu0 0.0
        %1157 = vmatpush2.msra.mxu0 0.0
        %1158 = vmatprep.subr.mxu0 0.0
        %1159 = vmatpush2.msra.mxu0 0.0
        %1160 = vmatprep.subr.mxu0 0.0
        %1161 = vmatpush2.msra.mxu0 0.0
        %1162 = vmatprep.subr.mxu0 0.0
        %1163 = vmatpush2.msra.mxu0 0.0
        %1164 = vmatprep.subr.mxu0 0.0
        %1165 = vmatpush2.msra.mxu0 0.0
        %1166 = vmatprep.subr.mxu0 0.0
        %1167 = vmatpush2.msra.mxu0 0.0
        %1168 = vmatprep.subr.mxu0 0.0
        %1169 = vmatpush2.msra.mxu0 0.0
        %1170 = vmatprep.subr.mxu0 0.0
        %1171 = vmatpush2.msra.mxu0 0.0
        %1172 = vmatprep.subr.mxu0 0.0
        %1173 = vmatpush2.msra.mxu0 0.0
        %1174 = vmatprep.subr.mxu0 0.0
        %1175 = vmatpush2.msra.mxu0 0.0
        %1176 = vmatprep.subr.mxu0 0.0
        %1177 = vmatpush2.msra.mxu0 0.0
        %1178 = vmatprep.subr.mxu0 0.0
        %1179 = vmatpush2.msra.mxu0 0.0
        %1180 = vmatprep.subr.mxu0 0.0
        %1181 = vmatpush2.msra.mxu0 0.0
        %1182 = vmatprep.subr.mxu0 0.0
        %1183 = vmatpush2.msra.mxu0 0.0
        %1184 = vmatprep.subr.mxu0 0.0
        %1185 = vmatpush2.msra.mxu0 0.0
        %1186 = vmatprep.mubr.f32.mxu0 0.0
        %1187 = vmatmul.mubr.f32.gmra.mxu0 %v1120
        %v1188 = vpop.f32.mrf.mxu0
        %v1189 = vadd.f32 0.0, %v1188
        %v1190 = vpop.f32.mrf.mxu0
        %1191 = vdwg.mxu0
        %1192 = vrot.lane.b32.xlu0 %v922, 64
        %v1193 = vpop.permute.xlu0 %1192
        %v1196 = vsel %vm942, %v1115, 0
        %1198 = vmatprep.subr.mxu0 0.0
        %1199 = vmatpush1.msra.mxu0 0.0
        %1200 = vmatprep.subr.mxu0 0.0
        %1201 = vmatpush1.msra.mxu0 0.0
        %1202 = vmatprep.subr.mxu0 0.0
        %1203 = vmatpush1.msra.mxu0 0.0
        %1204 = vmatprep.subr.mxu0 0.0
        %1205 = vmatpush1.msra.mxu0 0.0
        %1206 = vmatprep.subr.mxu0 0.0
        %1207 = vmatpush1.msra.mxu0 0.0
        %1208 = vmatprep.subr.mxu0 0.0
        %1209 = vmatpush1.msra.mxu0 0.0
        %1210 = vmatprep.subr.mxu0 0.0
        %1211 = vmatpush1.msra.mxu0 0.0
        %1212 = vmatprep.subr.mxu0 0.0
        %1213 = vmatpush1.msra.mxu0 0.0
        %1214 = vmatprep.subr.mxu0 0.0
        %1215 = vmatpush1.msra.mxu0 0.0
        %1216 = vmatprep.subr.mxu0 0.0
        %1217 = vmatpush1.msra.mxu0 0.0
        %1218 = vmatprep.subr.mxu0 0.0
        %1219 = vmatpush1.msra.mxu0 0.0
        %1220 = vmatprep.subr.mxu0 0.0
        %1221 = vmatpush1.msra.mxu0 0.0
        %1222 = vmatprep.subr.mxu0 0.0
        %1223 = vmatpush1.msra.mxu0 0.0
        %1224 = vmatprep.subr.mxu0 0.0
        %1225 = vmatpush1.msra.mxu0 0.0
        %1226 = vmatprep.subr.mxu0 0.0
        %1227 = vmatpush1.msra.mxu0 0.0
        %1228 = vmatprep.subr.mxu0 0.0
        %1229 = vmatpush1.msra.mxu0 %v1193
        %1230 = vmatprep.subr.mxu0 0.0
        %1231 = vmatpush2.msra.mxu0 0.0
        %1232 = vmatprep.subr.mxu0 0.0
        %1233 = vmatpush2.msra.mxu0 0.0
        %1234 = vmatprep.subr.mxu0 0.0
        %1235 = vmatpush2.msra.mxu0 0.0
        %1236 = vmatprep.subr.mxu0 0.0
        %1237 = vmatpush2.msra.mxu0 0.0
        %1238 = vmatprep.subr.mxu0 0.0
        %1239 = vmatpush2.msra.mxu0 0.0
        %1240 = vmatprep.subr.mxu0 0.0
        %1241 = vmatpush2.msra.mxu0 0.0
        %1242 = vmatprep.subr.mxu0 0.0
        %1243 = vmatpush2.msra.mxu0 0.0
        %1244 = vmatprep.subr.mxu0 0.0
        %1245 = vmatpush2.msra.mxu0 0.0
        %1246 = vmatprep.subr.mxu0 0.0
        %1247 = vmatpush2.msra.mxu0 0.0
        %1248 = vmatprep.subr.mxu0 0.0
        %1249 = vmatpush2.msra.mxu0 0.0
        %1250 = vmatprep.subr.mxu0 0.0
        %1251 = vmatpush2.msra.mxu0 0.0
        %1252 = vmatprep.subr.mxu0 0.0
        %1253 = vmatpush2.msra.mxu0 0.0
        %1254 = vmatprep.subr.mxu0 0.0
        %1255 = vmatpush2.msra.mxu0 0.0
        %1256 = vmatprep.subr.mxu0 0.0
        %1257 = vmatpush2.msra.mxu0 0.0
        %1258 = vmatprep.subr.mxu0 0.0
        %1259 = vmatpush2.msra.mxu0 0.0
        %1260 = vmatprep.subr.mxu0 0.0
        %1261 = vmatpush2.msra.mxu0 0.0
        %1262 = vmatprep.mubr.f32.mxu0 0.0
        %1263 = vmatmul.mubr.f32.gmra.mxu0 %v1196
        %v1264 = vpop.f32.mrf.mxu0
        %v1265 = vadd.f32 0.0, %v1264
        %v1266 = vpop.f32.mrf.mxu0
        %1267 = vdwg.mxu0
        %1268 = vrot.lane.b32.xlu0 %v919, 120
        %v1269 = vpop.permute.xlu0 %1268
        %1270 = vrot.lane.b32.xlu0 %v919, 88
        %v1271 = vpop.permute.xlu0 %1270
        %v1272 = vsel %vm942, %v1269, 0
        %v1274 = vsel %vm942, %v1271, 0
        %1276 = vmatprep.subr.mxu0 0.0
        %1277 = vmatpush1.xpose.msra.mxu0 0.0
        %1278 = vmatprep.subr.mxu0 0.0
        %1279 = vmatpush1.xpose.msra.mxu0 0.0
        %1280 = vmatprep.subr.mxu0 0.0
        %1281 = vmatpush1.xpose.msra.mxu0 0.0
        %1282 = vmatprep.subr.mxu0 0.0
        %1283 = vmatpush1.xpose.msra.mxu0 0.0
        %1284 = vmatprep.subr.mxu0 0.0
        %1285 = vmatpush1.xpose.msra.mxu0 0.0
        %1286 = vmatprep.subr.mxu0 0.0
        %1287 = vmatpush1.xpose.msra.mxu0 0.0
        %1288 = vmatprep.subr.mxu0 0.0
        %1289 = vmatpush1.xpose.msra.mxu0 0.0
        %1290 = vmatprep.subr.mxu0 0.0
        %1291 = vmatpush1.xpose.msra.mxu0 0.0
        %1292 = vmatprep.subr.mxu0 0.0
        %1293 = vmatpush1.xpose.msra.mxu0 0.0
        %1294 = vmatprep.subr.mxu0 0.0
        %1295 = vmatpush1.xpose.msra.mxu0 0.0
        %1296 = vmatprep.subr.mxu0 0.0
        %1297 = vmatpush1.xpose.msra.mxu0 0.0
        %1298 = vmatprep.subr.mxu0 0.0
        %1299 = vmatpush1.xpose.msra.mxu0 0.0
        %1300 = vmatprep.subr.mxu0 0.0
        %1301 = vmatpush1.xpose.msra.mxu0 0.0
        %1302 = vmatprep.subr.mxu0 0.0
        %1303 = vmatpush1.xpose.msra.mxu0 0.0
        %1304 = vmatprep.subr.mxu0 0.0
        %1305 = vmatpush1.xpose.msra.mxu0 0.0
        %1306 = vmatprep.subr.mxu0 0.0
        %1307 = vmatpush1.xpose.msra.mxu0 %v1274
        %1308 = vmatprep.subr.mxu0 0.0
        %1309 = vmatpush2.xpose.msra.mxu0 0.0
        %1310 = vmatprep.subr.mxu0 0.0
        %1311 = vmatpush2.xpose.msra.mxu0 0.0
        %1312 = vmatprep.subr.mxu0 0.0
        %1313 = vmatpush2.xpose.msra.mxu0 0.0
        %1314 = vmatprep.subr.mxu0 0.0
        %1315 = vmatpush2.xpose.msra.mxu0 0.0
        %1316 = vmatprep.subr.mxu0 0.0
        %1317 = vmatpush2.xpose.msra.mxu0 0.0
        %1318 = vmatprep.subr.mxu0 0.0
        %1319 = vmatpush2.xpose.msra.mxu0 0.0
        %1320 = vmatprep.subr.mxu0 0.0
        %1321 = vmatpush2.xpose.msra.mxu0 0.0
        %1322 = vmatprep.subr.mxu0 0.0
        %1323 = vmatpush2.xpose.msra.mxu0 0.0
        %1324 = vmatprep.subr.mxu0 0.0
        %1325 = vmatpush2.xpose.msra.mxu0 0.0
        %1326 = vmatprep.subr.mxu0 0.0
        %1327 = vmatpush2.xpose.msra.mxu0 0.0
        %1328 = vmatprep.subr.mxu0 0.0
        %1329 = vmatpush2.xpose.msra.mxu0 0.0
        %1330 = vmatprep.subr.mxu0 0.0
        %1331 = vmatpush2.xpose.msra.mxu0 0.0
        %1332 = vmatprep.subr.mxu0 0.0
        %1333 = vmatpush2.xpose.msra.mxu0 0.0
        %1334 = vmatprep.subr.mxu0 0.0
        %1335 = vmatpush2.xpose.msra.mxu0 0.0
        %1336 = vmatprep.subr.mxu0 0.0
        %1337 = vmatpush2.xpose.msra.mxu0 0.0
        %1338 = vmatprep.subr.mxu0 0.0
        %1339 = vmatpush2.xpose.msra.mxu0 0.0
        %1340 = vmatprep.mubr.f32.mxu0 0.0
        %1341 = vmatmul.mubr.f32.gmra.mxu0 %v1272
        %v1342 = vpop.f32.mrf.mxu0
        %v1343 = vadd.f32 %v932, %v1342
        %v1344 = vpop.f32.mrf.mxu0
        %1345 = vdwg.mxu0
        %1346 = vrot.lane.b32.xlu0 %v922, 120
        %v1347 = vpop.permute.xlu0 %1346
        %1348 = vrot.lane.b32.xlu0 %v922, 88
        %v1349 = vpop.permute.xlu0 %1348
        %v1350 = vsel %vm942, %v1347, 0
        %v1352 = vsel %vm942, %v1349, 0
        %1354 = vmatprep.subr.mxu0 0.0
        %1355 = vmatpush1.xpose.msra.mxu0 0.0
        %1356 = vmatprep.subr.mxu0 0.0
        %1357 = vmatpush1.xpose.msra.mxu0 0.0
        %1358 = vmatprep.subr.mxu0 0.0
        %1359 = vmatpush1.xpose.msra.mxu0 0.0
        %1360 = vmatprep.subr.mxu0 0.0
        %1361 = vmatpush1.xpose.msra.mxu0 0.0
        %1362 = vmatprep.subr.mxu0 0.0
        %1363 = vmatpush1.xpose.msra.mxu0 0.0
        %1364 = vmatprep.subr.mxu0 0.0
        %1365 = vmatpush1.xpose.msra.mxu0 0.0
        %1366 = vmatprep.subr.mxu0 0.0
        %1367 = vmatpush1.xpose.msra.mxu0 0.0
        %1368 = vmatprep.subr.mxu0 0.0
        %1369 = vmatpush1.xpose.msra.mxu0 0.0
        %1370 = vmatprep.subr.mxu0 0.0
        %1371 = vmatpush1.xpose.msra.mxu0 0.0
        %1372 = vmatprep.subr.mxu0 0.0
        %1373 = vmatpush1.xpose.msra.mxu0 0.0
        %1374 = vmatprep.subr.mxu0 0.0
        %1375 = vmatpush1.xpose.msra.mxu0 0.0
        %1376 = vmatprep.subr.mxu0 0.0
        %1377 = vmatpush1.xpose.msra.mxu0 0.0
        %1378 = vmatprep.subr.mxu0 0.0
        %1379 = vmatpush1.xpose.msra.mxu0 0.0
        %1380 = vmatprep.subr.mxu0 0.0
        %1381 = vmatpush1.xpose.msra.mxu0 0.0
        %1382 = vmatprep.subr.mxu0 0.0
        %1383 = vmatpush1.xpose.msra.mxu0 0.0
        %1384 = vmatprep.subr.mxu0 0.0
        %1385 = vmatpush1.xpose.msra.mxu0 %v1352
        %1386 = vmatprep.subr.mxu0 0.0
        %1387 = vmatpush2.xpose.msra.mxu0 0.0
        %1388 = vmatprep.subr.mxu0 0.0
        %1389 = vmatpush2.xpose.msra.mxu0 0.0
        %1390 = vmatprep.subr.mxu0 0.0
        %1391 = vmatpush2.xpose.msra.mxu0 0.0
        %1392 = vmatprep.subr.mxu0 0.0
        %1393 = vmatpush2.xpose.msra.mxu0 0.0
        %1394 = vmatprep.subr.mxu0 0.0
        %1395 = vmatpush2.xpose.msra.mxu0 0.0
        %1396 = vmatprep.subr.mxu0 0.0
        %1397 = vmatpush2.xpose.msra.mxu0 0.0
        %1398 = vmatprep.subr.mxu0 0.0
        %1399 = vmatpush2.xpose.msra.mxu0 0.0
        %1400 = vmatprep.subr.mxu0 0.0
        %1401 = vmatpush2.xpose.msra.mxu0 0.0
        %1402 = vmatprep.subr.mxu0 0.0
        %1403 = vmatpush2.xpose.msra.mxu0 0.0
        %1404 = vmatprep.subr.mxu0 0.0
        %1405 = vmatpush2.xpose.msra.mxu0 0.0
        %1406 = vmatprep.subr.mxu0 0.0
        %1407 = vmatpush2.xpose.msra.mxu0 0.0
        %1408 = vmatprep.subr.mxu0 0.0
        %1409 = vmatpush2.xpose.msra.mxu0 0.0
        %1410 = vmatprep.subr.mxu0 0.0
        %1411 = vmatpush2.xpose.msra.mxu0 0.0
        %1412 = vmatprep.subr.mxu0 0.0
        %1413 = vmatpush2.xpose.msra.mxu0 0.0
        %1414 = vmatprep.subr.mxu0 0.0
        %1415 = vmatpush2.xpose.msra.mxu0 0.0
        %1416 = vmatprep.subr.mxu0 0.0
        %1417 = vmatpush2.xpose.msra.mxu0 0.0
        %1418 = vmatprep.mubr.f32.mxu0 0.0
        %1419 = vmatmul.mubr.f32.gmra.mxu0 %v1350
        %v1420 = vpop.f32.mrf.mxu0
        %v1421 = vadd.f32 %v936, %v1420
        %v1422 = vpop.f32.mrf.mxu0
        %1423 = vdwg.mxu0
        %v1424 = vsel %vm942, %v1343, -inf
        %1425 = vmax.xlane.f32.xlu0 %v1424
        %v1426 = vpop.xlane.xlu0 %1425
        %v1427 = vsel %vm942, %v1421, -inf
        %1428 = vmax.xlane.f32.xlu0 %v1427
        %v1429 = vpop.xlane.xlu0 %1428
        %v1430 = vsub.f32 %v1343, %v1426
        %v1431 = vsub.f32 %v1421, %v1429
        %v1432 = vmul.f32 %v1430, 1.442695
        %v1433 = vpow.pop %v1432
        %v1434 = vmul.f32 %v1431, 1.442695
        %v1435 = vpow.pop %v1434
        %v1436 = vsel %vm942, %v1433, 0.0
        %1437 = vadd.xlane.f32.xlu0 %v1436
        %v1438 = vpop.xlane.xlu0 %1437
        %v1439 = vsel %vm942, %v1435, 0.0
        %1440 = vadd.xlane.f32.xlu0 %v1439
        %v1441 = vpop.xlane.xlu0 %1440
        %v1442 = vrcp.pop %v1438
        %v1443 = vrcp.pop %v1441
        %v1444 = vmul.f32 %v1433, %v1442
        %v1445 = vmul.f32 %v1435, %v1443
        %1446 = vrot.lane.b32.xlu0 %v919, 56
        %v1447 = vpop.permute.xlu0 %1446
        %v1450 = vsel %vm942, %v1444, 0
        %1452 = vmatprep.subr.mxu0 0.0
        %1453 = vmatpush1.msra.mxu0 0.0
        %1454 = vmatprep.subr.mxu0 0.0
        %1455 = vmatpush1.msra.mxu0 0.0
        %1456 = vmatprep.subr.mxu0 0.0
        %1457 = vmatpush1.msra.mxu0 0.0
        %1458 = vmatprep.subr.mxu0 0.0
        %1459 = vmatpush1.msra.mxu0 0.0
        %1460 = vmatprep.subr.mxu0 0.0
        %1461 = vmatpush1.msra.mxu0 0.0
        %1462 = vmatprep.subr.mxu0 0.0
        %1463 = vmatpush1.msra.mxu0 0.0
        %1464 = vmatprep.subr.mxu0 0.0
        %1465 = vmatpush1.msra.mxu0 0.0
        %1466 = vmatprep.subr.mxu0 0.0
        %1467 = vmatpush1.msra.mxu0 0.0
        %1468 = vmatprep.subr.mxu0 0.0
        %1469 = vmatpush1.msra.mxu0 0.0
        %1470 = vmatprep.subr.mxu0 0.0
        %1471 = vmatpush1.msra.mxu0 0.0
        %1472 = vmatprep.subr.mxu0 0.0
        %1473 = vmatpush1.msra.mxu0 0.0
        %1474 = vmatprep.subr.mxu0 0.0
        %1475 = vmatpush1.msra.mxu0 0.0
        %1476 = vmatprep.subr.mxu0 0.0
        %1477 = vmatpush1.msra.mxu0 0.0
        %1478 = vmatprep.subr.mxu0 0.0
        %1479 = vmatpush1.msra.mxu0 0.0
        %1480 = vmatprep.subr.mxu0 0.0
        %1481 = vmatpush1.msra.mxu0 0.0
        %1482 = vmatprep.subr.mxu0 0.0
        %1483 = vmatpush1.msra.mxu0 %v1447
        %1484 = vmatprep.subr.mxu0 0.0
        %1485 = vmatpush2.msra.mxu0 0.0
        %1486 = vmatprep.subr.mxu0 0.0
        %1487 = vmatpush2.msra.mxu0 0.0
        %1488 = vmatprep.subr.mxu0 0.0
        %1489 = vmatpush2.msra.mxu0 0.0
        %1490 = vmatprep.subr.mxu0 0.0
        %1491 = vmatpush2.msra.mxu0 0.0
        %1492 = vmatprep.subr.mxu0 0.0
        %1493 = vmatpush2.msra.mxu0 0.0
        %1494 = vmatprep.subr.mxu0 0.0
        %1495 = vmatpush2.msra.mxu0 0.0
        %1496 = vmatprep.subr.mxu0 0.0
        %1497 = vmatpush2.msra.mxu0 0.0
        %1498 = vmatprep.subr.mxu0 0.0
        %1499 = vmatpush2.msra.mxu0 0.0
        %1500 = vmatprep.subr.mxu0 0.0
        %1501 = vmatpush2.msra.mxu0 0.0
        %1502 = vmatprep.subr.mxu0 0.0
        %1503 = vmatpush2.msra.mxu0 0.0
        %1504 = vmatprep.subr.mxu0 0.0
        %1505 = vmatpush2.msra.mxu0 0.0
        %1506 = vmatprep.subr.mxu0 0.0
        %1507 = vmatpush2.msra.mxu0 0.0
        %1508 = vmatprep.subr.mxu0 0.0
        %1509 = vmatpush2.msra.mxu0 0.0
        %1510 = vmatprep.subr.mxu0 0.0
        %1511 = vmatpush2.msra.mxu0 0.0
        %1512 = vmatprep.subr.mxu0 0.0
        %1513 = vmatpush2.msra.mxu0 0.0
        %1514 = vmatprep.subr.mxu0 0.0
        %1515 = vmatpush2.msra.mxu0 0.0
        %1516 = vmatprep.mubr.f32.mxu0 0.0
        %1517 = vmatmul.mubr.f32.gmra.mxu0 %v1450
        %v1518 = vpop.f32.mrf.mxu0
        %v1519 = vadd.f32 0.0, %v1518
        %v1520 = vpop.f32.mrf.mxu0
        %1521 = vdwg.mxu0
        %1522 = vrot.lane.b32.xlu0 %v922, 56
        %v1523 = vpop.permute.xlu0 %1522
        %v1526 = vsel %vm942, %v1445, 0
        %1528 = vmatprep.subr.mxu0 0.0
        %1529 = vmatpush1.msra.mxu0 0.0
        %1530 = vmatprep.subr.mxu0 0.0
        %1531 = vmatpush1.msra.mxu0 0.0
        %1532 = vmatprep.subr.mxu0 0.0
        %1533 = vmatpush1.msra.mxu0 0.0
        %1534 = vmatprep.subr.mxu0 0.0
        %1535 = vmatpush1.msra.mxu0 0.0
        %1536 = vmatprep.subr.mxu0 0.0
        %1537 = vmatpush1.msra.mxu0 0.0
        %1538 = vmatprep.subr.mxu0 0.0
        %1539 = vmatpush1.msra.mxu0 0.0
        %1540 = vmatprep.subr.mxu0 0.0
        %1541 = vmatpush1.msra.mxu0 0.0
        %1542 = vmatprep.subr.mxu0 0.0
        %1543 = vmatpush1.msra.mxu0 0.0
        %1544 = vmatprep.subr.mxu0 0.0
        %1545 = vmatpush1.msra.mxu0 0.0
        %1546 = vmatprep.subr.mxu0 0.0
        %1547 = vmatpush1.msra.mxu0 0.0
        %1548 = vmatprep.subr.mxu0 0.0
        %1549 = vmatpush1.msra.mxu0 0.0
        %1550 = vmatprep.subr.mxu0 0.0
        %1551 = vmatpush1.msra.mxu0 0.0
        %1552 = vmatprep.subr.mxu0 0.0
        %1553 = vmatpush1.msra.mxu0 0.0
        %1554 = vmatprep.subr.mxu0 0.0
        %1555 = vmatpush1.msra.mxu0 0.0
        %1556 = vmatprep.subr.mxu0 0.0
        %1557 = vmatpush1.msra.mxu0 0.0
        %1558 = vmatprep.subr.mxu0 0.0
        %1559 = vmatpush1.msra.mxu0 %v1523
        %1560 = vmatprep.subr.mxu0 0.0
        %1561 = vmatpush2.msra.mxu0 0.0
        %1562 = vmatprep.subr.mxu0 0.0
        %1563 = vmatpush2.msra.mxu0 0.0
        %1564 = vmatprep.subr.mxu0 0.0
        %1565 = vmatpush2.msra.mxu0 0.0
        %1566 = vmatprep.subr.mxu0 0.0
        %1567 = vmatpush2.msra.mxu0 0.0
        %1568 = vmatprep.subr.mxu0 0.0
        %1569 = vmatpush2.msra.mxu0 0.0
        %1570 = vmatprep.subr.mxu0 0.0
        %1571 = vmatpush2.msra.mxu0 0.0
        %1572 = vmatprep.subr.mxu0 0.0
        %1573 = vmatpush2.msra.mxu0 0.0
        %1574 = vmatprep.subr.mxu0 0.0
        %1575 = vmatpush2.msra.mxu0 0.0
        %1576 = vmatprep.subr.mxu0 0.0
        %1577 = vmatpush2.msra.mxu0 0.0
        %1578 = vmatprep.subr.mxu0 0.0
        %1579 = vmatpush2.msra.mxu0 0.0
        %1580 = vmatprep.subr.mxu0 0.0
        %1581 = vmatpush2.msra.mxu0 0.0
        %1582 = vmatprep.subr.mxu0 0.0
        %1583 = vmatpush2.msra.mxu0 0.0
        %1584 = vmatprep.subr.mxu0 0.0
        %1585 = vmatpush2.msra.mxu0 0.0
        %1586 = vmatprep.subr.mxu0 0.0
        %1587 = vmatpush2.msra.mxu0 0.0
        %1588 = vmatprep.subr.mxu0 0.0
        %1589 = vmatpush2.msra.mxu0 0.0
        %1590 = vmatprep.subr.mxu0 0.0
        %1591 = vmatpush2.msra.mxu0 0.0
        %1592 = vmatprep.mubr.f32.mxu0 0.0
        %1593 = vmatmul.mubr.f32.gmra.mxu0 %v1526
        %v1594 = vpop.f32.mrf.mxu0
        %v1595 = vadd.f32 0.0, %v1594
        %v1596 = vpop.f32.mrf.mxu0
        %1597 = vdwg.mxu0
        %1598 = vrot.lane.b32.xlu0 %v919, 112
        %v1599 = vpop.permute.xlu0 %1598
        %1600 = vrot.lane.b32.xlu0 %v919, 80
        %v1601 = vpop.permute.xlu0 %1600
        %v1602 = vsel %vm942, %v1599, 0
        %v1604 = vsel %vm942, %v1601, 0
        %1606 = vmatprep.subr.mxu0 0.0
        %1607 = vmatpush1.xpose.msra.mxu0 0.0
        %1608 = vmatprep.subr.mxu0 0.0
        %1609 = vmatpush1.xpose.msra.mxu0 0.0
        %1610 = vmatprep.subr.mxu0 0.0
        %1611 = vmatpush1.xpose.msra.mxu0 0.0
        %1612 = vmatprep.subr.mxu0 0.0
        %1613 = vmatpush1.xpose.msra.mxu0 0.0
        %1614 = vmatprep.subr.mxu0 0.0
        %1615 = vmatpush1.xpose.msra.mxu0 0.0
        %1616 = vmatprep.subr.mxu0 0.0
        %1617 = vmatpush1.xpose.msra.mxu0 0.0
        %1618 = vmatprep.subr.mxu0 0.0
        %1619 = vmatpush1.xpose.msra.mxu0 0.0
        %1620 = vmatprep.subr.mxu0 0.0
        %1621 = vmatpush1.xpose.msra.mxu0 0.0
        %1622 = vmatprep.subr.mxu0 0.0
        %1623 = vmatpush1.xpose.msra.mxu0 0.0
        %1624 = vmatprep.subr.mxu0 0.0
        %1625 = vmatpush1.xpose.msra.mxu0 0.0
        %1626 = vmatprep.subr.mxu0 0.0
        %1627 = vmatpush1.xpose.msra.mxu0 0.0
        %1628 = vmatprep.subr.mxu0 0.0
        %1629 = vmatpush1.xpose.msra.mxu0 0.0
        %1630 = vmatprep.subr.mxu0 0.0
        %1631 = vmatpush1.xpose.msra.mxu0 0.0
        %1632 = vmatprep.subr.mxu0 0.0
        %1633 = vmatpush1.xpose.msra.mxu0 0.0
        %1634 = vmatprep.subr.mxu0 0.0
        %1635 = vmatpush1.xpose.msra.mxu0 0.0
        %1636 = vmatprep.subr.mxu0 0.0
        %1637 = vmatpush1.xpose.msra.mxu0 %v1604
        %1638 = vmatprep.subr.mxu0 0.0
        %1639 = vmatpush2.xpose.msra.mxu0 0.0
        %1640 = vmatprep.subr.mxu0 0.0
        %1641 = vmatpush2.xpose.msra.mxu0 0.0
        %1642 = vmatprep.subr.mxu0 0.0
        %1643 = vmatpush2.xpose.msra.mxu0 0.0
        %1644 = vmatprep.subr.mxu0 0.0
        %1645 = vmatpush2.xpose.msra.mxu0 0.0
        %1646 = vmatprep.subr.mxu0 0.0
        %1647 = vmatpush2.xpose.msra.mxu0 0.0
        %1648 = vmatprep.subr.mxu0 0.0
        %1649 = vmatpush2.xpose.msra.mxu0 0.0
        %1650 = vmatprep.subr.mxu0 0.0
        %1651 = vmatpush2.xpose.msra.mxu0 0.0
        %1652 = vmatprep.subr.mxu0 0.0
        %1653 = vmatpush2.xpose.msra.mxu0 0.0
        %1654 = vmatprep.subr.mxu0 0.0
        %1655 = vmatpush2.xpose.msra.mxu0 0.0
        %1656 = vmatprep.subr.mxu0 0.0
        %1657 = vmatpush2.xpose.msra.mxu0 0.0
        %1658 = vmatprep.subr.mxu0 0.0
        %1659 = vmatpush2.xpose.msra.mxu0 0.0
        %1660 = vmatprep.subr.mxu0 0.0
        %1661 = vmatpush2.xpose.msra.mxu0 0.0
        %1662 = vmatprep.subr.mxu0 0.0
        %1663 = vmatpush2.xpose.msra.mxu0 0.0
        %1664 = vmatprep.subr.mxu0 0.0
        %1665 = vmatpush2.xpose.msra.mxu0 0.0
        %1666 = vmatprep.subr.mxu0 0.0
        %1667 = vmatpush2.xpose.msra.mxu0 0.0
        %1668 = vmatprep.subr.mxu0 0.0
        %1669 = vmatpush2.xpose.msra.mxu0 0.0
        %1670 = vmatprep.mubr.f32.mxu0 0.0
        %1671 = vmatmul.mubr.f32.gmra.mxu0 %v1602
        %v1672 = vpop.f32.mrf.mxu0
        %v1673 = vadd.f32 %v932, %v1672
        %v1674 = vpop.f32.mrf.mxu0
        %1675 = vdwg.mxu0
        %1676 = vrot.lane.b32.xlu0 %v922, 112
        %v1677 = vpop.permute.xlu0 %1676
        %1678 = vrot.lane.b32.xlu0 %v922, 80
        %v1679 = vpop.permute.xlu0 %1678
        %v1680 = vsel %vm942, %v1677, 0
        %v1682 = vsel %vm942, %v1679, 0
        %1684 = vmatprep.subr.mxu0 0.0
        %1685 = vmatpush1.xpose.msra.mxu0 0.0
        %1686 = vmatprep.subr.mxu0 0.0
        %1687 = vmatpush1.xpose.msra.mxu0 0.0
        %1688 = vmatprep.subr.mxu0 0.0
        %1689 = vmatpush1.xpose.msra.mxu0 0.0
        %1690 = vmatprep.subr.mxu0 0.0
        %1691 = vmatpush1.xpose.msra.mxu0 0.0
        %1692 = vmatprep.subr.mxu0 0.0
        %1693 = vmatpush1.xpose.msra.mxu0 0.0
        %1694 = vmatprep.subr.mxu0 0.0
        %1695 = vmatpush1.xpose.msra.mxu0 0.0
        %1696 = vmatprep.subr.mxu0 0.0
        %1697 = vmatpush1.xpose.msra.mxu0 0.0
        %1698 = vmatprep.subr.mxu0 0.0
        %1699 = vmatpush1.xpose.msra.mxu0 0.0
        %1700 = vmatprep.subr.mxu0 0.0
        %1701 = vmatpush1.xpose.msra.mxu0 0.0
        %1702 = vmatprep.subr.mxu0 0.0
        %1703 = vmatpush1.xpose.msra.mxu0 0.0
        %1704 = vmatprep.subr.mxu0 0.0
        %1705 = vmatpush1.xpose.msra.mxu0 0.0
        %1706 = vmatprep.subr.mxu0 0.0
        %1707 = vmatpush1.xpose.msra.mxu0 0.0
        %1708 = vmatprep.subr.mxu0 0.0
        %1709 = vmatpush1.xpose.msra.mxu0 0.0
        %1710 = vmatprep.subr.mxu0 0.0
        %1711 = vmatpush1.xpose.msra.mxu0 0.0
        %1712 = vmatprep.subr.mxu0 0.0
        %1713 = vmatpush1.xpose.msra.mxu0 0.0
        %1714 = vmatprep.subr.mxu0 0.0
        %1715 = vmatpush1.xpose.msra.mxu0 %v1682
        %1716 = vmatprep.subr.mxu0 0.0
        %1717 = vmatpush2.xpose.msra.mxu0 0.0
        %1718 = vmatprep.subr.mxu0 0.0
        %1719 = vmatpush2.xpose.msra.mxu0 0.0
        %1720 = vmatprep.subr.mxu0 0.0
        %1721 = vmatpush2.xpose.msra.mxu0 0.0
        %1722 = vmatprep.subr.mxu0 0.0
        %1723 = vmatpush2.xpose.msra.mxu0 0.0
        %1724 = vmatprep.subr.mxu0 0.0
        %1725 = vmatpush2.xpose.msra.mxu0 0.0
        %1726 = vmatprep.subr.mxu0 0.0
        %1727 = vmatpush2.xpose.msra.mxu0 0.0
        %1728 = vmatprep.subr.mxu0 0.0
        %1729 = vmatpush2.xpose.msra.mxu0 0.0
        %1730 = vmatprep.subr.mxu0 0.0
        %1731 = vmatpush2.xpose.msra.mxu0 0.0
        %1732 = vmatprep.subr.mxu0 0.0
        %1733 = vmatpush2.xpose.msra.mxu0 0.0
        %1734 = vmatprep.subr.mxu0 0.0
        %1735 = vmatpush2.xpose.msra.mxu0 0.0
        %1736 = vmatprep.subr.mxu0 0.0
        %1737 = vmatpush2.xpose.msra.mxu0 0.0
        %1738 = vmatprep.subr.mxu0 0.0
        %1739 = vmatpush2.xpose.msra.mxu0 0.0
        %1740 = vmatprep.subr.mxu0 0.0
        %1741 = vmatpush2.xpose.msra.mxu0 0.0
        %1742 = vmatprep.subr.mxu0 0.0
        %1743 = vmatpush2.xpose.msra.mxu0 0.0
        %1744 = vmatprep.subr.mxu0 0.0
        %1745 = vmatpush2.xpose.msra.mxu0 0.0
        %1746 = vmatprep.subr.mxu0 0.0
        %1747 = vmatpush2.xpose.msra.mxu0 0.0
        %1748 = vmatprep.mubr.f32.mxu0 0.0
        %1749 = vmatmul.mubr.f32.gmra.mxu0 %v1680
        %v1750 = vpop.f32.mrf.mxu0
        %v1751 = vadd.f32 %v936, %v1750
        %v1752 = vpop.f32.mrf.mxu0
        %1753 = vdwg.mxu0
        %v1754 = vsel %vm942, %v1673, -inf
        %1755 = vmax.xlane.f32.xlu0 %v1754
        %v1756 = vpop.xlane.xlu0 %1755
        %v1757 = vsel %vm942, %v1751, -inf
        %1758 = vmax.xlane.f32.xlu0 %v1757
        %v1759 = vpop.xlane.xlu0 %1758
        %v1760 = vsub.f32 %v1673, %v1756
        %v1761 = vsub.f32 %v1751, %v1759
        %v1762 = vmul.f32 %v1760, 1.442695
        %v1763 = vpow.pop %v1762
        %v1764 = vmul.f32 %v1761, 1.442695
        %v1765 = vpow.pop %v1764
        %v1766 = vsel %vm942, %v1763, 0.0
        %1767 = vadd.xlane.f32.xlu0 %v1766
        %v1768 = vpop.xlane.xlu0 %1767
        %v1769 = vsel %vm942, %v1765, 0.0
        %1770 = vadd.xlane.f32.xlu0 %v1769
        %v1771 = vpop.xlane.xlu0 %1770
        %v1772 = vrcp.pop %v1768
        %v1773 = vrcp.pop %v1771
        %v1774 = vmul.f32 %v1763, %v1772
        %v1775 = vmul.f32 %v1765, %v1773
        %1776 = vrot.lane.b32.xlu0 %v919, 48
        %v1777 = vpop.permute.xlu0 %1776
        %v1780 = vsel %vm942, %v1774, 0
        %1782 = vmatprep.subr.mxu0 0.0
        %1783 = vmatpush1.msra.mxu0 0.0
        %1784 = vmatprep.subr.mxu0 0.0
        %1785 = vmatpush1.msra.mxu0 0.0
        %1786 = vmatprep.subr.mxu0 0.0
        %1787 = vmatpush1.msra.mxu0 0.0
        %1788 = vmatprep.subr.mxu0 0.0
        %1789 = vmatpush1.msra.mxu0 0.0
        %1790 = vmatprep.subr.mxu0 0.0
        %1791 = vmatpush1.msra.mxu0 0.0
        %1792 = vmatprep.subr.mxu0 0.0
        %1793 = vmatpush1.msra.mxu0 0.0
        %1794 = vmatprep.subr.mxu0 0.0
        %1795 = vmatpush1.msra.mxu0 0.0
        %1796 = vmatprep.subr.mxu0 0.0
        %1797 = vmatpush1.msra.mxu0 0.0
        %1798 = vmatprep.subr.mxu0 0.0
        %1799 = vmatpush1.msra.mxu0 0.0
        %1800 = vmatprep.subr.mxu0 0.0
        %1801 = vmatpush1.msra.mxu0 0.0
        %1802 = vmatprep.subr.mxu0 0.0
        %1803 = vmatpush1.msra.mxu0 0.0
        %1804 = vmatprep.subr.mxu0 0.0
        %1805 = vmatpush1.msra.mxu0 0.0
        %1806 = vmatprep.subr.mxu0 0.0
        %1807 = vmatpush1.msra.mxu0 0.0
        %1808 = vmatprep.subr.mxu0 0.0
        %1809 = vmatpush1.msra.mxu0 0.0
        %1810 = vmatprep.subr.mxu0 0.0
        %1811 = vmatpush1.msra.mxu0 0.0
        %1812 = vmatprep.subr.mxu0 0.0
        %1813 = vmatpush1.msra.mxu0 %v1777
        %1814 = vmatprep.subr.mxu0 0.0
        %1815 = vmatpush2.msra.mxu0 0.0
        %1816 = vmatprep.subr.mxu0 0.0
        %1817 = vmatpush2.msra.mxu0 0.0
        %1818 = vmatprep.subr.mxu0 0.0
        %1819 = vmatpush2.msra.mxu0 0.0
        %1820 = vmatprep.subr.mxu0 0.0
        %1821 = vmatpush2.msra.mxu0 0.0
        %1822 = vmatprep.subr.mxu0 0.0
        %1823 = vmatpush2.msra.mxu0 0.0
        %1824 = vmatprep.subr.mxu0 0.0
        %1825 = vmatpush2.msra.mxu0 0.0
        %1826 = vmatprep.subr.mxu0 0.0
        %1827 = vmatpush2.msra.mxu0 0.0
        %1828 = vmatprep.subr.mxu0 0.0
        %1829 = vmatpush2.msra.mxu0 0.0
        %1830 = vmatprep.subr.mxu0 0.0
        %1831 = vmatpush2.msra.mxu0 0.0
        %1832 = vmatprep.subr.mxu0 0.0
        %1833 = vmatpush2.msra.mxu0 0.0
        %1834 = vmatprep.subr.mxu0 0.0
        %1835 = vmatpush2.msra.mxu0 0.0
        %1836 = vmatprep.subr.mxu0 0.0
        %1837 = vmatpush2.msra.mxu0 0.0
        %1838 = vmatprep.subr.mxu0 0.0
        %1839 = vmatpush2.msra.mxu0 0.0
        %1840 = vmatprep.subr.mxu0 0.0
        %1841 = vmatpush2.msra.mxu0 0.0
        %1842 = vmatprep.subr.mxu0 0.0
        %1843 = vmatpush2.msra.mxu0 0.0
        %1844 = vmatprep.subr.mxu0 0.0
        %1845 = vmatpush2.msra.mxu0 0.0
        %1846 = vmatprep.mubr.f32.mxu0 0.0
        %1847 = vmatmul.mubr.f32.gmra.mxu0 %v1780
        %v1848 = vpop.f32.mrf.mxu0
        %v1849 = vadd.f32 0.0, %v1848
        %v1850 = vpop.f32.mrf.mxu0
        %1851 = vdwg.mxu0
        %1852 = vrot.lane.b32.xlu0 %v922, 48
        %v1853 = vpop.permute.xlu0 %1852
        %v1856 = vsel %vm942, %v1775, 0
        %1858 = vmatprep.subr.mxu0 0.0
        %1859 = vmatpush1.msra.mxu0 0.0
        %1860 = vmatprep.subr.mxu0 0.0
        %1861 = vmatpush1.msra.mxu0 0.0
        %1862 = vmatprep.subr.mxu0 0.0
        %1863 = vmatpush1.msra.mxu0 0.0
        %1864 = vmatprep.subr.mxu0 0.0
        %1865 = vmatpush1.msra.mxu0 0.0
        %1866 = vmatprep.subr.mxu0 0.0
        %1867 = vmatpush1.msra.mxu0 0.0
        %1868 = vmatprep.subr.mxu0 0.0
        %1869 = vmatpush1.msra.mxu0 0.0
        %1870 = vmatprep.subr.mxu0 0.0
        %1871 = vmatpush1.msra.mxu0 0.0
        %1872 = vmatprep.subr.mxu0 0.0
        %1873 = vmatpush1.msra.mxu0 0.0
        %1874 = vmatprep.subr.mxu0 0.0
        %1875 = vmatpush1.msra.mxu0 0.0
        %1876 = vmatprep.subr.mxu0 0.0
        %1877 = vmatpush1.msra.mxu0 0.0
        %1878 = vmatprep.subr.mxu0 0.0
        %1879 = vmatpush1.msra.mxu0 0.0
        %1880 = vmatprep.subr.mxu0 0.0
        %1881 = vmatpush1.msra.mxu0 0.0
        %1882 = vmatprep.subr.mxu0 0.0
        %1883 = vmatpush1.msra.mxu0 0.0
        %1884 = vmatprep.subr.mxu0 0.0
        %1885 = vmatpush1.msra.mxu0 0.0
        %1886 = vmatprep.subr.mxu0 0.0
        %1887 = vmatpush1.msra.mxu0 0.0
        %1888 = vmatprep.subr.mxu0 0.0
        %1889 = vmatpush1.msra.mxu0 %v1853
        %1890 = vmatprep.subr.mxu0 0.0
        %1891 = vmatpush2.msra.mxu0 0.0
        %1892 = vmatprep.subr.mxu0 0.0
        %1893 = vmatpush2.msra.mxu0 0.0
        %1894 = vmatprep.subr.mxu0 0.0
        %1895 = vmatpush2.msra.mxu0 0.0
        %1896 = vmatprep.subr.mxu0 0.0
        %1897 = vmatpush2.msra.mxu0 0.0
        %1898 = vmatprep.subr.mxu0 0.0
        %1899 = vmatpush2.msra.mxu0 0.0
        %1900 = vmatprep.subr.mxu0 0.0
        %1901 = vmatpush2.msra.mxu0 0.0
        %1902 = vmatprep.subr.mxu0 0.0
        %1903 = vmatpush2.msra.mxu0 0.0
        %1904 = vmatprep.subr.mxu0 0.0
        %1905 = vmatpush2.msra.mxu0 0.0
        %1906 = vmatprep.subr.mxu0 0.0
        %1907 = vmatpush2.msra.mxu0 0.0
        %1908 = vmatprep.subr.mxu0 0.0
        %1909 = vmatpush2.msra.mxu0 0.0
        %1910 = vmatprep.subr.mxu0 0.0
        %1911 = vmatpush2.msra.mxu0 0.0
        %1912 = vmatprep.subr.mxu0 0.0
        %1913 = vmatpush2.msra.mxu0 0.0
        %1914 = vmatprep.subr.mxu0 0.0
        %1915 = vmatpush2.msra.mxu0 0.0
        %1916 = vmatprep.subr.mxu0 0.0
        %1917 = vmatpush2.msra.mxu0 0.0
        %1918 = vmatprep.subr.mxu0 0.0
        %1919 = vmatpush2.msra.mxu0 0.0
        %1920 = vmatprep.subr.mxu0 0.0
        %1921 = vmatpush2.msra.mxu0 0.0
        %1922 = vmatprep.mubr.f32.mxu0 0.0
        %1923 = vmatmul.mubr.f32.gmra.mxu0 %v1856
        %v1924 = vpop.f32.mrf.mxu0
        %v1925 = vadd.f32 0.0, %v1924
        %v1926 = vpop.f32.mrf.mxu0
        %1927 = vdwg.mxu0
        %1928 = vrot.lane.b32.xlu0 %v919, 104
        %v1929 = vpop.permute.xlu0 %1928
        %1930 = vrot.lane.b32.xlu0 %v919, 72
        %v1931 = vpop.permute.xlu0 %1930
        %v1932 = vsel %vm942, %v1929, 0
        %v1934 = vsel %vm942, %v1931, 0
        %1936 = vmatprep.subr.mxu0 0.0
        %1937 = vmatpush1.xpose.msra.mxu0 0.0
        %1938 = vmatprep.subr.mxu0 0.0
        %1939 = vmatpush1.xpose.msra.mxu0 0.0
        %1940 = vmatprep.subr.mxu0 0.0
        %1941 = vmatpush1.xpose.msra.mxu0 0.0
        %1942 = vmatprep.subr.mxu0 0.0
        %1943 = vmatpush1.xpose.msra.mxu0 0.0
        %1944 = vmatprep.subr.mxu0 0.0
        %1945 = vmatpush1.xpose.msra.mxu0 0.0
        %1946 = vmatprep.subr.mxu0 0.0
        %1947 = vmatpush1.xpose.msra.mxu0 0.0
        %1948 = vmatprep.subr.mxu0 0.0
        %1949 = vmatpush1.xpose.msra.mxu0 0.0
        %1950 = vmatprep.subr.mxu0 0.0
        %1951 = vmatpush1.xpose.msra.mxu0 0.0
        %1952 = vmatprep.subr.mxu0 0.0
        %1953 = vmatpush1.xpose.msra.mxu0 0.0
        %1954 = vmatprep.subr.mxu0 0.0
        %1955 = vmatpush1.xpose.msra.mxu0 0.0
        %1956 = vmatprep.subr.mxu0 0.0
        %1957 = vmatpush1.xpose.msra.mxu0 0.0
        %1958 = vmatprep.subr.mxu0 0.0
        %1959 = vmatpush1.xpose.msra.mxu0 0.0
        %1960 = vmatprep.subr.mxu0 0.0
        %1961 = vmatpush1.xpose.msra.mxu0 0.0
        %1962 = vmatprep.subr.mxu0 0.0
        %1963 = vmatpush1.xpose.msra.mxu0 0.0
        %1964 = vmatprep.subr.mxu0 0.0
        %1965 = vmatpush1.xpose.msra.mxu0 0.0
        %1966 = vmatprep.subr.mxu0 0.0
        %1967 = vmatpush1.xpose.msra.mxu0 %v1934
        %1968 = vmatprep.subr.mxu0 0.0
        %1969 = vmatpush2.xpose.msra.mxu0 0.0
        %1970 = vmatprep.subr.mxu0 0.0
        %1971 = vmatpush2.xpose.msra.mxu0 0.0
        %1972 = vmatprep.subr.mxu0 0.0
        %1973 = vmatpush2.xpose.msra.mxu0 0.0
        %1974 = vmatprep.subr.mxu0 0.0
        %1975 = vmatpush2.xpose.msra.mxu0 0.0
        %1976 = vmatprep.subr.mxu0 0.0
        %1977 = vmatpush2.xpose.msra.mxu0 0.0
        %1978 = vmatprep.subr.mxu0 0.0
        %1979 = vmatpush2.xpose.msra.mxu0 0.0
        %1980 = vmatprep.subr.mxu0 0.0
        %1981 = vmatpush2.xpose.msra.mxu0 0.0
        %1982 = vmatprep.subr.mxu0 0.0
        %1983 = vmatpush2.xpose.msra.mxu0 0.0
        %1984 = vmatprep.subr.mxu0 0.0
        %1985 = vmatpush2.xpose.msra.mxu0 0.0
        %1986 = vmatprep.subr.mxu0 0.0
        %1987 = vmatpush2.xpose.msra.mxu0 0.0
        %1988 = vmatprep.subr.mxu0 0.0
        %1989 = vmatpush2.xpose.msra.mxu0 0.0
        %1990 = vmatprep.subr.mxu0 0.0
        %1991 = vmatpush2.xpose.msra.mxu0 0.0
        %1992 = vmatprep.subr.mxu0 0.0
        %1993 = vmatpush2.xpose.msra.mxu0 0.0
        %1994 = vmatprep.subr.mxu0 0.0
        %1995 = vmatpush2.xpose.msra.mxu0 0.0
        %1996 = vmatprep.subr.mxu0 0.0
        %1997 = vmatpush2.xpose.msra.mxu0 0.0
        %1998 = vmatprep.subr.mxu0 0.0
        %1999 = vmatpush2.xpose.msra.mxu0 0.0
        %2000 = vmatprep.mubr.f32.mxu0 0.0
        %2001 = vmatmul.mubr.f32.gmra.mxu0 %v1932
        %v2002 = vpop.f32.mrf.mxu0
        %v2003 = vadd.f32 %v932, %v2002
        %v2004 = vpop.f32.mrf.mxu0
        %2005 = vdwg.mxu0
        %2006 = vrot.lane.b32.xlu0 %v922, 104
        %v2007 = vpop.permute.xlu0 %2006
        %2008 = vrot.lane.b32.xlu0 %v922, 72
        %v2009 = vpop.permute.xlu0 %2008
        %v2010 = vsel %vm942, %v2007, 0
        %v2012 = vsel %vm942, %v2009, 0
        %2014 = vmatprep.subr.mxu0 0.0
        %2015 = vmatpush1.xpose.msra.mxu0 0.0
        %2016 = vmatprep.subr.mxu0 0.0
        %2017 = vmatpush1.xpose.msra.mxu0 0.0
        %2018 = vmatprep.subr.mxu0 0.0
        %2019 = vmatpush1.xpose.msra.mxu0 0.0
        %2020 = vmatprep.subr.mxu0 0.0
        %2021 = vmatpush1.xpose.msra.mxu0 0.0
        %2022 = vmatprep.subr.mxu0 0.0
        %2023 = vmatpush1.xpose.msra.mxu0 0.0
        %2024 = vmatprep.subr.mxu0 0.0
        %2025 = vmatpush1.xpose.msra.mxu0 0.0
        %2026 = vmatprep.subr.mxu0 0.0
        %2027 = vmatpush1.xpose.msra.mxu0 0.0
        %2028 = vmatprep.subr.mxu0 0.0
        %2029 = vmatpush1.xpose.msra.mxu0 0.0
        %2030 = vmatprep.subr.mxu0 0.0
        %2031 = vmatpush1.xpose.msra.mxu0 0.0
        %2032 = vmatprep.subr.mxu0 0.0
        %2033 = vmatpush1.xpose.msra.mxu0 0.0
        %2034 = vmatprep.subr.mxu0 0.0
        %2035 = vmatpush1.xpose.msra.mxu0 0.0
        %2036 = vmatprep.subr.mxu0 0.0
        %2037 = vmatpush1.xpose.msra.mxu0 0.0
        %2038 = vmatprep.subr.mxu0 0.0
        %2039 = vmatpush1.xpose.msra.mxu0 0.0
        %2040 = vmatprep.subr.mxu0 0.0
        %2041 = vmatpush1.xpose.msra.mxu0 0.0
        %2042 = vmatprep.subr.mxu0 0.0
        %2043 = vmatpush1.xpose.msra.mxu0 0.0
        %2044 = vmatprep.subr.mxu0 0.0
        %2045 = vmatpush1.xpose.msra.mxu0 %v2012
        %2046 = vmatprep.subr.mxu0 0.0
        %2047 = vmatpush2.xpose.msra.mxu0 0.0
        %2048 = vmatprep.subr.mxu0 0.0
        %2049 = vmatpush2.xpose.msra.mxu0 0.0
        %2050 = vmatprep.subr.mxu0 0.0
        %2051 = vmatpush2.xpose.msra.mxu0 0.0
        %2052 = vmatprep.subr.mxu0 0.0
        %2053 = vmatpush2.xpose.msra.mxu0 0.0
        %2054 = vmatprep.subr.mxu0 0.0
        %2055 = vmatpush2.xpose.msra.mxu0 0.0
        %2056 = vmatprep.subr.mxu0 0.0
        %2057 = vmatpush2.xpose.msra.mxu0 0.0
        %2058 = vmatprep.subr.mxu0 0.0
        %2059 = vmatpush2.xpose.msra.mxu0 0.0
        %2060 = vmatprep.subr.mxu0 0.0
        %2061 = vmatpush2.xpose.msra.mxu0 0.0
        %2062 = vmatprep.subr.mxu0 0.0
        %2063 = vmatpush2.xpose.msra.mxu0 0.0
        %2064 = vmatprep.subr.mxu0 0.0
        %2065 = vmatpush2.xpose.msra.mxu0 0.0
        %2066 = vmatprep.subr.mxu0 0.0
        %2067 = vmatpush2.xpose.msra.mxu0 0.0
        %2068 = vmatprep.subr.mxu0 0.0
        %2069 = vmatpush2.xpose.msra.mxu0 0.0
        %2070 = vmatprep.subr.mxu0 0.0
        %2071 = vmatpush2.xpose.msra.mxu0 0.0
        %2072 = vmatprep.subr.mxu0 0.0
        %2073 = vmatpush2.xpose.msra.mxu0 0.0
        %2074 = vmatprep.subr.mxu0 0.0
        %2075 = vmatpush2.xpose.msra.mxu0 0.0
        %2076 = vmatprep.subr.mxu0 0.0
        %2077 = vmatpush2.xpose.msra.mxu0 0.0
        %2078 = vmatprep.mubr.f32.mxu0 0.0
        %2079 = vmatmul.mubr.f32.gmra.mxu0 %v2010
        %v2080 = vpop.f32.mrf.mxu0
        %v2081 = vadd.f32 %v936, %v2080
        %v2082 = vpop.f32.mrf.mxu0
        %2083 = vdwg.mxu0
        %v2084 = vsel %vm942, %v2003, -inf
        %2085 = vmax.xlane.f32.xlu0 %v2084
        %v2086 = vpop.xlane.xlu0 %2085
        %v2087 = vsel %vm942, %v2081, -inf
        %2088 = vmax.xlane.f32.xlu0 %v2087
        %v2089 = vpop.xlane.xlu0 %2088
        %v2090 = vsub.f32 %v2003, %v2086
        %v2091 = vsub.f32 %v2081, %v2089
        %v2092 = vmul.f32 %v2090, 1.442695
        %v2093 = vpow.pop %v2092
        %v2094 = vmul.f32 %v2091, 1.442695
        %v2095 = vpow.pop %v2094
        %v2096 = vsel %vm942, %v2093, 0.0
        %2097 = vadd.xlane.f32.xlu0 %v2096
        %v2098 = vpop.xlane.xlu0 %2097
        %v2099 = vsel %vm942, %v2095, 0.0
        %2100 = vadd.xlane.f32.xlu0 %v2099
        %v2101 = vpop.xlane.xlu0 %2100
        %v2102 = vrcp.pop %v2098
        %v2103 = vrcp.pop %v2101
        %v2104 = vmul.f32 %v2093, %v2102
        %v2105 = vmul.f32 %v2095, %v2103
        %2106 = vrot.lane.b32.xlu0 %v919, 40
        %v2107 = vpop.permute.xlu0 %2106
        %v2110 = vsel %vm942, %v2104, 0
        %2112 = vmatprep.subr.mxu0 0.0
        %2113 = vmatpush1.msra.mxu0 0.0
        %2114 = vmatprep.subr.mxu0 0.0
        %2115 = vmatpush1.msra.mxu0 0.0
        %2116 = vmatprep.subr.mxu0 0.0
        %2117 = vmatpush1.msra.mxu0 0.0
        %2118 = vmatprep.subr.mxu0 0.0
        %2119 = vmatpush1.msra.mxu0 0.0
        %2120 = vmatprep.subr.mxu0 0.0
        %2121 = vmatpush1.msra.mxu0 0.0
        %2122 = vmatprep.subr.mxu0 0.0
        %2123 = vmatpush1.msra.mxu0 0.0
        %2124 = vmatprep.subr.mxu0 0.0
        %2125 = vmatpush1.msra.mxu0 0.0
        %2126 = vmatprep.subr.mxu0 0.0
        %2127 = vmatpush1.msra.mxu0 0.0
        %2128 = vmatprep.subr.mxu0 0.0
        %2129 = vmatpush1.msra.mxu0 0.0
        %2130 = vmatprep.subr.mxu0 0.0
        %2131 = vmatpush1.msra.mxu0 0.0
        %2132 = vmatprep.subr.mxu0 0.0
        %2133 = vmatpush1.msra.mxu0 0.0
        %2134 = vmatprep.subr.mxu0 0.0
        %2135 = vmatpush1.msra.mxu0 0.0
        %2136 = vmatprep.subr.mxu0 0.0
        %2137 = vmatpush1.msra.mxu0 0.0
        %2138 = vmatprep.subr.mxu0 0.0
        %2139 = vmatpush1.msra.mxu0 0.0
        %2140 = vmatprep.subr.mxu0 0.0
        %2141 = vmatpush1.msra.mxu0 0.0
        %2142 = vmatprep.subr.mxu0 0.0
        %2143 = vmatpush1.msra.mxu0 %v2107
        %2144 = vmatprep.subr.mxu0 0.0
        %2145 = vmatpush2.msra.mxu0 0.0
        %2146 = vmatprep.subr.mxu0 0.0
        %2147 = vmatpush2.msra.mxu0 0.0
        %2148 = vmatprep.subr.mxu0 0.0
        %2149 = vmatpush2.msra.mxu0 0.0
        %2150 = vmatprep.subr.mxu0 0.0
        %2151 = vmatpush2.msra.mxu0 0.0
        %2152 = vmatprep.subr.mxu0 0.0
        %2153 = vmatpush2.msra.mxu0 0.0
        %2154 = vmatprep.subr.mxu0 0.0
        %2155 = vmatpush2.msra.mxu0 0.0
        %2156 = vmatprep.subr.mxu0 0.0
        %2157 = vmatpush2.msra.mxu0 0.0
        %2158 = vmatprep.subr.mxu0 0.0
        %2159 = vmatpush2.msra.mxu0 0.0
        %2160 = vmatprep.subr.mxu0 0.0
        %2161 = vmatpush2.msra.mxu0 0.0
        %2162 = vmatprep.subr.mxu0 0.0
        %2163 = vmatpush2.msra.mxu0 0.0
        %2164 = vmatprep.subr.mxu0 0.0
        %2165 = vmatpush2.msra.mxu0 0.0
        %2166 = vmatprep.subr.mxu0 0.0
        %2167 = vmatpush2.msra.mxu0 0.0
        %2168 = vmatprep.subr.mxu0 0.0
        %2169 = vmatpush2.msra.mxu0 0.0
        %2170 = vmatprep.subr.mxu0 0.0
        %2171 = vmatpush2.msra.mxu0 0.0
        %2172 = vmatprep.subr.mxu0 0.0
        %2173 = vmatpush2.msra.mxu0 0.0
        %2174 = vmatprep.subr.mxu0 0.0
        %2175 = vmatpush2.msra.mxu0 0.0
        %2176 = vmatprep.mubr.f32.mxu0 0.0
        %2177 = vmatmul.mubr.f32.gmra.mxu0 %v2110
        %v2178 = vpop.f32.mrf.mxu0
        %v2179 = vadd.f32 0.0, %v2178
        %v2180 = vpop.f32.mrf.mxu0
        %2181 = vdwg.mxu0
        %2182 = vrot.lane.b32.xlu0 %v922, 40
        %v2183 = vpop.permute.xlu0 %2182
        %v2186 = vsel %vm942, %v2105, 0
        %2188 = vmatprep.subr.mxu0 0.0
        %2189 = vmatpush1.msra.mxu0 0.0
        %2190 = vmatprep.subr.mxu0 0.0
        %2191 = vmatpush1.msra.mxu0 0.0
        %2192 = vmatprep.subr.mxu0 0.0
        %2193 = vmatpush1.msra.mxu0 0.0
        %2194 = vmatprep.subr.mxu0 0.0
        %2195 = vmatpush1.msra.mxu0 0.0
        %2196 = vmatprep.subr.mxu0 0.0
        %2197 = vmatpush1.msra.mxu0 0.0
        %2198 = vmatprep.subr.mxu0 0.0
        %2199 = vmatpush1.msra.mxu0 0.0
        %2200 = vmatprep.subr.mxu0 0.0
        %2201 = vmatpush1.msra.mxu0 0.0
        %2202 = vmatprep.subr.mxu0 0.0
        %2203 = vmatpush1.msra.mxu0 0.0
        %2204 = vmatprep.subr.mxu0 0.0
        %2205 = vmatpush1.msra.mxu0 0.0
        %2206 = vmatprep.subr.mxu0 0.0
        %2207 = vmatpush1.msra.mxu0 0.0
        %2208 = vmatprep.subr.mxu0 0.0
        %2209 = vmatpush1.msra.mxu0 0.0
        %2210 = vmatprep.subr.mxu0 0.0
        %2211 = vmatpush1.msra.mxu0 0.0
        %2212 = vmatprep.subr.mxu0 0.0
        %2213 = vmatpush1.msra.mxu0 0.0
        %2214 = vmatprep.subr.mxu0 0.0
        %2215 = vmatpush1.msra.mxu0 0.0
        %2216 = vmatprep.subr.mxu0 0.0
        %2217 = vmatpush1.msra.mxu0 0.0
        %2218 = vmatprep.subr.mxu0 0.0
        %2219 = vmatpush1.msra.mxu0 %v2183
        %2220 = vmatprep.subr.mxu0 0.0
        %2221 = vmatpush2.msra.mxu0 0.0
        %2222 = vmatprep.subr.mxu0 0.0
        %2223 = vmatpush2.msra.mxu0 0.0
        %2224 = vmatprep.subr.mxu0 0.0
        %2225 = vmatpush2.msra.mxu0 0.0
        %2226 = vmatprep.subr.mxu0 0.0
        %2227 = vmatpush2.msra.mxu0 0.0
        %2228 = vmatprep.subr.mxu0 0.0
        %2229 = vmatpush2.msra.mxu0 0.0
        %2230 = vmatprep.subr.mxu0 0.0
        %2231 = vmatpush2.msra.mxu0 0.0
        %2232 = vmatprep.subr.mxu0 0.0
        %2233 = vmatpush2.msra.mxu0 0.0
        %2234 = vmatprep.subr.mxu0 0.0
        %2235 = vmatpush2.msra.mxu0 0.0
        %2236 = vmatprep.subr.mxu0 0.0
        %2237 = vmatpush2.msra.mxu0 0.0
        %2238 = vmatprep.subr.mxu0 0.0
        %2239 = vmatpush2.msra.mxu0 0.0
        %2240 = vmatprep.subr.mxu0 0.0
        %2241 = vmatpush2.msra.mxu0 0.0
        %2242 = vmatprep.subr.mxu0 0.0
        %2243 = vmatpush2.msra.mxu0 0.0
        %2244 = vmatprep.subr.mxu0 0.0
        %2245 = vmatpush2.msra.mxu0 0.0
        %2246 = vmatprep.subr.mxu0 0.0
        %2247 = vmatpush2.msra.mxu0 0.0
        %2248 = vmatprep.subr.mxu0 0.0
        %2249 = vmatpush2.msra.mxu0 0.0
        %2250 = vmatprep.subr.mxu0 0.0
        %2251 = vmatpush2.msra.mxu0 0.0
        %2252 = vmatprep.mubr.f32.mxu0 0.0
        %2253 = vmatmul.mubr.f32.gmra.mxu0 %v2186
        %v2254 = vpop.f32.mrf.mxu0
        %v2255 = vadd.f32 0.0, %v2254
        %v2256 = vpop.f32.mrf.mxu0
        %2257 = vdwg.mxu0
        %2260 = vrot.lane.b32.xlu0 %v1519, 8
        %v2261 = vpop.permute.xlu0 %2260
        %2262 = vrot.lane.b32.xlu0 %v1595, 8
        %v2263 = vpop.permute.xlu0 %2262
        %2268 = vrot.lane.b32.xlu0 %v1849, 16
        %v2269 = vpop.permute.xlu0 %2268
        %2270 = vrot.lane.b32.xlu0 %v1925, 16
        %v2271 = vpop.permute.xlu0 %2270
        %2276 = vrot.lane.b32.xlu0 %v2179, 24
        %v2277 = vpop.permute.xlu0 %2276
        %2278 = vrot.lane.b32.xlu0 %v2255, 24
        %v2279 = vpop.permute.xlu0 %2278
        %v2282 = vsel %vm942, %v1189, %v2261
        %v2283 = vsel %vm942, %v1265, %v2263
        %vm2284 = vcmask 130048
        %v2285 = vsel %vm2284, %v2282, %v2269
        %v2286 = vsel %vm2284, %v2283, %v2271
        %vm2287 = vcmask 195584
        %v2288 = vsel %vm2287, %v2285, %v2277
        %v2289 = vsel %vm2287, %v2286, %v2279
        %v2290 = vld [vmem:[%s765] sm:$0xf]
        %v2291 = vld [vmem:[%s765 + $0x4] sm:$0xf]
        %v2292 = vld [vmem:[%s765 + $0x8] sm:$0xf]
        %v2293 = vld [vmem:[%s765 + $0xc] sm:$0xf]
        %v2294 = vpack.c.bf16 %v2289, %v2288
        %v2295 = vld [vmem:[%s768] sm:$0x1]
        %v2297 = vlaneseq
        %v2298 = vshrl.u32 %v2297, 7
        %v2299 = vsub.s32 0, %v2298
        %v2300 = vrot.slane %v2295, %v2299
        %v2306 = vunpack.c.l.b16 %v2290
        %v2307 = vunpack.c.l.b16 %v2291
        %v2308 = vunpack.c.l.b16 %v2292
        %v2309 = vunpack.c.l.b16 %v2293
        %v2310 = vpack.c.b16 %v2307, %v2306
        %v2311 = vpack.c.b16 %v2309, %v2308
        %v2315 = vsel %vm880, %v2294, 0
        %2317 = vmatprep.subr.bf16.mxu0 0
        %2318 = vmatpush1.bf16.msra.mxu0 0
        %2319 = vmatprep.subr.bf16.mxu0 0
        %2320 = vmatpush1.bf16.msra.mxu0 0
        %2321 = vmatprep.subr.bf16.mxu0 0
        %2322 = vmatpush1.bf16.msra.mxu0 0
        %2323 = vmatprep.subr.bf16.mxu0 0
        %2324 = vmatpush1.bf16.msra.mxu0 0
        %2325 = vmatprep.subr.bf16.mxu0 0
        %2326 = vmatpush1.bf16.msra.mxu0 0
        %2327 = vmatprep.subr.bf16.mxu0 0
        %2328 = vmatpush1.bf16.msra.mxu0 0
        %2329 = vmatprep.subr.bf16.mxu0 0
        %2330 = vmatpush1.bf16.msra.mxu0 %v2311
        %2331 = vmatprep.subr.bf16.mxu0 0
        %2332 = vmatpush1.bf16.msra.mxu0 %v2310
        %2333 = vmatprep.subr.bf16.mxu0 0
        %2334 = vmatpush2.bf16.msra.mxu0 0
        %2335 = vmatprep.subr.bf16.mxu0 0
        %2336 = vmatpush2.bf16.msra.mxu0 0
        %2337 = vmatprep.subr.bf16.mxu0 0
        %2338 = vmatpush2.bf16.msra.mxu0 0
        %2339 = vmatprep.subr.bf16.mxu0 0
        %2340 = vmatpush2.bf16.msra.mxu0 0
        %2341 = vmatprep.subr.bf16.mxu0 0
        %2342 = vmatpush2.bf16.msra.mxu0 0
        %2343 = vmatprep.subr.bf16.mxu0 0
        %2344 = vmatpush2.bf16.msra.mxu0 0
        %2345 = vmatprep.subr.bf16.mxu0 0
        %2346 = vmatpush2.bf16.msra.mxu0 0
        %2347 = vmatprep.subr.bf16.mxu0 0
        %2348 = vmatpush2.bf16.msra.mxu0 0
        %2349 = vmatprep.mubr.bf16.mxu0 0
        %2350 = vmatmul.mubr.bf16.gmra.mxu0 %v2315
        %v2351 = vpop.f32.mrf.mxu0
        %v2352 = vadd.f32 %v2300, %v2351
        %v2353 = vpop.f32.mrf.mxu0
        %v2354 = vpop.f32.mrf.mxu0
        %v2355 = vadd.f32 %v2300, %v2354
        %v2356 = vpop.f32.mrf.mxu0
        %2357 = vdwg.mxu0
        %v2358 = vadd.f32 %v2352, %v854
        %v2359 = vadd.f32 %v2355, %v855
        %v2360 = vld [vmem:[%s771] sm:$0x1]
        %v2361 = vld [vmem:[%s774] sm:$0x1]
        %v2362 = vsel %vm880, %v2358, 0.0
        %2363 = vadd.xlane.f32.xlu0 %v2362
        %v2364 = vpop.xlane.xlu0 %2363
        %v2365 = vsel %vm880, %v2359, 0.0
        %2366 = vadd.xlane.f32.xlu0 %v2365
        %v2367 = vpop.xlane.xlu0 %2366
        %v2368 = vrcp.pop 32.0
        %v2369 = vmul.f32 %v2364, %v2368
        %v2370 = vmul.f32 %v2367, %v2368
        %v2371 = vsub.f32 %v2358, %v2369
        %v2372 = vsub.f32 %v2359, %v2370
        %v2373 = vmul.f32 %v2371, %v2371
        %v2374 = vmul.f32 %v2372, %v2372
        %v2375 = vsel %vm880, %v2373, 0.0
        %2376 = vadd.xlane.f32.xlu0 %v2375
        %v2377 = vpop.xlane.xlu0 %2376
        %v2378 = vsel %vm880, %v2374, 0.0
        %2379 = vadd.xlane.f32.xlu0 %v2378
        %v2380 = vpop.xlane.xlu0 %2379
        %v2381 = vmul.f32 %v2377, %v2368
        %v2382 = vmul.f32 %v2380, %v2368
        %v2383 = vadd.f32 %v2381, 1e-12
        %v2384 = vadd.f32 %v2382, 1e-12
        %v2385 = vrsqrt.pop %v2383
        %v2386 = vrsqrt.pop %v2384
        %v2387 = vmul.f32 %v2371, %v2385
        %v2388 = vmul.f32 %v2372, %v2386
        %v2390 = vlaneseq
        %v2391 = vshrl.u32 %v2390, 7
        %v2392 = vsub.s32 0, %v2391
        %v2393 = vrot.slane %v2360, %v2392
        %v2395 = vmul.f32 %v2387, %v2393
        %v2396 = vmul.f32 %v2388, %v2393
        %v2398 = vlaneseq
        %v2399 = vshrl.u32 %v2398, 7
        %v2400 = vsub.s32 0, %v2399
        %v2401 = vrot.slane %v2361, %v2400
        %v2403 = vadd.f32 %v2395, %v2401
        %v2404 = vadd.f32 %v2396, %v2401
        %v2405 = vld [vmem:[%s779] sm:$0xf]
        %v2406 = vld [vmem:[%s779 + $0x4] sm:$0xf]
        %v2407 = vld [vmem:[%s779 + $0x8] sm:$0xf]
        %v2408 = vld [vmem:[%s779 + $0xc] sm:$0xf]
        %v2409 = vpack.c.bf16 %v2404, %v2403
        %v2410 = vld [vmem:[%s782] sm:$0x1]
        %v2412 = vlaneseq
        %v2413 = vshrl.u32 %v2412, 7
        %v2414 = vsub.s32 0, %v2413
        %v2415 = vrot.slane %v2410, %v2414
        %v2421 = vunpack.c.l.b16 %v2405
        %v2422 = vunpack.c.l.b16 %v2406
        %v2423 = vunpack.c.l.b16 %v2407
        %v2424 = vunpack.c.l.b16 %v2408
        %v2425 = vpack.c.b16 %v2422, %v2421
        %v2426 = vpack.c.b16 %v2424, %v2423
        %v2430 = vsel %vm880, %v2409, 0
        %2432 = vmatprep.subr.bf16.mxu0 0
        %2433 = vmatpush1.bf16.msra.mxu0 0
        %2434 = vmatprep.subr.bf16.mxu0 0
        %2435 = vmatpush1.bf16.msra.mxu0 0
        %2436 = vmatprep.subr.bf16.mxu0 0
        %2437 = vmatpush1.bf16.msra.mxu0 0
        %2438 = vmatprep.subr.bf16.mxu0 0
        %2439 = vmatpush1.bf16.msra.mxu0 0
        %2440 = vmatprep.subr.bf16.mxu0 0
        %2441 = vmatpush1.bf16.msra.mxu0 0
        %2442 = vmatprep.subr.bf16.mxu0 0
        %2443 = vmatpush1.bf16.msra.mxu0 0
        %2444 = vmatprep.subr.bf16.mxu0 0
        %2445 = vmatpush1.bf16.msra.mxu0 %v2426
        %2446 = vmatprep.subr.bf16.mxu0 0
        %2447 = vmatpush1.bf16.msra.mxu0 %v2425
        %2448 = vmatprep.subr.bf16.mxu0 0
        %2449 = vmatpush2.bf16.msra.mxu0 0
        %2450 = vmatprep.subr.bf16.mxu0 0
        %2451 = vmatpush2.bf16.msra.mxu0 0
        %2452 = vmatprep.subr.bf16.mxu0 0
        %2453 = vmatpush2.bf16.msra.mxu0 0
        %2454 = vmatprep.subr.bf16.mxu0 0
        %2455 = vmatpush2.bf16.msra.mxu0 0
        %2456 = vmatprep.subr.bf16.mxu0 0
        %2457 = vmatpush2.bf16.msra.mxu0 0
        %2458 = vmatprep.subr.bf16.mxu0 0
        %2459 = vmatpush2.bf16.msra.mxu0 0
        %2460 = vmatprep.subr.bf16.mxu0 0
        %2461 = vmatpush2.bf16.msra.mxu0 0
        %2462 = vmatprep.subr.bf16.mxu0 0
        %2463 = vmatpush2.bf16.msra.mxu0 0
        %2464 = vmatprep.mubr.bf16.mxu0 0
        %2465 = vmatmul.mubr.bf16.gmra.mxu0 %v2430
        %v2466 = vpop.f32.mrf.mxu0
        %v2467 = vadd.f32 %v2415, %v2466
        %v2468 = vpop.f32.mrf.mxu0
        %v2469 = vpop.f32.mrf.mxu0
        %v2470 = vadd.f32 %v2415, %v2469
        %v2471 = vpop.f32.mrf.mxu0
        %2472 = vdwg.mxu0
        %v2473 = vmul.f32 %v2467, 0.5
        %v2474 = vmul.f32 %v2470, 0.5
        %v2475 = vmul.f32 %v2467, 0.044715
        %v2476 = vmul.f32 %v2470, 0.044715
        %v2477 = vmul.f32 %v2475, %v2467
        %v2478 = vmul.f32 %v2476, %v2470
        %v2479 = vmul.f32 %v2477, %v2467
        %v2480 = vmul.f32 %v2478, %v2470
        %v2481 = vadd.f32 %v2467, %v2479
        %v2482 = vadd.f32 %v2470, %v2480
        %v2483 = vmul.f32 %v2481, 0.7978846
        %v2484 = vmul.f32 %v2482, 0.7978846
        %v2485 = vtanh.pop %v2483
        %v2486 = vtanh.pop %v2484
        %v2487 = vadd.f32 %v2485, 1.0
        %v2488 = vadd.f32 %v2486, 1.0
        %v2489 = vmul.f32 %v2473, %v2487
        %v2490 = vmul.f32 %v2474, %v2488
        %v2491 = vld [vmem:[%s787] sm:$0xf]
        %v2492 = vld [vmem:[%s787 + $0x4] sm:$0xf]
        %v2493 = vld [vmem:[%s787 + $0x8] sm:$0xf]
        %v2494 = vld [vmem:[%s787 + $0xc] sm:$0xf]
        %v2495 = vld [vmem:[%s787 + $0x10] sm:$0xf]
        %v2496 = vld [vmem:[%s787 + $0x14] sm:$0xf]
        %v2497 = vld [vmem:[%s787 + $0x18] sm:$0xf]
        %v2498 = vld [vmem:[%s787 + $0x1c] sm:$0xf]
        %v2499 = vpack.c.bf16 %v2490, %v2489
        %v2500 = vld [vmem:[%s790] sm:$0x1]
        %v2502 = vlaneseq
        %v2503 = vshrl.u32 %v2502, 7
        %v2504 = vsub.s32 0, %v2503
        %v2505 = vrot.slane %v2500, %v2504
        %v2515 = vunpack.c.l.b16 %v2491
        %v2516 = vunpack.c.l.b16 %v2492
        %v2517 = vunpack.c.l.b16 %v2493
        %v2518 = vunpack.c.l.b16 %v2494
        %v2519 = vunpack.c.l.b16 %v2495
        %v2520 = vunpack.c.l.b16 %v2496
        %v2521 = vunpack.c.l.b16 %v2497
        %v2522 = vunpack.c.l.b16 %v2498
        %v2523 = vpack.c.b16 %v2516, %v2515
        %v2524 = vpack.c.b16 %v2518, %v2517
        %v2525 = vpack.c.b16 %v2520, %v2519
        %v2526 = vpack.c.b16 %v2522, %v2521
        %vm2531 = vcmask 523264
        %v2533 = vsel %vm2531, %v2499, 0
        %2535 = vmatprep.subr.bf16.mxu0 0
        %2536 = vmatpush1.bf16.msra.mxu0 0
        %2537 = vmatprep.subr.bf16.mxu0 0
        %2538 = vmatpush1.bf16.msra.mxu0 0
        %2539 = vmatprep.subr.bf16.mxu0 0
        %2540 = vmatpush1.bf16.msra.mxu0 0
        %2541 = vmatprep.subr.bf16.mxu0 0
        %2542 = vmatpush1.bf16.msra.mxu0 0
        %2543 = vmatprep.subr.bf16.mxu0 0
        %2544 = vmatpush1.bf16.msra.mxu0 %v2526
        %2545 = vmatprep.subr.bf16.mxu0 0
        %2546 = vmatpush1.bf16.msra.mxu0 %v2525
        %2547 = vmatprep.subr.bf16.mxu0 0
        %2548 = vmatpush1.bf16.msra.mxu0 %v2524
        %2549 = vmatprep.subr.bf16.mxu0 0
        %2550 = vmatpush1.bf16.msra.mxu0 %v2523
        %2551 = vmatprep.subr.bf16.mxu0 0
        %2552 = vmatpush2.bf16.msra.mxu0 0
        %2553 = vmatprep.subr.bf16.mxu0 0
        %2554 = vmatpush2.bf16.msra.mxu0 0
        %2555 = vmatprep.subr.bf16.mxu0 0
        %2556 = vmatpush2.bf16.msra.mxu0 0
        %2557 = vmatprep.subr.bf16.mxu0 0
        %2558 = vmatpush2.bf16.msra.mxu0 0
        %2559 = vmatprep.subr.bf16.mxu0 0
        %2560 = vmatpush2.bf16.msra.mxu0 0
        %2561 = vmatprep.subr.bf16.mxu0 0
        %2562 = vmatpush2.bf16.msra.mxu0 0
        %2563 = vmatprep.subr.bf16.mxu0 0
        %2564 = vmatpush2.bf16.msra.mxu0 0
        %2565 = vmatprep.subr.bf16.mxu0 0
        %2566 = vmatpush2.bf16.msra.mxu0 0
        %2567 = vmatprep.mubr.bf16.mxu0 0
        %2568 = vmatmul.mubr.bf16.gmra.mxu0 %v2533
        %v2569 = vpop.f32.mrf.mxu0
        %v2570 = vadd.f32 %v2505, %v2569
        %v2571 = vpop.f32.mrf.mxu0
        %v2572 = vpop.f32.mrf.mxu0
        %v2573 = vadd.f32 %v2505, %v2572
        %v2574 = vpop.f32.mrf.mxu0
        %2575 = vdwg.mxu0
        %v2576 = vadd.f32 %v2570, %v2403
        %v2577 = vadd.f32 %v2573, %v2404
        %v2578 = vld [vmem:[%s793] sm:$0x1]
        %v2579 = vld [vmem:[%s796] sm:$0x1]
        %v2580 = vsel %vm880, %v2576, 0.0
        %2581 = vadd.xlane.f32.xlu0 %v2580
        %v2582 = vpop.xlane.xlu0 %2581
        %v2583 = vsel %vm880, %v2577, 0.0
        %2584 = vadd.xlane.f32.xlu0 %v2583
        %v2585 = vpop.xlane.xlu0 %2584
        %v2586 = vmul.f32 %v2582, %v2368
        %v2587 = vmul.f32 %v2585, %v2368
        %v2588 = vsub.f32 %v2576, %v2586
        %v2589 = vsub.f32 %v2577, %v2587
        %v2590 = vmul.f32 %v2588, %v2588
        %v2591 = vmul.f32 %v2589, %v2589
        %v2592 = vsel %vm880, %v2590, 0.0
        %2593 = vadd.xlane.f32.xlu0 %v2592
        %v2594 = vpop.xlane.xlu0 %2593
        %v2595 = vsel %vm880, %v2591, 0.0
        %2596 = vadd.xlane.f32.xlu0 %v2595
        %v2597 = vpop.xlane.xlu0 %2596
        %v2598 = vmul.f32 %v2594, %v2368
        %v2599 = vmul.f32 %v2597, %v2368
        %v2600 = vadd.f32 %v2598, 1e-12
        %v2601 = vadd.f32 %v2599, 1e-12
        %v2602 = vrsqrt.pop %v2600
        %v2603 = vrsqrt.pop %v2601
        %v2604 = vmul.f32 %v2588, %v2602
        %v2605 = vmul.f32 %v2589, %v2603
        %v2607 = vlaneseq
        %v2608 = vshrl.u32 %v2607, 7
        %v2609 = vsub.s32 0, %v2608
        %v2610 = vrot.slane %v2578, %v2609
        %v2612 = vmul.f32 %v2604, %v2610
        %v2613 = vmul.f32 %v2605, %v2610
        %v2615 = vlaneseq
        %v2616 = vshrl.u32 %v2615, 7
        %v2617 = vsub.s32 0, %v2616
        %v2618 = vrot.slane %v2579, %v2617
        %v2620 = vadd.f32 %v2612, %v2618
        %v2621 = vadd.f32 %v2613, %v2618
        %2622 = vst.msk [vmem:[#allocation2] sm:$0xff] %vm880, %v2620
        %2623 = vst.msk [vmem:[#allocation2 + $0x8] sm:$0xff] %vm880, %v2621
        %p2624 = scmp.ge.s32.totalorder %s35, 1
        %s2625 = scalar_select %p2624, 1, 0
        %s2626 = scvt.s32.f32 %s2625
        %v2627 = vld [vmem:[#allocation3] sm:$0xff]
        %v2628 = vld [vmem:[#allocation3 + $0x8] sm:$0xff]
        %v2629 = vstv %s2626
        %v2630 = vmul.f32 %v2629, %v2620
        %v2631 = vmul.f32 %v2629, %v2621
        %v2632 = vadd.f32 %v2627, %v2630
        %v2633 = vadd.f32 %v2628, %v2631
        %2634 = vst.msk [vmem:[#allocation3] sm:$0xff] %vm880, %v2632
        %2635 = vst.msk [vmem:[#allocation3 + $0x8] sm:$0xff] %vm880, %v2633
        %p2636 = scmp.eq.s32.totalorder %s35, 2
        // Predicated region
        $region105: #{tpu_custom_call.1} parent=87 // pred_check
          %p2637 = pneg %p2636
        $region106: #{tpu_custom_call.1} parent=87 // pred_check_branch
          %2639 = sbr.rel (%p2637) target = $region108
        $region107: #{tpu_custom_call.1} parent=87 // pred_region
          %2640 = vst.msk [vmem:[#allocation10] sm:$0xff] %vm880, %v2620
          %2641 = vst.msk [vmem:[#allocation10 + $0x8] sm:$0xff] %vm880, %v2621
          %v2642 = vmul.f32 %v2632, 0.25
          %v2643 = vmul.f32 %v2633, 0.25
          %v2644 = vld [vmem:[%s2] sm:$0xff]
          %v2645 = vld [vmem:[%s2 + $0x8] sm:$0xff]
          %2647 = vset.pattern.permute.xlu0 0
          %2648 = vperm.xlu0 %2647, %v2644
          %v2649 = vpop.permute.xlu0 %2648
          %2652 = vset.pattern.permute.xlu0 0
          %2653 = vperm.xlu0 %2652, %v2645
          %v2654 = vpop.permute.xlu0 %2653
          %v2656 = vmul.f32 %v2642, %v2649
          %v2657 = vmul.f32 %v2643, %v2654
          %2658 = vst.msk [vmem:[#allocation11] sm:$0xff] %vm880, %v2656
          %2659 = vst.msk [vmem:[#allocation11 + $0x8] sm:$0xff] %vm880, %v2657
          %v2660 = vld [vmem:[%s2] sm:$0xff]
          %v2661 = vld [vmem:[%s2 + $0x8] sm:$0xff]
          %vm2662 = vcmask 7168
          %v2663 = vsel %vm2662, %v2660, 0.0
          %v2664 = vrot.slane %v2663, 4
          %v2665 = vadd.f32 %v2663, %v2664
          %v2666 = vrot.slane %v2665, 2
          %v2667 = vadd.f32 %v2665, %v2666
          %v2668 = vrot.slane %v2667, 1
          %v2669 = vadd.f32 %v2667, %v2668
          %v2670 = vsel %vm2662, %v2661, 0.0
          %v2671 = vrot.slane %v2670, 4
          %v2672 = vadd.f32 %v2670, %v2671
          %v2673 = vrot.slane %v2672, 2
          %v2674 = vadd.f32 %v2672, %v2673
          %v2675 = vrot.slane %v2674, 1
          %v2676 = vadd.f32 %v2674, %v2675
          %v2677 = vsel %vm880, %v2656, 0.0
          %v2678 = vrot.slane %v2677, 4
          %v2679 = vadd.f32 %v2677, %v2678
          %v2680 = vrot.slane %v2679, 2
          %v2681 = vadd.f32 %v2679, %v2680
          %v2682 = vrot.slane %v2681, 1
          %v2683 = vadd.f32 %v2681, %v2682
          %v2684 = vsel %vm880, %v2657, 0.0
          %v2685 = vrot.slane %v2684, 4
          %v2686 = vadd.f32 %v2684, %v2685
          %v2687 = vrot.slane %v2686, 2
          %v2688 = vadd.f32 %v2686, %v2687
          %v2689 = vrot.slane %v2688, 1
          %v2690 = vadd.f32 %v2688, %v2689
          %2692 = vset.pattern.permute.xlu0 0
          %2693 = vperm.xlu0 %2692, %v2669
          %v2694 = vpop.permute.xlu0 %2693
          %2697 = vset.pattern.permute.xlu0 0
          %2698 = vperm.xlu0 %2697, %v2676
          %v2699 = vpop.permute.xlu0 %2698
          %v2701 = vrcp.pop %v2694
          %v2702 = vmul.f32 %v2683, %v2701
          %v2703 = vrcp.pop %v2699
          %v2704 = vmul.f32 %v2690, %v2703
          %vm2707 = vcmask 1041409
          %v2708 = vsel %vm2707, %v2704, %v2702
          %vm2710 = vcmask 254976
          %2711 = vst.msk [vmem:[#allocation13] sm:$0x3] %vm2710, %v2708
        $region108: #{tpu_custom_call.1} parent=87 // pred_fallthru
          _
        // Predicated region
        $region109: #{tpu_custom_call.1} parent=87 // pred_check
          %p2712 = pneg %p465
        $region110: #{tpu_custom_call.1} parent=87 // pred_check_branch
          %2714 = sbr.rel (%p2712) target = $region112
        $region111: #{tpu_custom_call.1} parent=87 // pred_region
          %s2716 = ssub.s32 256, 256
          %2717 = vsyncadd [#allocation6], %s2716
          %s2718 = sshll.u32 [#allocation10], 4
          %s2719 = int_to_ptr.vmem [resolvable:$true] %s2718
          %2724 = dma.vmem_to_hbm [thread:$0]  %s2719, 256, %s17, [#allocation6], 128, 128, 8
        $region112: #{tpu_custom_call.1} parent=87 // pred_fallthru
          _
        // Predicated region
        $region113: #{tpu_custom_call.1} parent=87 // pred_check
          %p2725 = pneg %p486
        $region114: #{tpu_custom_call.1} parent=87 // pred_check_branch
          %2727 = sbr.rel (%p2725) target = $region116
        $region115: #{tpu_custom_call.1} parent=87 // pred_region
          %s2729 = ssub.s32 256, 256
          %2730 = vsyncadd [#allocation12], %s2729
          %s2731 = sshll.u32 [#allocation11], 4
          %s2732 = int_to_ptr.vmem [resolvable:$true] %s2731
          %2737 = dma.vmem_to_hbm [thread:$0]  %s2732, 256, %s18, [#allocation12], 128, 128, 8
        $region116: #{tpu_custom_call.1} parent=87 // pred_fallthru
          _
        // Predicated region
        $region117: #{tpu_custom_call.1} parent=87 // pred_check
          %p2738 = pneg %p507
        $region118: #{tpu_custom_call.1} parent=87 // pred_check_branch
          %2740 = sbr.rel (%p2738) target = $region120
        $region119: #{tpu_custom_call.1} parent=87 // pred_region
          %s2742 = ssub.s32 32, 32
          %2743 = vsyncadd [#allocation12], %s2742
          %s2745 = sshll.u32 [#allocation13], 4
          %s2746 = int_to_ptr.vmem [resolvable:$true] %s2745
          %2748 = dma.vmem_to_hbm [thread:$0]  %s2746, 32, %s19, [#allocation12]
        $region120: #{tpu_custom_call.1} parent=87 // pred_fallthru
          _
        // Predicated region
        $region121: #{tpu_custom_call.1} parent=87 // pred_check
          %p2749 = pneg %p465
        $region122: #{tpu_custom_call.1} parent=87 // pred_check_branch
          %2751 = sbr.rel (%p2749) target = $region124
        $region123: #{tpu_custom_call.1} parent=87 // pred_region
          %2752 = dma.done [#allocation6], 256
        $region124: #{tpu_custom_call.1} parent=87 // pred_fallthru
          _
        // Predicated region
        $region125: #{tpu_custom_call.1} parent=87 // pred_check
          %p2753 = pneg %p486
        $region126: #{tpu_custom_call.1} parent=87 // pred_check_branch
          %2755 = sbr.rel (%p2753) target = $region128
        $region127: #{tpu_custom_call.1} parent=87 // pred_region
          %2756 = dma.done [#allocation12], 256
        $region128: #{tpu_custom_call.1} parent=87 // pred_fallthru
          _
        // Predicated region
        $region129: #{tpu_custom_call.1} parent=87 // pred_check
          %p2757 = pneg %p507
        $region130: #{tpu_custom_call.1} parent=87 // pred_check_branch
          %2759 = sbr.rel (%p2757) target = $region132
        $region131: #{tpu_custom_call.1} parent=87 // pred_region
          %2760 = dma.done [#allocation12], 32
        $region132: #{tpu_custom_call.1} parent=87 // pred_fallthru
          _
      $region88: #{tpu_custom_call.1} parent=5 // pred_fallthru
        _
      %p2761 = scmp.le.s32.totalorder 2, %s30
      // Predicated region
      $region133: #{tpu_custom_call.1} parent=5 // pred_check
        %p2762 = pneg %p2761
      $region134: #{tpu_custom_call.1} parent=5 // pred_check_branch
        %2764 = sbr.rel (%p2762) target = $region136
      $region135: #{tpu_custom_call.1} parent=5 // pred_region
        %s2765 = ssub.s32 %s30, 2
      $region136: #{tpu_custom_call.1} parent=5 // pred_fallthru
        _
    $region6: #{tpu_custom_call.1} parent=1 // loop_footer
      %s34 = sadd.s32 1, %s30
    $region7: #{tpu_custom_call.1} parent=1 // loop_footer_branch
      %29 = sbr.rel target = $region3
    $region8: #{tpu_custom_call.1} parent=1 // loop_exit
      _
    %2766 = vsyncpa [#allocation5], 1
    %s2767 = scalar_lea.sflag [#allocation5], 1
    %2768 = vsyncpa %s2767, 1
    %2769 = vsyncpa [#allocation8], 1
    %2770 = vsyncpa [#allocation6], 1
    %s2771 = scalar_lea.sflag [#allocation6], 1
    %2772 = vsyncpa %s2771, 1
    %2773 = vsyncpa [#allocation12], 1

</llo_original>
